<compile_context>
chip_gen: v7x
topology: tpu7x:2x2x1
jax: 0.10.0
libtpu: 0.0.40
codegen_flags: <defaults>
</compile_context>

<pallas_src>
import functools

import jax
import jax.numpy as jnp
from jax import lax
from jax.experimental import pallas as pl
from jax.experimental.pallas import tpu as pltpu

HIDDEN = 128  # matches the PyTorch module's hidden_dim


def discriminator_kernel(x_ref,      # (T*bt, D)   bf16, rows ordered t*bt + b
                         wih0_ref,   # (D, 4H)     bf16, weight_ih_l0^T
                         b0_ref,     # (1, 4H)     f32,  bias_ih_l0 + bias_hh_l0
                         wh0_ref,    # (H, 8H)     bf16, [whh0 | wih1]
                         wh1_ref,    # (H, 4H)     bf16, whh1
                         b1_ref,     # (1, 4H)     f32,  bias_ih_l1 + bias_hh_l1
                         fcw_ref,    # (1, H)      f32,  fc.weight
                         fcb_ref,    # (1, 1)      f32,  fc.bias
                         out_ref,    # (bt, 1)     f32
                         xw0_ref,    # VMEM scratch (T*bt, 4H) f32
                         *, bt, seq):
    T = seq
    H = fcw_ref.shape[1]
    H4 = 4 * H

    # ---- Hoisted layer-0 input projection: one bf16 MXU matmul, f32 accumulate,
    #      bias folded in.
    xw0_ref[...] = (
        jnp.dot(x_ref[...], wih0_ref[...], preferred_element_type=jnp.float32)
        + b0_ref[...]
    )

    b1 = b1_ref[...]  # small (1, 4H); hoisted, loop-invariant

    def gate_act(gates, c_prev):
        # PyTorch gate order i, f, g, o — exact 128-lane slices (H == 128).
        i = jax.nn.sigmoid(gates[:, 0 * H:1 * H])
        f = jax.nn.sigmoid(gates[:, 1 * H:2 * H])
        g = jnp.tanh(gates[:, 2 * H:3 * H])
        o = jax.nn.sigmoid(gates[:, 3 * H:4 * H])
        c_new = f * c_prev + i * g
        h_new = o * jnp.tanh(c_new)
        return h_new, c_new

    zeros = jnp.zeros((bt, H), jnp.float32)

    # ---- Prologue (t = 0, layer-0 only): h0_{-1} = 0, so gates are just xw0[0].
    h0, c0 = gate_act(xw0_ref[pl.ds(0, bt), :], zeros)
    h1, c1 = zeros, zeros

    # ---- Wavefronted recurrence: iteration t does layer-0 step t and layer-1
    #      step t-1 via two zero-free bf16 matmuls (no [0, whh1] block).
    def body(t, carry):
        h0, c0, h1, c1 = carry
        a = jnp.dot(h0.astype(jnp.bfloat16), wh0_ref[...],
                    preferred_element_type=jnp.float32)          # (bt, 8H)
        r = jnp.dot(h1.astype(jnp.bfloat16), wh1_ref[...],
                    preferred_element_type=jnp.float32)          # (bt, 4H)
        row = pl.multiple_of(t * bt, bt)
        gates0 = a[:, :H4] + xw0_ref[pl.ds(row, bt), :]          # layer-0, step t
        gates1 = a[:, H4:] + r + b1                              # layer-1, step t-1
        h1n, c1n = gate_act(gates1, c1)
        h0n, c0n = gate_act(gates0, c0)
        return (h0n, c0n, h1n, c1n)

    h0, c0, h1, c1 = lax.fori_loop(1, T, body, (h0, c0, h1, c1),
                                   unroll=min(8, max(T - 1, 1)))

    # ---- Epilogue: layer-1 at the final timestep T-1 (only the wih1 half of
    #      wh0 is needed; the slice is a static 128-lane-aligned ref view).
    a1 = jnp.dot(h0.astype(jnp.bfloat16), wh0_ref[:, H4:],
                 preferred_element_type=jnp.float32)             # (bt, 4H)
    r1 = jnp.dot(h1.astype(jnp.bfloat16), wh1_ref[...],
                 preferred_element_type=jnp.float32)             # (bt, 4H)
    h1, _ = gate_act(a1 + r1 + b1, c1)

    # ---- Final fc (H -> 1): VPU lane reduction instead of an N=1 MXU pass.
    validity = jnp.sum(h1 * fcw_ref[...], axis=-1, keepdims=True) + fcb_ref[...]
    out_ref[...] = validity.astype(out_ref.dtype)


def discriminator_forward(x, params, *, b_tile=None):
    """x: (B, T, D) float32, batch_first like the PyTorch module."""
    wih0, whh0, b0, wih1, whh1, b1, fcw, fcb = params
    B, T, D = x.shape
    H = whh0.shape[0]

    # Static layout contract: 128-lane gate slices and 8-aligned sublane rows.
    assert H == HIDDEN == 128, "kernel assumes hidden_dim == 128"
    bt = min(B, 128) if b_tile is None else b_tile
    assert bt % 8 == 0 and B % bt == 0, (
        "batch must be a multiple of 8 and divisible by the batch tile")
    nb = B // bt

    # (B, T, D) -> (nb*T*bt, D): contiguous per-B-tile slabs, each ordered
    # t*bt + b so every timestep's xw0 slice is a contiguous 8-aligned row block.
    x_r = jnp.transpose(x, (1, 0, 2)).reshape(T, nb, bt, D)
    x_r = jnp.transpose(x_r, (1, 0, 2, 3)).reshape(nb * T * bt, D)
    x_bf16 = x_r.astype(jnp.bfloat16)

    # bf16 MXU operands (native MXU input on v5e/v6e/v7x): halves the weight
    # bytes staged per recurrence step and halves their VMEM footprint.
    wih0_b = wih0.astype(jnp.bfloat16)                                  # (D, 4H)
    wh0 = jnp.concatenate([whh0, wih1], axis=1).astype(jnp.bfloat16)    # (H, 8H)
    wh1 = whh1.astype(jnp.bfloat16)                                     # (H, 4H)

    kernel = functools.partial(discriminator_kernel, bt=bt, seq=T)
    const = lambda i: (0, 0)  # weights: same block every grid step -> resident

    return pl.pallas_call(
        kernel,
        out_shape=jax.ShapeDtypeStruct((B, 1), jnp.float32),
        grid=(nb,),
        in_specs=[
            pl.BlockSpec((T * bt, D), lambda i: (i, 0)),   # x slab per B-tile
            pl.BlockSpec((D, 4 * H), const),               # wih0 (bf16)
            pl.BlockSpec((1, 4 * H), const),               # b0
            pl.BlockSpec((H, 8 * H), const),               # [whh0 | wih1] (bf16)
            pl.BlockSpec((H, 4 * H), const),               # whh1 (bf16)
            pl.BlockSpec((1, 4 * H), const),               # b1
            pl.BlockSpec((1, H), const),                   # fc.weight
            pl.BlockSpec((1, 1), const),                   # fc.bias
        ],
        out_specs=pl.BlockSpec((bt, 1), lambda i: (i, 0)),
        scratch_shapes=[pltpu.VMEM((T * bt, 4 * H), jnp.float32)],
        compiler_params=pltpu.CompilerParams(
            # Batch tiles are independent -> v7x's two TensorCores both run.
            dimension_semantics=("parallel",),
        ),
    )(x_bf16, wih0_b, b0, wh0, wh1, b1, fcw, fcb)


def discriminator_reference(x, params):
    """Plain-JAX reference matching PyTorch nn.LSTM(2 layers) + Linear."""
    wih0, whh0, b0, wih1, whh1, b1, fcw, fcb = params
    B, T, _ = x.shape
    H = whh0.shape[0]

    def cell(x_t, h, c, wih, whh, b):
        g = x_t @ wih + h @ whh + b
        i = jax.nn.sigmoid(g[:, 0 * H:1 * H])
        f = jax.nn.sigmoid(g[:, 1 * H:2 * H])
        gg = jnp.tanh(g[:, 2 * H:3 * H])
        o = jax.nn.sigmoid(g[:, 3 * H:4 * H])
        c = f * c + i * gg
        return o * jnp.tanh(c), c

    h0 = c0 = h1 = c1 = jnp.zeros((B, H), jnp.float32)
    for t in range(T):
        h0, c0 = cell(x[:, t, :], h0, c0, wih0, whh0, b0)
        h1, c1 = cell(h0, h1, c1, wih1, whh1, b1)
    return h1 @ fcw.T + fcb  # (B, 1)


def init_params(key, input_dim, hidden_dim):
    # PyTorch-style uniform(-1/sqrt(H), 1/sqrt(H)) init, deterministic from `key`.
    k = 1.0 / float(jnp.sqrt(hidden_dim))
    keys = jax.random.split(key, 10)

    def u(kk, shape):
        return jax.random.uniform(kk, shape, jnp.float32, -k, k)

    D, H = input_dim, hidden_dim
    wih0 = u(keys[0], (D, 4 * H))                           # weight_ih_l0^T
    whh0 = u(keys[1], (H, 4 * H))                           # weight_hh_l0^T
    b0 = u(keys[2], (1, 4 * H)) + u(keys[3], (1, 4 * H))    # bias_ih_l0 + bias_hh_l0
    wih1 = u(keys[4], (H, 4 * H))                           # weight_ih_l1^T
    whh1 = u(keys[5], (H, 4 * H))                           # weight_hh_l1^T
    b1 = u(keys[6], (1, 4 * H)) + u(keys[7], (1, 4 * H))    # bias_ih_l1 + bias_hh_l1
    fcw = u(keys[8], (1, H))                                # fc.weight
    fcb = u(keys[9], (1, 1))                                # fc.bias
    return (wih0, whh0, b0, wih1, whh1, b1, fcw, fcb)


if __name__ == "__main__":
    B, T, D, H = 8, 8, 16, HIDDEN   # batch=8, seq=8, input_dim=16, hidden=128
    root = jax.random.PRNGKey(0)
    k_params, k_x = jax.random.split(root)
    params = init_params(k_params, D, H)
    x = jax.random.normal(k_x, (B, T, D), jnp.float32)

    out = discriminator_forward(x, params)
    jax.block_until_ready(out)
    assert out.shape == (B, 1)

    ref = discriminator_reference(x, params)
    # Tolerance is deliberately loosened only because MXU operands are bf16;
    # observed drift vs the all-f32 reference is a few e-3.
    assert jnp.allclose(out, ref, rtol=2e-2, atol=2e-2), (out, ref)
    print("KERNEL_OK")
</pallas_src>

<mosaic_0001>
module attributes {stable_mosaic.version = 11 : i64} {
  func.func @discriminator_kernel(%arg0: i32, %arg1: memref<64x16xbf16, #tpu.memory_space<vmem>>, %arg2: memref<16x512xbf16, #tpu.memory_space<vmem>>, %arg3: memref<1x512xf32, #tpu.memory_space<vmem>>, %arg4: memref<128x1024xbf16, #tpu.memory_space<vmem>>, %arg5: memref<128x512xbf16, #tpu.memory_space<vmem>>, %arg6: memref<1x512xf32, #tpu.memory_space<vmem>>, %arg7: memref<1x128xf32, #tpu.memory_space<vmem>>, %arg8: memref<1x1xf32, #tpu.memory_space<vmem>>, %arg9: memref<8x1xf32, #tpu.memory_space<vmem>>, %arg10: memref<64x512xf32, #tpu.memory_space<vmem>>) attributes {dimension_semantics = [#tpu.dimension_semantics<parallel>], iteration_bounds = array<i64: 1>, scalar_prefetch = 0 : i64, scratch_operands = 1 : i64, tpu.core_type = #tpu.core_type<tc>, window_params = [{transform_indices = @transform_0, window_bounds = array<i64: 64, 16>}, {pipeline_mode = #tpu.pipeline_mode<synchronous>, transform_indices = @transform_1, window_bounds = array<i64: 16, 512>}, {pipeline_mode = #tpu.pipeline_mode<synchronous>, transform_indices = @transform_2, window_bounds = array<i64: 1, 512>}, {pipeline_mode = #tpu.pipeline_mode<synchronous>, transform_indices = @transform_3, window_bounds = array<i64: 128, 1024>}, {pipeline_mode = #tpu.pipeline_mode<synchronous>, transform_indices = @transform_4, window_bounds = array<i64: 128, 512>}, {pipeline_mode = #tpu.pipeline_mode<synchronous>, transform_indices = @transform_5, window_bounds = array<i64: 1, 512>}, {pipeline_mode = #tpu.pipeline_mode<synchronous>, transform_indices = @transform_6, window_bounds = array<i64: 1, 128>}, {pipeline_mode = #tpu.pipeline_mode<synchronous>, transform_indices = @transform_7, window_bounds = array<i64: 1, 1>}, {transform_indices = @transform_8, window_bounds = array<i64: 8, 1>}]} {
    %c0 = arith.constant 0 : index
    %c0_0 = arith.constant 0 : index
    %0 = vector.load %arg1[%c0, %c0_0] : memref<64x16xbf16, #tpu.memory_space<vmem>>, vector<64x16xbf16>
    %c0_1 = arith.constant 0 : index
    %c0_2 = arith.constant 0 : index
    %1 = vector.load %arg2[%c0_1, %c0_2] : memref<16x512xbf16, #tpu.memory_space<vmem>>, vector<16x512xbf16>
    %cst = arith.constant dense<0.000000e+00> : vector<64x512xf32>
    %2 = tpu.matmul %0, %1, %cst {dimension_numbers = #tpu.dot_dimension_numbers<[1], [0], [0], [1], [0, 0, 1, 1], [], []>} : vector<64x16xbf16>, vector<16x512xbf16>, vector<64x512xf32> -> vector<64x512xf32>
    %c0_3 = arith.constant 0 : index
    %c0_4 = arith.constant 0 : index
    %3 = vector.load %arg3[%c0_3, %c0_4] : memref<1x512xf32, #tpu.memory_space<vmem>>, vector<1x512xf32>
    %4 = vector.broadcast %3 : vector<1x512xf32> to vector<64x512xf32>
    %5 = arith.addf %2, %4 : vector<64x512xf32>
    %c0_5 = arith.constant 0 : index
    %c0_6 = arith.constant 0 : index
    %6 = vector.load %arg10[%c0_5, %c0_6] : memref<64x512xf32, #tpu.memory_space<vmem>>, vector<64x512xf32>
    tpu.vector_store %arg10[%c0_5, %c0_6], %5 {strides = array<i32>} : memref<64x512xf32, #tpu.memory_space<vmem>>, vector<64x512xf32>,
    %c0_7 = arith.constant 0 : index
    %c0_8 = arith.constant 0 : index
    %7 = vector.load %arg6[%c0_7, %c0_8] : memref<1x512xf32, #tpu.memory_space<vmem>>, vector<1x512xf32>
    %cst_9 = arith.constant 0.000000e+00 : f32
    %8 = vector.broadcast %cst_9 : f32 to vector<8x128xf32>
    %c0_10 = arith.constant 0 : index
    %c0_11 = arith.constant 0 : index
    %9 = vector.load %arg10[%c0_10, %c0_11] : memref<64x512xf32, #tpu.memory_space<vmem>>, vector<8x512xf32>
    %10 = vector.extract_strided_slice %9 {offsets = [0, 0], sizes = [8, 128], strides = [1, 1]} : vector<8x512xf32> to vector<8x128xf32>
    %11 = arith.negf %10 : vector<8x128xf32>
    %12 = math.exp %11 : vector<8x128xf32>
    %cst_12 = arith.constant 1.000000e+00 : f32
    %13 = vector.broadcast %cst_12 : f32 to vector<8x128xf32>
    %14 = arith.addf %13, %12 : vector<8x128xf32>
    %15 = arith.divf %13, %14 : vector<8x128xf32>
    %16 = vector.extract_strided_slice %9 {offsets = [0, 128], sizes = [8, 128], strides = [1, 1]} : vector<8x512xf32> to vector<8x128xf32>
    %17 = arith.negf %16 : vector<8x128xf32>
    %18 = math.exp %17 : vector<8x128xf32>
    %cst_13 = arith.constant 1.000000e+00 : f32
    %19 = vector.broadcast %cst_13 : f32 to vector<8x128xf32>
    %20 = arith.addf %19, %18 : vector<8x128xf32>
    %21 = arith.divf %19, %20 : vector<8x128xf32>
    %22 = vector.extract_strided_slice %9 {offsets = [0, 256], sizes = [8, 128], strides = [1, 1]} : vector<8x512xf32> to vector<8x128xf32>
    %23 = math.tanh %22 : vector<8x128xf32>
    %24 = vector.extract_strided_slice %9 {offsets = [0, 384], sizes = [8, 128], strides = [1, 1]} : vector<8x512xf32> to vector<8x128xf32>
    %25 = arith.negf %24 : vector<8x128xf32>
    %26 = math.exp %25 : vector<8x128xf32>
    %cst_14 = arith.constant 1.000000e+00 : f32
    %27 = vector.broadcast %cst_14 : f32 to vector<8x128xf32>
    %28 = arith.addf %27, %26 : vector<8x128xf32>
    %29 = arith.divf %27, %28 : vector<8x128xf32>
    %30 = arith.mulf %21, %8 : vector<8x128xf32>
    %31 = arith.mulf %15, %23 : vector<8x128xf32>
    %32 = arith.addf %30, %31 : vector<8x128xf32>
    %33 = math.tanh %32 : vector<8x128xf32>
    %34 = arith.mulf %29, %33 : vector<8x128xf32>
    %c1_i32 = arith.constant 1 : i32
    %35 = arith.truncf %34 : vector<8x128xf32> to vector<8x128xbf16>
    %c0_15 = arith.constant 0 : index
    %c0_16 = arith.constant 0 : index
    %36 = vector.load %arg4[%c0_15, %c0_16] : memref<128x1024xbf16, #tpu.memory_space<vmem>>, vector<128x1024xbf16>
    %cst_17 = arith.constant dense<0.000000e+00> : vector<8x1024xf32>
    %37 = tpu.matmul %35, %36, %cst_17 {dimension_numbers = #tpu.dot_dimension_numbers<[1], [0], [0], [1], [0, 0, 1, 1], [], []>} : vector<8x128xbf16>, vector<128x1024xbf16>, vector<8x1024xf32> -> vector<8x1024xf32>
    %38 = arith.truncf %8 : vector<8x128xf32> to vector<8x128xbf16>
    %c0_18 = arith.constant 0 : index
    %c0_19 = arith.constant 0 : index
    %39 = vector.load %arg5[%c0_18, %c0_19] : memref<128x512xbf16, #tpu.memory_space<vmem>>, vector<128x512xbf16>
    %cst_20 = arith.constant dense<0.000000e+00> : vector<8x512xf32>
    %40 = tpu.matmul %38, %39, %cst_20 {dimension_numbers = #tpu.dot_dimension_numbers<[1], [0], [0], [1], [0, 0, 1, 1], [], []>} : vector<8x128xbf16>, vector<128x512xbf16>, vector<8x512xf32> -> vector<8x512xf32>
    %c8_i32 = arith.constant 8 : i32
    %41 = arith.muli %c1_i32, %c8_i32 : i32
    %42 = tpu.assume_multiple %41, 8 : i32
    %43 = vector.extract_strided_slice %37 {offsets = [0, 0], sizes = [8, 512], strides = [1, 1]} : vector<8x1024xf32> to vector<8x512xf32>
    %44 = arith.index_cast %42 : i32 to index
    %c0_21 = arith.constant 0 : index
    %45 = vector.load %arg10[%44, %c0_21] : memref<64x512xf32, #tpu.memory_space<vmem>>, vector<8x512xf32>
    %46 = arith.addf %43, %45 : vector<8x512xf32>
    %47 = vector.extract_strided_slice %37 {offsets = [0, 512], sizes = [8, 512], strides = [1, 1]} : vector<8x1024xf32> to vector<8x512xf32>
    %48 = arith.addf %47, %40 : vector<8x512xf32>
    %49 = vector.broadcast %7 : vector<1x512xf32> to vector<8x512xf32>
    %50 = arith.addf %48, %49 : vector<8x512xf32>
    %51 = vector.extract_strided_slice %50 {offsets = [0, 0], sizes = [8, 128], strides = [1, 1]} : vector<8x512xf32> to vector<8x128xf32>
    %52 = arith.negf %51 : vector<8x128xf32>
    %53 = math.exp %52 : vector<8x128xf32>
    %cst_22 = arith.constant 1.000000e+00 : f32
    %54 = vector.broadcast %cst_22 : f32 to vector<8x128xf32>
    %55 = arith.addf %54, %53 : vector<8x128xf32>
    %56 = arith.divf %54, %55 : vector<8x128xf32>
    %57 = vector.extract_strided_slice %50 {offsets = [0, 128], sizes = [8, 128], strides = [1, 1]} : vector<8x512xf32> to vector<8x128xf32>
    %58 = arith.negf %57 : vector<8x128xf32>
    %59 = math.exp %58 : vector<8x128xf32>
    %cst_23 = arith.constant 1.000000e+00 : f32
    %60 = vector.broadcast %cst_23 : f32 to vector<8x128xf32>
    %61 = arith.addf %60, %59 : vector<8x128xf32>
    %62 = arith.divf %60, %61 : vector<8x128xf32>
    %63 = vector.extract_strided_slice %50 {offsets = [0, 256], sizes = [8, 128], strides = [1, 1]} : vector<8x512xf32> to vector<8x128xf32>
    %64 = math.tanh %63 : vector<8x128xf32>
    %65 = vector.extract_strided_slice %50 {offsets = [0, 384], sizes = [8, 128], strides = [1, 1]} : vector<8x512xf32> to vector<8x128xf32>
    %66 = arith.negf %65 : vector<8x128xf32>
    %67 = math.exp %66 : vector<8x128xf32>
    %cst_24 = arith.constant 1.000000e+00 : f32
    %68 = vector.broadcast %cst_24 : f32 to vector<8x128xf32>
    %69 = arith.addf %68, %67 : vector<8x128xf32>
    %70 = arith.divf %68, %69 : vector<8x128xf32>
    %71 = arith.mulf %62, %8 : vector<8x128xf32>
    %72 = arith.mulf %56, %64 : vector<8x128xf32>
    %73 = arith.addf %71, %72 : vector<8x128xf32>
    %74 = math.tanh %73 : vector<8x128xf32>
    %75 = arith.mulf %70, %74 : vector<8x128xf32>
    %76 = vector.extract_strided_slice %46 {offsets = [0, 0], sizes = [8, 128], strides = [1, 1]} : vector<8x512xf32> to vector<8x128xf32>
    %77 = arith.negf %76 : vector<8x128xf32>
    %78 = math.exp %77 : vector<8x128xf32>
    %cst_25 = arith.constant 1.000000e+00 : f32
    %79 = vector.broadcast %cst_25 : f32 to vector<8x128xf32>
    %80 = arith.addf %79, %78 : vector<8x128xf32>
    %81 = arith.divf %79, %80 : vector<8x128xf32>
    %82 = vector.extract_strided_slice %46 {offsets = [0, 128], sizes = [8, 128], strides = [1, 1]} : vector<8x512xf32> to vector<8x128xf32>
    %83 = arith.negf %82 : vector<8x128xf32>
    %84 = math.exp %83 : vector<8x128xf32>
    %cst_26 = arith.constant 1.000000e+00 : f32
    %85 = vector.broadcast %cst_26 : f32 to vector<8x128xf32>
    %86 = arith.addf %85, %84 : vector<8x128xf32>
    %87 = arith.divf %85, %86 : vector<8x128xf32>
    %88 = vector.extract_strided_slice %46 {offsets = [0, 256], sizes = [8, 128], strides = [1, 1]} : vector<8x512xf32> to vector<8x128xf32>
    %89 = math.tanh %88 : vector<8x128xf32>
    %90 = vector.extract_strided_slice %46 {offsets = [0, 384], sizes = [8, 128], strides = [1, 1]} : vector<8x512xf32> to vector<8x128xf32>
    %91 = arith.negf %90 : vector<8x128xf32>
    %92 = math.exp %91 : vector<8x128xf32>
    %cst_27 = arith.constant 1.000000e+00 : f32
    %93 = vector.broadcast %cst_27 : f32 to vector<8x128xf32>
    %94 = arith.addf %93, %92 : vector<8x128xf32>
    %95 = arith.divf %93, %94 : vector<8x128xf32>
    %96 = arith.mulf %87, %32 : vector<8x128xf32>
    %97 = arith.mulf %81, %89 : vector<8x128xf32>
    %98 = arith.addf %96, %97 : vector<8x128xf32>
    %99 = math.tanh %98 : vector<8x128xf32>
    %100 = arith.mulf %95, %99 : vector<8x128xf32>
    %c2_i32 = arith.constant 2 : i32
    %101 = arith.truncf %100 : vector<8x128xf32> to vector<8x128xbf16>
    %c0_28 = arith.constant 0 : index
    %c0_29 = arith.constant 0 : index
    %102 = vector.load %arg4[%c0_28, %c0_29] : memref<128x1024xbf16, #tpu.memory_space<vmem>>, vector<128x1024xbf16>
    %cst_30 = arith.constant dense<0.000000e+00> : vector<8x1024xf32>
    %103 = tpu.matmul %101, %102, %cst_30 {dimension_numbers = #tpu.dot_dimension_numbers<[1], [0], [0], [1], [0, 0, 1, 1], [], []>} : vector<8x128xbf16>, vector<128x1024xbf16>, vector<8x1024xf32> -> vector<8x1024xf32>
    %104 = arith.truncf %75 : vector<8x128xf32> to vector<8x128xbf16>
    %c0_31 = arith.constant 0 : index
    %c0_32 = arith.constant 0 : index
    %105 = vector.load %arg5[%c0_31, %c0_32] : memref<128x512xbf16, #tpu.memory_space<vmem>>, vector<128x512xbf16>
    %cst_33 = arith.constant dense<0.000000e+00> : vector<8x512xf32>
    %106 = tpu.matmul %104, %105, %cst_33 {dimension_numbers = #tpu.dot_dimension_numbers<[1], [0], [0], [1], [0, 0, 1, 1], [], []>} : vector<8x128xbf16>, vector<128x512xbf16>, vector<8x512xf32> -> vector<8x512xf32>
    %c8_i32_34 = arith.constant 8 : i32
    %107 = arith.muli %c2_i32, %c8_i32_34 : i32
    %108 = tpu.assume_multiple %107, 8 : i32
    %109 = vector.extract_strided_slice %103 {offsets = [0, 0], sizes = [8, 512], strides = [1, 1]} : vector<8x1024xf32> to vector<8x512xf32>
    %110 = arith.index_cast %108 : i32 to index
    %c0_35 = arith.constant 0 : index
    %111 = vector.load %arg10[%110, %c0_35] : memref<64x512xf32, #tpu.memory_space<vmem>>, vector<8x512xf32>
    %112 = arith.addf %109, %111 : vector<8x512xf32>
    %113 = vector.extract_strided_slice %103 {offsets = [0, 512], sizes = [8, 512], strides = [1, 1]} : vector<8x1024xf32> to vector<8x512xf32>
    %114 = arith.addf %113, %106 : vector<8x512xf32>
    %115 = vector.broadcast %7 : vector<1x512xf32> to vector<8x512xf32>
    %116 = arith.addf %114, %115 : vector<8x512xf32>
    %117 = vector.extract_strided_slice %116 {offsets = [0, 0], sizes = [8, 128], strides = [1, 1]} : vector<8x512xf32> to vector<8x128xf32>
    %118 = arith.negf %117 : vector<8x128xf32>
    %119 = math.exp %118 : vector<8x128xf32>
    %cst_36 = arith.constant 1.000000e+00 : f32
    %120 = vector.broadcast %cst_36 : f32 to vector<8x128xf32>
    %121 = arith.addf %120, %119 : vector<8x128xf32>
    %122 = arith.divf %120, %121 : vector<8x128xf32>
    %123 = vector.extract_strided_slice %116 {offsets = [0, 128], sizes = [8, 128], strides = [1, 1]} : vector<8x512xf32> to vector<8x128xf32>
    %124 = arith.negf %123 : vector<8x128xf32>
    %125 = math.exp %124 : vector<8x128xf32>
    %cst_37 = arith.constant 1.000000e+00 : f32
    %126 = vector.broadcast %cst_37 : f32 to vector<8x128xf32>
    %127 = arith.addf %126, %125 : vector<8x128xf32>
    %128 = arith.divf %126, %127 : vector<8x128xf32>
    %129 = vector.extract_strided_slice %116 {offsets = [0, 256], sizes = [8, 128], strides = [1, 1]} : vector<8x512xf32> to vector<8x128xf32>
    %130 = math.tanh %129 : vector<8x128xf32>
    %131 = vector.extract_strided_slice %116 {offsets = [0, 384], sizes = [8, 128], strides = [1, 1]} : vector<8x512xf32> to vector<8x128xf32>
    %132 = arith.negf %131 : vector<8x128xf32>
    %133 = math.exp %132 : vector<8x128xf32>
    %cst_38 = arith.constant 1.000000e+00 : f32
    %134 = vector.broadcast %cst_38 : f32 to vector<8x128xf32>
    %135 = arith.addf %134, %133 : vector<8x128xf32>
    %136 = arith.divf %134, %135 : vector<8x128xf32>
    %137 = arith.mulf %128, %73 : vector<8x128xf32>
    %138 = arith.mulf %122, %130 : vector<8x128xf32>
    %139 = arith.addf %137, %138 : vector<8x128xf32>
    %140 = math.tanh %139 : vector<8x128xf32>
    %141 = arith.mulf %136, %140 : vector<8x128xf32>
    %142 = vector.extract_strided_slice %112 {offsets = [0, 0], sizes = [8, 128], strides = [1, 1]} : vector<8x512xf32> to vector<8x128xf32>
    %143 = arith.negf %142 : vector<8x128xf32>
    %144 = math.exp %143 : vector<8x128xf32>
    %cst_39 = arith.constant 1.000000e+00 : f32
    %145 = vector.broadcast %cst_39 : f32 to vector<8x128xf32>
    %146 = arith.addf %145, %144 : vector<8x128xf32>
    %147 = arith.divf %145, %146 : vector<8x128xf32>
    %148 = vector.extract_strided_slice %112 {offsets = [0, 128], sizes = [8, 128], strides = [1, 1]} : vector<8x512xf32> to vector<8x128xf32>
    %149 = arith.negf %148 : vector<8x128xf32>
    %150 = math.exp %149 : vector<8x128xf32>
    %cst_40 = arith.constant 1.000000e+00 : f32
    %151 = vector.broadcast %cst_40 : f32 to vector<8x128xf32>
    %152 = arith.addf %151, %150 : vector<8x128xf32>
    %153 = arith.divf %151, %152 : vector<8x128xf32>
    %154 = vector.extract_strided_slice %112 {offsets = [0, 256], sizes = [8, 128], strides = [1, 1]} : vector<8x512xf32> to vector<8x128xf32>
    %155 = math.tanh %154 : vector<8x128xf32>
    %156 = vector.extract_strided_slice %112 {offsets = [0, 384], sizes = [8, 128], strides = [1, 1]} : vector<8x512xf32> to vector<8x128xf32>
    %157 = arith.negf %156 : vector<8x128xf32>
    %158 = math.exp %157 : vector<8x128xf32>
    %cst_41 = arith.constant 1.000000e+00 : f32
    %159 = vector.broadcast %cst_41 : f32 to vector<8x128xf32>
    %160 = arith.addf %159, %158 : vector<8x128xf32>
    %161 = arith.divf %159, %160 : vector<8x128xf32>
    %162 = arith.mulf %153, %98 : vector<8x128xf32>
    %163 = arith.mulf %147, %155 : vector<8x128xf32>
    %164 = arith.addf %162, %163 : vector<8x128xf32>
    %165 = math.tanh %164 : vector<8x128xf32>
    %166 = arith.mulf %161, %165 : vector<8x128xf32>
    %c3_i32 = arith.constant 3 : i32
    %167 = arith.truncf %166 : vector<8x128xf32> to vector<8x128xbf16>
    %c0_42 = arith.constant 0 : index
    %c0_43 = arith.constant 0 : index
    %168 = vector.load %arg4[%c0_42, %c0_43] : memref<128x1024xbf16, #tpu.memory_space<vmem>>, vector<128x1024xbf16>
    %cst_44 = arith.constant dense<0.000000e+00> : vector<8x1024xf32>
    %169 = tpu.matmul %167, %168, %cst_44 {dimension_numbers = #tpu.dot_dimension_numbers<[1], [0], [0], [1], [0, 0, 1, 1], [], []>} : vector<8x128xbf16>, vector<128x1024xbf16>, vector<8x1024xf32> -> vector<8x1024xf32>
    %170 = arith.truncf %141 : vector<8x128xf32> to vector<8x128xbf16>
    %c0_45 = arith.constant 0 : index
    %c0_46 = arith.constant 0 : index
    %171 = vector.load %arg5[%c0_45, %c0_46] : memref<128x512xbf16, #tpu.memory_space<vmem>>, vector<128x512xbf16>
    %cst_47 = arith.constant dense<0.000000e+00> : vector<8x512xf32>
    %172 = tpu.matmul %170, %171, %cst_47 {dimension_numbers = #tpu.dot_dimension_numbers<[1], [0], [0], [1], [0, 0, 1, 1], [], []>} : vector<8x128xbf16>, vector<128x512xbf16>, vector<8x512xf32> -> vector<8x512xf32>
    %c8_i32_48 = arith.constant 8 : i32
    %173 = arith.muli %c3_i32, %c8_i32_48 : i32
    %174 = tpu.assume_multiple %173, 8 : i32
    %175 = vector.extract_strided_slice %169 {offsets = [0, 0], sizes = [8, 512], strides = [1, 1]} : vector<8x1024xf32> to vector<8x512xf32>
    %176 = arith.index_cast %174 : i32 to index
    %c0_49 = arith.constant 0 : index
    %177 = vector.load %arg10[%176, %c0_49] : memref<64x512xf32, #tpu.memory_space<vmem>>, vector<8x512xf32>
    %178 = arith.addf %175, %177 : vector<8x512xf32>
    %179 = vector.extract_strided_slice %169 {offsets = [0, 512], sizes = [8, 512], strides = [1, 1]} : vector<8x1024xf32> to vector<8x512xf32>
    %180 = arith.addf %179, %172 : vector<8x512xf32>
    %181 = vector.broadcast %7 : vector<1x512xf32> to vector<8x512xf32>
    %182 = arith.addf %180, %181 : vector<8x512xf32>
    %183 = vector.extract_strided_slice %182 {offsets = [0, 0], sizes = [8, 128], strides = [1, 1]} : vector<8x512xf32> to vector<8x128xf32>
    %184 = arith.negf %183 : vector<8x128xf32>
    %185 = math.exp %184 : vector<8x128xf32>
    %cst_50 = arith.constant 1.000000e+00 : f32
    %186 = vector.broadcast %cst_50 : f32 to vector<8x128xf32>
    %187 = arith.addf %186, %185 : vector<8x128xf32>
    %188 = arith.divf %186, %187 : vector<8x128xf32>
    %189 = vector.extract_strided_slice %182 {offsets = [0, 128], sizes = [8, 128], strides = [1, 1]} : vector<8x512xf32> to vector<8x128xf32>
    %190 = arith.negf %189 : vector<8x128xf32>
    %191 = math.exp %190 : vector<8x128xf32>
    %cst_51 = arith.constant 1.000000e+00 : f32
    %192 = vector.broadcast %cst_51 : f32 to vector<8x128xf32>
    %193 = arith.addf %192, %191 : vector<8x128xf32>
    %194 = arith.divf %192, %193 : vector<8x128xf32>
    %195 = vector.extract_strided_slice %182 {offsets = [0, 256], sizes = [8, 128], strides = [1, 1]} : vector<8x512xf32> to vector<8x128xf32>
    %196 = math.tanh %195 : vector<8x128xf32>
    %197 = vector.extract_strided_slice %182 {offsets = [0, 384], sizes = [8, 128], strides = [1, 1]} : vector<8x512xf32> to vector<8x128xf32>
    %198 = arith.negf %197 : vector<8x128xf32>
    %199 = math.exp %198 : vector<8x128xf32>
    %cst_52 = arith.constant 1.000000e+00 : f32
    %200 = vector.broadcast %cst_52 : f32 to vector<8x128xf32>
    %201 = arith.addf %200, %199 : vector<8x128xf32>
    %202 = arith.divf %200, %201 : vector<8x128xf32>
    %203 = arith.mulf %194, %139 : vector<8x128xf32>
    %204 = arith.mulf %188, %196 : vector<8x128xf32>
    %205 = arith.addf %203, %204 : vector<8x128xf32>
    %206 = math.tanh %205 : vector<8x128xf32>
    %207 = arith.mulf %202, %206 : vector<8x128xf32>
    %208 = vector.extract_strided_slice %178 {offsets = [0, 0], sizes = [8, 128], strides = [1, 1]} : vector<8x512xf32> to vector<8x128xf32>
    %209 = arith.negf %208 : vector<8x128xf32>
    %210 = math.exp %209 : vector<8x128xf32>
    %cst_53 = arith.constant 1.000000e+00 : f32
    %211 = vector.broadcast %cst_53 : f32 to vector<8x128xf32>
    %212 = arith.addf %211, %210 : vector<8x128xf32>
    %213 = arith.divf %211, %212 : vector<8x128xf32>
    %214 = vector.extract_strided_slice %178 {offsets = [0, 128], sizes = [8, 128], strides = [1, 1]} : vector<8x512xf32> to vector<8x128xf32>
    %215 = arith.negf %214 : vector<8x128xf32>
    %216 = math.exp %215 : vector<8x128xf32>
    %cst_54 = arith.constant 1.000000e+00 : f32
    %217 = vector.broadcast %cst_54 : f32 to vector<8x128xf32>
    %218 = arith.addf %217, %216 : vector<8x128xf32>
    %219 = arith.divf %217, %218 : vector<8x128xf32>
    %220 = vector.extract_strided_slice %178 {offsets = [0, 256], sizes = [8, 128], strides = [1, 1]} : vector<8x512xf32> to vector<8x128xf32>
    %221 = math.tanh %220 : vector<8x128xf32>
    %222 = vector.extract_strided_slice %178 {offsets = [0, 384], sizes = [8, 128], strides = [1, 1]} : vector<8x512xf32> to vector<8x128xf32>
    %223 = arith.negf %222 : vector<8x128xf32>
    %224 = math.exp %223 : vector<8x128xf32>
    %cst_55 = arith.constant 1.000000e+00 : f32
    %225 = vector.broadcast %cst_55 : f32 to vector<8x128xf32>
    %226 = arith.addf %225, %224 : vector<8x128xf32>
    %227 = arith.divf %225, %226 : vector<8x128xf32>
    %228 = arith.mulf %219, %164 : vector<8x128xf32>
    %229 = arith.mulf %213, %221 : vector<8x128xf32>
    %230 = arith.addf %228, %229 : vector<8x128xf32>
    %231 = math.tanh %230 : vector<8x128xf32>
    %232 = arith.mulf %227, %231 : vector<8x128xf32>
    %c4_i32 = arith.constant 4 : i32
    %233 = arith.truncf %232 : vector<8x128xf32> to vector<8x128xbf16>
    %c0_56 = arith.constant 0 : index
    %c0_57 = arith.constant 0 : index
    %234 = vector.load %arg4[%c0_56, %c0_57] : memref<128x1024xbf16, #tpu.memory_space<vmem>>, vector<128x1024xbf16>
    %cst_58 = arith.constant dense<0.000000e+00> : vector<8x1024xf32>
    %235 = tpu.matmul %233, %234, %cst_58 {dimension_numbers = #tpu.dot_dimension_numbers<[1], [0], [0], [1], [0, 0, 1, 1], [], []>} : vector<8x128xbf16>, vector<128x1024xbf16>, vector<8x1024xf32> -> vector<8x1024xf32>
    %236 = arith.truncf %207 : vector<8x128xf32> to vector<8x128xbf16>
    %c0_59 = arith.constant 0 : index
    %c0_60 = arith.constant 0 : index
    %237 = vector.load %arg5[%c0_59, %c0_60] : memref<128x512xbf16, #tpu.memory_space<vmem>>, vector<128x512xbf16>
    %cst_61 = arith.constant dense<0.000000e+00> : vector<8x512xf32>
    %238 = tpu.matmul %236, %237, %cst_61 {dimension_numbers = #tpu.dot_dimension_numbers<[1], [0], [0], [1], [0, 0, 1, 1], [], []>} : vector<8x128xbf16>, vector<128x512xbf16>, vector<8x512xf32> -> vector<8x512xf32>
    %c8_i32_62 = arith.constant 8 : i32
    %239 = arith.muli %c4_i32, %c8_i32_62 : i32
    %240 = tpu.assume_multiple %239, 8 : i32
    %241 = vector.extract_strided_slice %235 {offsets = [0, 0], sizes = [8, 512], strides = [1, 1]} : vector<8x1024xf32> to vector<8x512xf32>
    %242 = arith.index_cast %240 : i32 to index
    %c0_63 = arith.constant 0 : index
    %243 = vector.load %arg10[%242, %c0_63] : memref<64x512xf32, #tpu.memory_space<vmem>>, vector<8x512xf32>
    %244 = arith.addf %241, %243 : vector<8x512xf32>
    %245 = vector.extract_strided_slice %235 {offsets = [0, 512], sizes = [8, 512], strides = [1, 1]} : vector<8x1024xf32> to vector<8x512xf32>
    %246 = arith.addf %245, %238 : vector<8x512xf32>
    %247 = vector.broadcast %7 : vector<1x512xf32> to vector<8x512xf32>
    %248 = arith.addf %246, %247 : vector<8x512xf32>
    %249 = vector.extract_strided_slice %248 {offsets = [0, 0], sizes = [8, 128], strides = [1, 1]} : vector<8x512xf32> to vector<8x128xf32>
    %250 = arith.negf %249 : vector<8x128xf32>
    %251 = math.exp %250 : vector<8x128xf32>
    %cst_64 = arith.constant 1.000000e+00 : f32
    %252 = vector.broadcast %cst_64 : f32 to vector<8x128xf32>
    %253 = arith.addf %252, %251 : vector<8x128xf32>
    %254 = arith.divf %252, %253 : vector<8x128xf32>
    %255 = vector.extract_strided_slice %248 {offsets = [0, 128], sizes = [8, 128], strides = [1, 1]} : vector<8x512xf32> to vector<8x128xf32>
    %256 = arith.negf %255 : vector<8x128xf32>
    %257 = math.exp %256 : vector<8x128xf32>
    %cst_65 = arith.constant 1.000000e+00 : f32
    %258 = vector.broadcast %cst_65 : f32 to vector<8x128xf32>
    %259 = arith.addf %258, %257 : vector<8x128xf32>
    %260 = arith.divf %258, %259 : vector<8x128xf32>
    %261 = vector.extract_strided_slice %248 {offsets = [0, 256], sizes = [8, 128], strides = [1, 1]} : vector<8x512xf32> to vector<8x128xf32>
    %262 = math.tanh %261 : vector<8x128xf32>
    %263 = vector.extract_strided_slice %248 {offsets = [0, 384], sizes = [8, 128], strides = [1, 1]} : vector<8x512xf32> to vector<8x128xf32>
    %264 = arith.negf %263 : vector<8x128xf32>
    %265 = math.exp %264 : vector<8x128xf32>
    %cst_66 = arith.constant 1.000000e+00 : f32
    %266 = vector.broadcast %cst_66 : f32 to vector<8x128xf32>
    %267 = arith.addf %266, %265 : vector<8x128xf32>
    %268 = arith.divf %266, %267 : vector<8x128xf32>
    %269 = arith.mulf %260, %205 : vector<8x128xf32>
    %270 = arith.mulf %254, %262 : vector<8x128xf32>
    %271 = arith.addf %269, %270 : vector<8x128xf32>
    %272 = math.tanh %271 : vector<8x128xf32>
    %273 = arith.mulf %268, %272 : vector<8x128xf32>
    %274 = vector.extract_strided_slice %244 {offsets = [0, 0], sizes = [8, 128], strides = [1, 1]} : vector<8x512xf32> to vector<8x128xf32>
    %275 = arith.negf %274 : vector<8x128xf32>
    %276 = math.exp %275 : vector<8x128xf32>
    %cst_67 = arith.constant 1.000000e+00 : f32
    %277 = vector.broadcast %cst_67 : f32 to vector<8x128xf32>
    %278 = arith.addf %277, %276 : vector<8x128xf32>
    %279 = arith.divf %277, %278 : vector<8x128xf32>
    %280 = vector.extract_strided_slice %244 {offsets = [0, 128], sizes = [8, 128], strides = [1, 1]} : vector<8x512xf32> to vector<8x128xf32>
    %281 = arith.negf %280 : vector<8x128xf32>
    %282 = math.exp %281 : vector<8x128xf32>
    %cst_68 = arith.constant 1.000000e+00 : f32
    %283 = vector.broadcast %cst_68 : f32 to vector<8x128xf32>
    %284 = arith.addf %283, %282 : vector<8x128xf32>
    %285 = arith.divf %283, %284 : vector<8x128xf32>
    %286 = vector.extract_strided_slice %244 {offsets = [0, 256], sizes = [8, 128], strides = [1, 1]} : vector<8x512xf32> to vector<8x128xf32>
    %287 = math.tanh %286 : vector<8x128xf32>
    %288 = vector.extract_strided_slice %244 {offsets = [0, 384], sizes = [8, 128], strides = [1, 1]} : vector<8x512xf32> to vector<8x128xf32>
    %289 = arith.negf %288 : vector<8x128xf32>
    %290 = math.exp %289 : vector<8x128xf32>
    %cst_69 = arith.constant 1.000000e+00 : f32
    %291 = vector.broadcast %cst_69 : f32 to vector<8x128xf32>
    %292 = arith.addf %291, %290 : vector<8x128xf32>
    %293 = arith.divf %291, %292 : vector<8x128xf32>
    %294 = arith.mulf %285, %230 : vector<8x128xf32>
    %295 = arith.mulf %279, %287 : vector<8x128xf32>
    %296 = arith.addf %294, %295 : vector<8x128xf32>
    %297 = math.tanh %296 : vector<8x128xf32>
    %298 = arith.mulf %293, %297 : vector<8x128xf32>
    %c5_i32 = arith.constant 5 : i32
    %299 = arith.truncf %298 : vector<8x128xf32> to vector<8x128xbf16>
    %c0_70 = arith.constant 0 : index
    %c0_71 = arith.constant 0 : index
    %300 = vector.load %arg4[%c0_70, %c0_71] : memref<128x1024xbf16, #tpu.memory_space<vmem>>, vector<128x1024xbf16>
    %cst_72 = arith.constant dense<0.000000e+00> : vector<8x1024xf32>
    %301 = tpu.matmul %299, %300, %cst_72 {dimension_numbers = #tpu.dot_dimension_numbers<[1], [0], [0], [1], [0, 0, 1, 1], [], []>} : vector<8x128xbf16>, vector<128x1024xbf16>, vector<8x1024xf32> -> vector<8x1024xf32>
    %302 = arith.truncf %273 : vector<8x128xf32> to vector<8x128xbf16>
    %c0_73 = arith.constant 0 : index
    %c0_74 = arith.constant 0 : index
    %303 = vector.load %arg5[%c0_73, %c0_74] : memref<128x512xbf16, #tpu.memory_space<vmem>>, vector<128x512xbf16>
    %cst_75 = arith.constant dense<0.000000e+00> : vector<8x512xf32>
    %304 = tpu.matmul %302, %303, %cst_75 {dimension_numbers = #tpu.dot_dimension_numbers<[1], [0], [0], [1], [0, 0, 1, 1], [], []>} : vector<8x128xbf16>, vector<128x512xbf16>, vector<8x512xf32> -> vector<8x512xf32>
    %c8_i32_76 = arith.constant 8 : i32
    %305 = arith.muli %c5_i32, %c8_i32_76 : i32
    %306 = tpu.assume_multiple %305, 8 : i32
    %307 = vector.extract_strided_slice %301 {offsets = [0, 0], sizes = [8, 512], strides = [1, 1]} : vector<8x1024xf32> to vector<8x512xf32>
    %308 = arith.index_cast %306 : i32 to index
    %c0_77 = arith.constant 0 : index
    %309 = vector.load %arg10[%308, %c0_77] : memref<64x512xf32, #tpu.memory_space<vmem>>, vector<8x512xf32>
    %310 = arith.addf %307, %309 : vector<8x512xf32>
    %311 = vector.extract_strided_slice %301 {offsets = [0, 512], sizes = [8, 512], strides = [1, 1]} : vector<8x1024xf32> to vector<8x512xf32>
    %312 = arith.addf %311, %304 : vector<8x512xf32>
    %313 = vector.broadcast %7 : vector<1x512xf32> to vector<8x512xf32>
    %314 = arith.addf %312, %313 : vector<8x512xf32>
    %315 = vector.extract_strided_slice %314 {offsets = [0, 0], sizes = [8, 128], strides = [1, 1]} : vector<8x512xf32> to vector<8x128xf32>
    %316 = arith.negf %315 : vector<8x128xf32>
    %317 = math.exp %316 : vector<8x128xf32>
    %cst_78 = arith.constant 1.000000e+00 : f32
    %318 = vector.broadcast %cst_78 : f32 to vector<8x128xf32>
    %319 = arith.addf %318, %317 : vector<8x128xf32>
    %320 = arith.divf %318, %319 : vector<8x128xf32>
    %321 = vector.extract_strided_slice %314 {offsets = [0, 128], sizes = [8, 128], strides = [1, 1]} : vector<8x512xf32> to vector<8x128xf32>
    %322 = arith.negf %321 : vector<8x128xf32>
    %323 = math.exp %322 : vector<8x128xf32>
    %cst_79 = arith.constant 1.000000e+00 : f32
    %324 = vector.broadcast %cst_79 : f32 to vector<8x128xf32>
    %325 = arith.addf %324, %323 : vector<8x128xf32>
    %326 = arith.divf %324, %325 : vector<8x128xf32>
    %327 = vector.extract_strided_slice %314 {offsets = [0, 256], sizes = [8, 128], strides = [1, 1]} : vector<8x512xf32> to vector<8x128xf32>
    %328 = math.tanh %327 : vector<8x128xf32>
    %329 = vector.extract_strided_slice %314 {offsets = [0, 384], sizes = [8, 128], strides = [1, 1]} : vector<8x512xf32> to vector<8x128xf32>
    %330 = arith.negf %329 : vector<8x128xf32>
    %331 = math.exp %330 : vector<8x128xf32>
    %cst_80 = arith.constant 1.000000e+00 : f32
    %332 = vector.broadcast %cst_80 : f32 to vector<8x128xf32>
    %333 = arith.addf %332, %331 : vector<8x128xf32>
    %334 = arith.divf %332, %333 : vector<8x128xf32>
    %335 = arith.mulf %326, %271 : vector<8x128xf32>
    %336 = arith.mulf %320, %328 : vector<8x128xf32>
    %337 = arith.addf %335, %336 : vector<8x128xf32>
    %338 = math.tanh %337 : vector<8x128xf32>
    %339 = arith.mulf %334, %338 : vector<8x128xf32>
    %340 = vector.extract_strided_slice %310 {offsets = [0, 0], sizes = [8, 128], strides = [1, 1]} : vector<8x512xf32> to vector<8x128xf32>
    %341 = arith.negf %340 : vector<8x128xf32>
    %342 = math.exp %341 : vector<8x128xf32>
    %cst_81 = arith.constant 1.000000e+00 : f32
    %343 = vector.broadcast %cst_81 : f32 to vector<8x128xf32>
    %344 = arith.addf %343, %342 : vector<8x128xf32>
    %345 = arith.divf %343, %344 : vector<8x128xf32>
    %346 = vector.extract_strided_slice %310 {offsets = [0, 128], sizes = [8, 128], strides = [1, 1]} : vector<8x512xf32> to vector<8x128xf32>
    %347 = arith.negf %346 : vector<8x128xf32>
    %348 = math.exp %347 : vector<8x128xf32>
    %cst_82 = arith.constant 1.000000e+00 : f32
    %349 = vector.broadcast %cst_82 : f32 to vector<8x128xf32>
    %350 = arith.addf %349, %348 : vector<8x128xf32>
    %351 = arith.divf %349, %350 : vector<8x128xf32>
    %352 = vector.extract_strided_slice %310 {offsets = [0, 256], sizes = [8, 128], strides = [1, 1]} : vector<8x512xf32> to vector<8x128xf32>
    %353 = math.tanh %352 : vector<8x128xf32>
    %354 = vector.extract_strided_slice %310 {offsets = [0, 384], sizes = [8, 128], strides = [1, 1]} : vector<8x512xf32> to vector<8x128xf32>
    %355 = arith.negf %354 : vector<8x128xf32>
    %356 = math.exp %355 : vector<8x128xf32>
    %cst_83 = arith.constant 1.000000e+00 : f32
    %357 = vector.broadcast %cst_83 : f32 to vector<8x128xf32>
    %358 = arith.addf %357, %356 : vector<8x128xf32>
    %359 = arith.divf %357, %358 : vector<8x128xf32>
    %360 = arith.mulf %351, %296 : vector<8x128xf32>
    %361 = arith.mulf %345, %353 : vector<8x128xf32>
    %362 = arith.addf %360, %361 : vector<8x128xf32>
    %363 = math.tanh %362 : vector<8x128xf32>
    %364 = arith.mulf %359, %363 : vector<8x128xf32>
    %c6_i32 = arith.constant 6 : i32
    %365 = arith.truncf %364 : vector<8x128xf32> to vector<8x128xbf16>
    %c0_84 = arith.constant 0 : index
    %c0_85 = arith.constant 0 : index
    %366 = vector.load %arg4[%c0_84, %c0_85] : memref<128x1024xbf16, #tpu.memory_space<vmem>>, vector<128x1024xbf16>
    %cst_86 = arith.constant dense<0.000000e+00> : vector<8x1024xf32>
    %367 = tpu.matmul %365, %366, %cst_86 {dimension_numbers = #tpu.dot_dimension_numbers<[1], [0], [0], [1], [0, 0, 1, 1], [], []>} : vector<8x128xbf16>, vector<128x1024xbf16>, vector<8x1024xf32> -> vector<8x1024xf32>
    %368 = arith.truncf %339 : vector<8x128xf32> to vector<8x128xbf16>
    %c0_87 = arith.constant 0 : index
    %c0_88 = arith.constant 0 : index
    %369 = vector.load %arg5[%c0_87, %c0_88] : memref<128x512xbf16, #tpu.memory_space<vmem>>, vector<128x512xbf16>
    %cst_89 = arith.constant dense<0.000000e+00> : vector<8x512xf32>
    %370 = tpu.matmul %368, %369, %cst_89 {dimension_numbers = #tpu.dot_dimension_numbers<[1], [0], [0], [1], [0, 0, 1, 1], [], []>} : vector<8x128xbf16>, vector<128x512xbf16>, vector<8x512xf32> -> vector<8x512xf32>
    %c8_i32_90 = arith.constant 8 : i32
    %371 = arith.muli %c6_i32, %c8_i32_90 : i32
    %372 = tpu.assume_multiple %371, 8 : i32
    %373 = vector.extract_strided_slice %367 {offsets = [0, 0], sizes = [8, 512], strides = [1, 1]} : vector<8x1024xf32> to vector<8x512xf32>
    %374 = arith.index_cast %372 : i32 to index
    %c0_91 = arith.constant 0 : index
    %375 = vector.load %arg10[%374, %c0_91] : memref<64x512xf32, #tpu.memory_space<vmem>>, vector<8x512xf32>
    %376 = arith.addf %373, %375 : vector<8x512xf32>
    %377 = vector.extract_strided_slice %367 {offsets = [0, 512], sizes = [8, 512], strides = [1, 1]} : vector<8x1024xf32> to vector<8x512xf32>
    %378 = arith.addf %377, %370 : vector<8x512xf32>
    %379 = vector.broadcast %7 : vector<1x512xf32> to vector<8x512xf32>
    %380 = arith.addf %378, %379 : vector<8x512xf32>
    %381 = vector.extract_strided_slice %380 {offsets = [0, 0], sizes = [8, 128], strides = [1, 1]} : vector<8x512xf32> to vector<8x128xf32>
    %382 = arith.negf %381 : vector<8x128xf32>
    %383 = math.exp %382 : vector<8x128xf32>
    %cst_92 = arith.constant 1.000000e+00 : f32
    %384 = vector.broadcast %cst_92 : f32 to vector<8x128xf32>
    %385 = arith.addf %384, %383 : vector<8x128xf32>
    %386 = arith.divf %384, %385 : vector<8x128xf32>
    %387 = vector.extract_strided_slice %380 {offsets = [0, 128], sizes = [8, 128], strides = [1, 1]} : vector<8x512xf32> to vector<8x128xf32>
    %388 = arith.negf %387 : vector<8x128xf32>
    %389 = math.exp %388 : vector<8x128xf32>
    %cst_93 = arith.constant 1.000000e+00 : f32
    %390 = vector.broadcast %cst_93 : f32 to vector<8x128xf32>
    %391 = arith.addf %390, %389 : vector<8x128xf32>
    %392 = arith.divf %390, %391 : vector<8x128xf32>
    %393 = vector.extract_strided_slice %380 {offsets = [0, 256], sizes = [8, 128], strides = [1, 1]} : vector<8x512xf32> to vector<8x128xf32>
    %394 = math.tanh %393 : vector<8x128xf32>
    %395 = vector.extract_strided_slice %380 {offsets = [0, 384], sizes = [8, 128], strides = [1, 1]} : vector<8x512xf32> to vector<8x128xf32>
    %396 = arith.negf %395 : vector<8x128xf32>
    %397 = math.exp %396 : vector<8x128xf32>
    %cst_94 = arith.constant 1.000000e+00 : f32
    %398 = vector.broadcast %cst_94 : f32 to vector<8x128xf32>
    %399 = arith.addf %398, %397 : vector<8x128xf32>
    %400 = arith.divf %398, %399 : vector<8x128xf32>
    %401 = arith.mulf %392, %337 : vector<8x128xf32>
    %402 = arith.mulf %386, %394 : vector<8x128xf32>
    %403 = arith.addf %401, %402 : vector<8x128xf32>
    %404 = math.tanh %403 : vector<8x128xf32>
    %405 = arith.mulf %400, %404 : vector<8x128xf32>
    %406 = vector.extract_strided_slice %376 {offsets = [0, 0], sizes = [8, 128], strides = [1, 1]} : vector<8x512xf32> to vector<8x128xf32>
    %407 = arith.negf %406 : vector<8x128xf32>
    %408 = math.exp %407 : vector<8x128xf32>
    %cst_95 = arith.constant 1.000000e+00 : f32
    %409 = vector.broadcast %cst_95 : f32 to vector<8x128xf32>
    %410 = arith.addf %409, %408 : vector<8x128xf32>
    %411 = arith.divf %409, %410 : vector<8x128xf32>
    %412 = vector.extract_strided_slice %376 {offsets = [0, 128], sizes = [8, 128], strides = [1, 1]} : vector<8x512xf32> to vector<8x128xf32>
    %413 = arith.negf %412 : vector<8x128xf32>
    %414 = math.exp %413 : vector<8x128xf32>
    %cst_96 = arith.constant 1.000000e+00 : f32
    %415 = vector.broadcast %cst_96 : f32 to vector<8x128xf32>
    %416 = arith.addf %415, %414 : vector<8x128xf32>
    %417 = arith.divf %415, %416 : vector<8x128xf32>
    %418 = vector.extract_strided_slice %376 {offsets = [0, 256], sizes = [8, 128], strides = [1, 1]} : vector<8x512xf32> to vector<8x128xf32>
    %419 = math.tanh %418 : vector<8x128xf32>
    %420 = vector.extract_strided_slice %376 {offsets = [0, 384], sizes = [8, 128], strides = [1, 1]} : vector<8x512xf32> to vector<8x128xf32>
    %421 = arith.negf %420 : vector<8x128xf32>
    %422 = math.exp %421 : vector<8x128xf32>
    %cst_97 = arith.constant 1.000000e+00 : f32
    %423 = vector.broadcast %cst_97 : f32 to vector<8x128xf32>
    %424 = arith.addf %423, %422 : vector<8x128xf32>
    %425 = arith.divf %423, %424 : vector<8x128xf32>
    %426 = arith.mulf %417, %362 : vector<8x128xf32>
    %427 = arith.mulf %411, %419 : vector<8x128xf32>
    %428 = arith.addf %426, %427 : vector<8x128xf32>
    %429 = math.tanh %428 : vector<8x128xf32>
    %430 = arith.mulf %425, %429 : vector<8x128xf32>
    %c7_i32 = arith.constant 7 : i32
    %431 = arith.truncf %430 : vector<8x128xf32> to vector<8x128xbf16>
    %c0_98 = arith.constant 0 : index
    %c0_99 = arith.constant 0 : index
    %432 = vector.load %arg4[%c0_98, %c0_99] : memref<128x1024xbf16, #tpu.memory_space<vmem>>, vector<128x1024xbf16>
    %cst_100 = arith.constant dense<0.000000e+00> : vector<8x1024xf32>
    %433 = tpu.matmul %431, %432, %cst_100 {dimension_numbers = #tpu.dot_dimension_numbers<[1], [0], [0], [1], [0, 0, 1, 1], [], []>} : vector<8x128xbf16>, vector<128x1024xbf16>, vector<8x1024xf32> -> vector<8x1024xf32>
    %434 = arith.truncf %405 : vector<8x128xf32> to vector<8x128xbf16>
    %c0_101 = arith.constant 0 : index
    %c0_102 = arith.constant 0 : index
    %435 = vector.load %arg5[%c0_101, %c0_102] : memref<128x512xbf16, #tpu.memory_space<vmem>>, vector<128x512xbf16>
    %cst_103 = arith.constant dense<0.000000e+00> : vector<8x512xf32>
    %436 = tpu.matmul %434, %435, %cst_103 {dimension_numbers = #tpu.dot_dimension_numbers<[1], [0], [0], [1], [0, 0, 1, 1], [], []>} : vector<8x128xbf16>, vector<128x512xbf16>, vector<8x512xf32> -> vector<8x512xf32>
    %c8_i32_104 = arith.constant 8 : i32
    %437 = arith.muli %c7_i32, %c8_i32_104 : i32
    %438 = tpu.assume_multiple %437, 8 : i32
    %439 = vector.extract_strided_slice %433 {offsets = [0, 0], sizes = [8, 512], strides = [1, 1]} : vector<8x1024xf32> to vector<8x512xf32>
    %440 = arith.index_cast %438 : i32 to index
    %c0_105 = arith.constant 0 : index
    %441 = vector.load %arg10[%440, %c0_105] : memref<64x512xf32, #tpu.memory_space<vmem>>, vector<8x512xf32>
    %442 = arith.addf %439, %441 : vector<8x512xf32>
    %443 = vector.extract_strided_slice %433 {offsets = [0, 512], sizes = [8, 512], strides = [1, 1]} : vector<8x1024xf32> to vector<8x512xf32>
    %444 = arith.addf %443, %436 : vector<8x512xf32>
    %445 = vector.broadcast %7 : vector<1x512xf32> to vector<8x512xf32>
    %446 = arith.addf %444, %445 : vector<8x512xf32>
    %447 = vector.extract_strided_slice %446 {offsets = [0, 0], sizes = [8, 128], strides = [1, 1]} : vector<8x512xf32> to vector<8x128xf32>
    %448 = arith.negf %447 : vector<8x128xf32>
    %449 = math.exp %448 : vector<8x128xf32>
    %cst_106 = arith.constant 1.000000e+00 : f32
    %450 = vector.broadcast %cst_106 : f32 to vector<8x128xf32>
    %451 = arith.addf %450, %449 : vector<8x128xf32>
    %452 = arith.divf %450, %451 : vector<8x128xf32>
    %453 = vector.extract_strided_slice %446 {offsets = [0, 128], sizes = [8, 128], strides = [1, 1]} : vector<8x512xf32> to vector<8x128xf32>
    %454 = arith.negf %453 : vector<8x128xf32>
    %455 = math.exp %454 : vector<8x128xf32>
    %cst_107 = arith.constant 1.000000e+00 : f32
    %456 = vector.broadcast %cst_107 : f32 to vector<8x128xf32>
    %457 = arith.addf %456, %455 : vector<8x128xf32>
    %458 = arith.divf %456, %457 : vector<8x128xf32>
    %459 = vector.extract_strided_slice %446 {offsets = [0, 256], sizes = [8, 128], strides = [1, 1]} : vector<8x512xf32> to vector<8x128xf32>
    %460 = math.tanh %459 : vector<8x128xf32>
    %461 = vector.extract_strided_slice %446 {offsets = [0, 384], sizes = [8, 128], strides = [1, 1]} : vector<8x512xf32> to vector<8x128xf32>
    %462 = arith.negf %461 : vector<8x128xf32>
    %463 = math.exp %462 : vector<8x128xf32>
    %cst_108 = arith.constant 1.000000e+00 : f32
    %464 = vector.broadcast %cst_108 : f32 to vector<8x128xf32>
    %465 = arith.addf %464, %463 : vector<8x128xf32>
    %466 = arith.divf %464, %465 : vector<8x128xf32>
    %467 = arith.mulf %458, %403 : vector<8x128xf32>
    %468 = arith.mulf %452, %460 : vector<8x128xf32>
    %469 = arith.addf %467, %468 : vector<8x128xf32>
    %470 = math.tanh %469 : vector<8x128xf32>
    %471 = arith.mulf %466, %470 : vector<8x128xf32>
    %472 = vector.extract_strided_slice %442 {offsets = [0, 0], sizes = [8, 128], strides = [1, 1]} : vector<8x512xf32> to vector<8x128xf32>
    %473 = arith.negf %472 : vector<8x128xf32>
    %474 = math.exp %473 : vector<8x128xf32>
    %cst_109 = arith.constant 1.000000e+00 : f32
    %475 = vector.broadcast %cst_109 : f32 to vector<8x128xf32>
    %476 = arith.addf %475, %474 : vector<8x128xf32>
    %477 = arith.divf %475, %476 : vector<8x128xf32>
    %478 = vector.extract_strided_slice %442 {offsets = [0, 128], sizes = [8, 128], strides = [1, 1]} : vector<8x512xf32> to vector<8x128xf32>
    %479 = arith.negf %478 : vector<8x128xf32>
    %480 = math.exp %479 : vector<8x128xf32>
    %cst_110 = arith.constant 1.000000e+00 : f32
    %481 = vector.broadcast %cst_110 : f32 to vector<8x128xf32>
    %482 = arith.addf %481, %480 : vector<8x128xf32>
    %483 = arith.divf %481, %482 : vector<8x128xf32>
    %484 = vector.extract_strided_slice %442 {offsets = [0, 256], sizes = [8, 128], strides = [1, 1]} : vector<8x512xf32> to vector<8x128xf32>
    %485 = math.tanh %484 : vector<8x128xf32>
    %486 = vector.extract_strided_slice %442 {offsets = [0, 384], sizes = [8, 128], strides = [1, 1]} : vector<8x512xf32> to vector<8x128xf32>
    %487 = arith.negf %486 : vector<8x128xf32>
    %488 = math.exp %487 : vector<8x128xf32>
    %cst_111 = arith.constant 1.000000e+00 : f32
    %489 = vector.broadcast %cst_111 : f32 to vector<8x128xf32>
    %490 = arith.addf %489, %488 : vector<8x128xf32>
    %491 = arith.divf %489, %490 : vector<8x128xf32>
    %492 = arith.mulf %483, %428 : vector<8x128xf32>
    %493 = arith.mulf %477, %485 : vector<8x128xf32>
    %494 = arith.addf %492, %493 : vector<8x128xf32>
    %495 = math.tanh %494 : vector<8x128xf32>
    %496 = arith.mulf %491, %495 : vector<8x128xf32>
    %c7_i32_112 = arith.constant 7 : i32
    %497 = arith.truncf %496 : vector<8x128xf32> to vector<8x128xbf16>
    %c0_113 = arith.constant 0 : index
    %c512 = arith.constant 512 : index
    %498 = vector.load %arg4[%c0_113, %c512] : memref<128x1024xbf16, #tpu.memory_space<vmem>>, vector<128x512xbf16>
    %cst_114 = arith.constant dense<0.000000e+00> : vector<8x512xf32>
    %499 = tpu.matmul %497, %498, %cst_114 {dimension_numbers = #tpu.dot_dimension_numbers<[1], [0], [0], [1], [0, 0, 1, 1], [], []>} : vector<8x128xbf16>, vector<128x512xbf16>, vector<8x512xf32> -> vector<8x512xf32>
    %500 = arith.truncf %471 : vector<8x128xf32> to vector<8x128xbf16>
    %c0_115 = arith.constant 0 : index
    %c0_116 = arith.constant 0 : index
    %501 = vector.load %arg5[%c0_115, %c0_116] : memref<128x512xbf16, #tpu.memory_space<vmem>>, vector<128x512xbf16>
    %cst_117 = arith.constant dense<0.000000e+00> : vector<8x512xf32>
    %502 = tpu.matmul %500, %501, %cst_117 {dimension_numbers = #tpu.dot_dimension_numbers<[1], [0], [0], [1], [0, 0, 1, 1], [], []>} : vector<8x128xbf16>, vector<128x512xbf16>, vector<8x512xf32> -> vector<8x512xf32>
    %503 = arith.addf %499, %502 : vector<8x512xf32>
    %504 = vector.broadcast %7 : vector<1x512xf32> to vector<8x512xf32>
    %505 = arith.addf %503, %504 : vector<8x512xf32>
    %506 = vector.extract_strided_slice %505 {offsets = [0, 0], sizes = [8, 128], strides = [1, 1]} : vector<8x512xf32> to vector<8x128xf32>
    %507 = arith.negf %506 : vector<8x128xf32>
    %508 = math.exp %507 : vector<8x128xf32>
    %cst_118 = arith.constant 1.000000e+00 : f32
    %509 = vector.broadcast %cst_118 : f32 to vector<8x128xf32>
    %510 = arith.addf %509, %508 : vector<8x128xf32>
    %511 = arith.divf %509, %510 : vector<8x128xf32>
    %512 = vector.extract_strided_slice %505 {offsets = [0, 128], sizes = [8, 128], strides = [1, 1]} : vector<8x512xf32> to vector<8x128xf32>
    %513 = arith.negf %512 : vector<8x128xf32>
    %514 = math.exp %513 : vector<8x128xf32>
    %cst_119 = arith.constant 1.000000e+00 : f32
    %515 = vector.broadcast %cst_119 : f32 to vector<8x128xf32>
    %516 = arith.addf %515, %514 : vector<8x128xf32>
    %517 = arith.divf %515, %516 : vector<8x128xf32>
    %518 = vector.extract_strided_slice %505 {offsets = [0, 256], sizes = [8, 128], strides = [1, 1]} : vector<8x512xf32> to vector<8x128xf32>
    %519 = math.tanh %518 : vector<8x128xf32>
    %520 = vector.extract_strided_slice %505 {offsets = [0, 384], sizes = [8, 128], strides = [1, 1]} : vector<8x512xf32> to vector<8x128xf32>
    %521 = arith.negf %520 : vector<8x128xf32>
    %522 = math.exp %521 : vector<8x128xf32>
    %cst_120 = arith.constant 1.000000e+00 : f32
    %523 = vector.broadcast %cst_120 : f32 to vector<8x128xf32>
    %524 = arith.addf %523, %522 : vector<8x128xf32>
    %525 = arith.divf %523, %524 : vector<8x128xf32>
    %526 = arith.mulf %517, %469 : vector<8x128xf32>
    %527 = arith.mulf %511, %519 : vector<8x128xf32>
    %528 = arith.addf %526, %527 : vector<8x128xf32>
    %529 = math.tanh %528 : vector<8x128xf32>
    %530 = arith.mulf %525, %529 : vector<8x128xf32>
    %c0_121 = arith.constant 0 : index
    %c0_122 = arith.constant 0 : index
    %531 = vector.load %arg7[%c0_121, %c0_122] : memref<1x128xf32, #tpu.memory_space<vmem>>, vector<1x128xf32>
    %532 = vector.broadcast %531 : vector<1x128xf32> to vector<8x128xf32>
    %533 = arith.mulf %530, %532 : vector<8x128xf32>
    %cst_123 = arith.constant dense<0.000000e+00> : vector<8xf32>
    %534 = vector.multi_reduction <add>, %533, %cst_123 [1] : vector<8x128xf32> to vector<8xf32>
    %535 = vector.shape_cast %534 : vector<8xf32> to vector<8x1xf32>
    %c0_124 = arith.constant 0 : index
    %c0_125 = arith.constant 0 : index
    %536 = vector.load %arg8[%c0_124, %c0_125] : memref<1x1xf32, #tpu.memory_space<vmem>>, vector<1x1xf32>
    %537 = vector.broadcast %536 : vector<1x1xf32> to vector<8x1xf32>
    %538 = arith.addf %535, %537 : vector<8x1xf32>
    %c0_126 = arith.constant 0 : index
    %c0_127 = arith.constant 0 : index
    %539 = vector.load %arg9[%c0_126, %c0_127] : memref<8x1xf32, #tpu.memory_space<vmem>>, vector<8x1xf32>
    tpu.vector_store %arg9[%c0_126, %c0_127], %538 {strides = array<i32>} : memref<8x1xf32, #tpu.memory_space<vmem>>, vector<8x1xf32>,
    return
  }
  func.func @transform_0(%arg0: i32) -> (i32, i32) {
    %c0_i32 = arith.constant 0 : i32
    %c0_i32_0 = arith.constant 0 : i32
    return %arg0, %c0_i32 : i32, i32
  }
  func.func @transform_1(%arg0: i32) -> (i32, i32) {
    %c0_i32 = arith.constant 0 : i32
    %c0_i32_0 = arith.constant 0 : i32
    %c0_i32_1 = arith.constant 0 : i32
    return %c0_i32, %c0_i32_0 : i32, i32
  }
  func.func @transform_2(%arg0: i32) -> (i32, i32) {
    %c0_i32 = arith.constant 0 : i32
    %c0_i32_0 = arith.constant 0 : i32
    %c0_i32_1 = arith.constant 0 : i32
    return %c0_i32, %c0_i32_0 : i32, i32
  }
  func.func @transform_3(%arg0: i32) -> (i32, i32) {
    %c0_i32 = arith.constant 0 : i32
    %c0_i32_0 = arith.constant 0 : i32
    %c0_i32_1 = arith.constant 0 : i32
    return %c0_i32, %c0_i32_0 : i32, i32
  }
  func.func @transform_4(%arg0: i32) -> (i32, i32) {
    %c0_i32 = arith.constant 0 : i32
    %c0_i32_0 = arith.constant 0 : i32
    %c0_i32_1 = arith.constant 0 : i32
    return %c0_i32, %c0_i32_0 : i32, i32
  }
  func.func @transform_5(%arg0: i32) -> (i32, i32) {
    %c0_i32 = arith.constant 0 : i32
    %c0_i32_0 = arith.constant 0 : i32
    %c0_i32_1 = arith.constant 0 : i32
    return %c0_i32, %c0_i32_0 : i32, i32
  }
  func.func @transform_6(%arg0: i32) -> (i32, i32) {
    %c0_i32 = arith.constant 0 : i32
    %c0_i32_0 = arith.constant 0 : i32
    %c0_i32_1 = arith.constant 0 : i32
    return %c0_i32, %c0_i32_0 : i32, i32
  }
  func.func @transform_7(%arg0: i32) -> (i32, i32) {
    %c0_i32 = arith.constant 0 : i32
    %c0_i32_0 = arith.constant 0 : i32
    %c0_i32_1 = arith.constant 0 : i32
    return %c0_i32, %c0_i32_0 : i32, i32
  }
  func.func @transform_8(%arg0: i32) -> (i32, i32) {
    %c0_i32 = arith.constant 0 : i32
    %c0_i32_0 = arith.constant 0 : i32
    return %arg0, %c0_i32 : i32, i32
  }
}

</mosaic_0001>

<llo_original>
// kernel: tpu_custom_call.1
$region0: #{tpu_custom_call.1}
  #allocation0 [shape = 'u32[]', space=smem, size = 0x4, offset = 0x4, fixed_abs, tag = 'smem constant byte address 0x4 - core index']
  #allocation1 [shape = 'u32[144,128]{1,0:T(1,128)}', space=vmem, size = 0x12000, scoped, tag = 'internal scratch']
  #allocation2 [shape = 'f32[64,512]{1,0:T(8,128)}', space=vmem, size = 0x20000, scoped, tag = 'scratch operand']
  #allocation3 [shape = 'f32[1,1]{1,0:T(1,128)S(1)}', space=vmem, size = 0x200, scoped, tag = 'scoped memory for tpu_custom_call.1']
  %s0 = inlined_call_operand.vmem [shape: bf16[64,16], index: 0, kind: input, shape index: {}]
  %s1 = inlined_call_operand.vmem [shape: bf16[16,512], index: 1, kind: input, shape index: {}]
  %s2 = inlined_call_operand.vmem [shape: f32[1,512], index: 2, kind: input, shape index: {}]
  %s3 = inlined_call_operand.hbm [shape: bf16[128,1024], index: 3, kind: input, shape index: {}]
  %s4 = inlined_call_operand.hbm [shape: bf16[128,512], index: 4, kind: input, shape index: {}]
  %s5 = inlined_call_operand.vmem [shape: f32[1,512], index: 5, kind: input, shape index: {}]
  %s6 = inlined_call_operand.vmem [shape: f32[1,128], index: 6, kind: input, shape index: {}]
  %s7 = inlined_call_operand.<no memory space> [shape: f32[1,1], index: 7, kind: input, shape index: {}]
  %s8 = inlined_call_operand.vmem [shape: f32[8,1], index: 8, kind: output, shape index: {}]
  %s9 = sld [smem:[#allocation0]]
  $region50: #{tpu_custom_call.1} parent=0
    _
  %s11 = ssub.s32 1, %s9
  %s12 = scalar_select 0, %s11, %s9
  %v13 = vstv %s7
  %14 = vst [vmem:[#allocation3] sm:$0x1] %v13
  $region1: #{tpu_custom_call.1} parent=0
    #allocation4 [shape = 'u8[262144]{0}', space=vmem, size = 0x40000, scoped, tag = 'input window, operand 3, single buffered']
    #allocation5 [shape = 's32[1]{0}', space=sflag, size = 0x4, scoped, tag = 'scoped memory for tpu_custom_call.1']
    #allocation6 [shape = 'u8[131072]{0}', space=vmem, size = 0x20000, scoped, tag = 'input window, operand 4, single buffered']
    #allocation7 [shape = 's32[1]{0}', space=sflag, size = 0x4, scoped, tag = 'scoped memory for tpu_custom_call.1']
    %15 = vsyncpa [#allocation5], 0
    %16 = vsyncpa [#allocation7], 0
    // Predicated region
    $region2: #{tpu_custom_call.1} parent=1 // pred_check
      _
    $region3: #{tpu_custom_call.1} parent=1 // pred_check_branch
      %18 = sbr.rel (0) target = $region5
    $region4: #{tpu_custom_call.1} parent=1 // pred_region
      _
    $region5: #{tpu_custom_call.1} parent=1 // pred_fallthru
      _
    // Predicated region
    $region6: #{tpu_custom_call.1} parent=1 // pred_check
      _
    $region7: #{tpu_custom_call.1} parent=1 // pred_check_branch
      %20 = sbr.rel (0) target = $region9
    $region8: #{tpu_custom_call.1} parent=1 // pred_region
      _
    $region9: #{tpu_custom_call.1} parent=1 // pred_fallthru
      _
    // Predicated region
    $region10: #{tpu_custom_call.1} parent=1 // pred_check
      _
    $region11: #{tpu_custom_call.1} parent=1 // pred_check_branch
      %22 = sbr.rel (0) target = $region13
    $region12: #{tpu_custom_call.1} parent=1 // pred_region
      _
    $region13: #{tpu_custom_call.1} parent=1 // pred_fallthru
      _
    // Predicated region
    $region14: #{tpu_custom_call.1} parent=1 // pred_check
      _
    $region15: #{tpu_custom_call.1} parent=1 // pred_check_branch
      %24 = sbr.rel (0) target = $region17
    $region16: #{tpu_custom_call.1} parent=1 // pred_region
      %s26 = ssub.s32 8192, 8192
      %27 = vsyncadd [#allocation5], %s26
      %s28 = sshll.u32 [#allocation4], 4
      %s29 = int_to_ptr.vmem [resolvable:$true] %s28
      %34 = dma.hbm_to_vmem [thread:$0]  %s3, 8192, %s29, [#allocation5], 512, 512, 32
    $region17: #{tpu_custom_call.1} parent=1 // pred_fallthru
      _
    // Predicated region
    $region18: #{tpu_custom_call.1} parent=1 // pred_check
      _
    $region19: #{tpu_custom_call.1} parent=1 // pred_check_branch
      %36 = sbr.rel (0) target = $region21
    $region20: #{tpu_custom_call.1} parent=1 // pred_region
      %s38 = ssub.s32 4096, 4096
      %39 = vsyncadd [#allocation7], %s38
      %s40 = sshll.u32 [#allocation6], 4
      %s41 = int_to_ptr.vmem [resolvable:$true] %s40
      %46 = dma.hbm_to_vmem [thread:$0]  %s4, 4096, %s41, [#allocation7], 256, 256, 16
    $region21: #{tpu_custom_call.1} parent=1 // pred_fallthru
      _
    // Predicated region
    $region22: #{tpu_custom_call.1} parent=1 // pred_check
      _
    $region23: #{tpu_custom_call.1} parent=1 // pred_check_branch
      %48 = sbr.rel (0) target = $region25
    $region24: #{tpu_custom_call.1} parent=1 // pred_region
      _
    $region25: #{tpu_custom_call.1} parent=1 // pred_fallthru
      _
    // Predicated region
    $region26: #{tpu_custom_call.1} parent=1 // pred_check
      _
    $region27: #{tpu_custom_call.1} parent=1 // pred_check_branch
      %50 = sbr.rel (0) target = $region29
    $region28: #{tpu_custom_call.1} parent=1 // pred_region
      _
    $region29: #{tpu_custom_call.1} parent=1 // pred_fallthru
      _
    // Predicated region
    $region30: #{tpu_custom_call.1} parent=1 // pred_check
      _
    $region31: #{tpu_custom_call.1} parent=1 // pred_check_branch
      %52 = sbr.rel (0) target = $region33
    $region32: #{tpu_custom_call.1} parent=1 // pred_region
      _
    $region33: #{tpu_custom_call.1} parent=1 // pred_fallthru
      _
    // Predicated region
    $region34: #{tpu_custom_call.1} parent=1 // pred_check
      _
    $region35: #{tpu_custom_call.1} parent=1 // pred_check_branch
      %54 = sbr.rel (0) target = $region37
    $region36: #{tpu_custom_call.1} parent=1 // pred_region
      %55 = dma.done [#allocation5], 8192
    $region37: #{tpu_custom_call.1} parent=1 // pred_fallthru
      _
    // Predicated region
    $region38: #{tpu_custom_call.1} parent=1 // pred_check
      _
    $region39: #{tpu_custom_call.1} parent=1 // pred_check_branch
      %57 = sbr.rel (0) target = $region41
    $region40: #{tpu_custom_call.1} parent=1 // pred_region
      %58 = dma.done [#allocation7], 4096
    $region41: #{tpu_custom_call.1} parent=1 // pred_fallthru
      _
    %v60 = vld [vmem:[%s0] sm:$0xf]
    %v61 = vld [vmem:[%s0 + $0x4] sm:$0xf]
    %v62 = vld [vmem:[%s0 + $0x8] sm:$0xf]
    %v63 = vld [vmem:[%s0 + $0xc] sm:$0xf]
    %v64 = vld [vmem:[%s0 + $0x10] sm:$0xf]
    %v65 = vld [vmem:[%s0 + $0x14] sm:$0xf]
    %v66 = vld [vmem:[%s0 + $0x18] sm:$0xf]
    %v67 = vld [vmem:[%s0 + $0x1c] sm:$0xf]
    %v68 = vld [vmem:[%s1] sm:$0xff]
    %v69 = vld [vmem:[%s1 + $0x8] sm:$0xff]
    %v70 = vld [vmem:[%s1 + $0x10] sm:$0xff]
    %v71 = vld [vmem:[%s1 + $0x18] sm:$0xff]
    %v72 = vld [vmem:[%s2] sm:$0xf]
    %v74 = vlaneseq
    %v75 = vshrl.u32 %v74, 7
    %v76 = vsub.s32 0, %v75
    %v77 = vrot.slane %v72, %v76
    %v78 = vlaneseq
    %v79 = vshrl.u32 %v78, 7
    %v80 = vsub.s32 1, %v79
    %v81 = vrot.slane %v72, %v80
    %v82 = vlaneseq
    %v83 = vshrl.u32 %v82, 7
    %v84 = vsub.s32 2, %v83
    %v85 = vrot.slane %v72, %v84
    %v86 = vlaneseq
    %v87 = vshrl.u32 %v86, 7
    %v88 = vsub.s32 3, %v87
    %v89 = vrot.slane %v72, %v88
    %v102 = vunpack.c.l.b16 %v60
    %v103 = vunpack.c.l.b16 %v61
    %v104 = vunpack.c.l.b16 %v62
    %v105 = vunpack.c.l.b16 %v63
    %v106 = vunpack.c.l.b16 %v64
    %v107 = vunpack.c.l.b16 %v65
    %v108 = vunpack.c.l.b16 %v66
    %v109 = vunpack.c.l.b16 %v67
    %v110 = vpack.c.b16 %v103, %v102
    %v111 = vpack.c.b16 %v105, %v104
    %v112 = vpack.c.b16 %v107, %v106
    %v113 = vpack.c.b16 %v109, %v108
    %v118 = vunpack.c.l.b16 %v68
    %v119 = vunpack.c.h.b16 %v68
    %v120 = vunpack.c.l.b16 %v69
    %v121 = vunpack.c.h.b16 %v69
    %v122 = vunpack.c.l.b16 %v70
    %v123 = vunpack.c.h.b16 %v70
    %v124 = vunpack.c.l.b16 %v71
    %v125 = vunpack.c.h.b16 %v71
    %v126 = vpack.c.b16 %v122, %v118
    %v127 = vpack.c.b16 %v123, %v119
    %v128 = vpack.c.b16 %v124, %v120
    %v129 = vpack.c.b16 %v125, %v121
    %vm134 = vcmask 130048
    %v136 = vsel %vm134, %v110, 0
    %v139 = vsel %vm134, %v111, 0
    %v142 = vsel %vm134, %v112, 0
    %v145 = vsel %vm134, %v113, 0
    %147 = vmatprep.subr.bf16.mxu0 %v127
    %148 = vmatpush1.bf16.msra.mxu0 %v126
    %149 = vmatprep.subr.bf16.mxu0 0
    %150 = vmatpush1.bf16.msra.mxu0 0
    %151 = vmatprep.subr.bf16.mxu0 0
    %152 = vmatpush1.bf16.msra.mxu0 0
    %153 = vmatprep.subr.bf16.mxu0 0
    %154 = vmatpush1.bf16.msra.mxu0 0
    %155 = vmatprep.subr.bf16.mxu0 0
    %156 = vmatpush1.bf16.msra.mxu0 0
    %157 = vmatprep.subr.bf16.mxu0 0
    %158 = vmatpush1.bf16.msra.mxu0 0
    %159 = vmatprep.subr.bf16.mxu0 0
    %160 = vmatpush1.bf16.msra.mxu0 0
    %161 = vmatprep.subr.bf16.mxu0 0
    %162 = vmatpush1.bf16.msra.mxu0 0
    %163 = vmatprep.subr.bf16.mxu0 0
    %164 = vmatpush1.bf16.msra.mxu0 0
    %165 = vmatprep.subr.bf16.mxu0 0
    %166 = vmatpush1.bf16.msra.mxu0 0
    %167 = vmatprep.subr.bf16.mxu0 0
    %168 = vmatpush1.bf16.msra.mxu0 0
    %169 = vmatprep.subr.bf16.mxu0 0
    %170 = vmatpush1.bf16.msra.mxu0 0
    %171 = vmatprep.subr.bf16.mxu0 0
    %172 = vmatpush1.bf16.msra.mxu0 0
    %173 = vmatprep.subr.bf16.mxu0 0
    %174 = vmatpush1.bf16.msra.mxu0 0
    %175 = vmatprep.subr.bf16.mxu0 0
    %176 = vmatpush1.bf16.msra.mxu0 0
    %177 = vmatprep.subr.bf16.mxu0 0
    %178 = vmatpush1.bf16.msra.mxu0 0
    %179 = vmatprep.mubr.bf16.mxu0 0
    %180 = vmatmul.mubr.bf16.gmra.mrb[0].mxu0 %v136
    %v181 = vpop.f32.mrb[0].mxu0
    %v182 = vadd.f32 %v77, %v181
    %v183 = vpop.f32.mrb[0].mxu0
    %v184 = vadd.f32 %v81, %v183
    %v185 = vpop.f32.mrb[0].mxu0
    %v186 = vadd.f32 %v77, %v185
    %v187 = vpop.f32.mrb[0].mxu0
    %v188 = vadd.f32 %v81, %v187
    %189 = vmatprep.mubr.bf16.mxu0 0
    %190 = vmatmul.mubr.bf16.gmra.mrb[0].mxu0 %v139
    %v191 = vpop.f32.mrb[0].mxu0
    %v192 = vadd.f32 %v77, %v191
    %v193 = vpop.f32.mrb[0].mxu0
    %v194 = vadd.f32 %v81, %v193
    %v195 = vpop.f32.mrb[0].mxu0
    %v196 = vadd.f32 %v77, %v195
    %v197 = vpop.f32.mrb[0].mxu0
    %v198 = vadd.f32 %v81, %v197
    %199 = vmatprep.mubr.bf16.mxu0 0
    %200 = vmatmul.mubr.bf16.gmra.mrb[0].mxu0 %v142
    %v201 = vpop.f32.mrb[0].mxu0
    %v202 = vadd.f32 %v77, %v201
    %v203 = vpop.f32.mrb[0].mxu0
    %v204 = vadd.f32 %v81, %v203
    %v205 = vpop.f32.mrb[0].mxu0
    %v206 = vadd.f32 %v77, %v205
    %v207 = vpop.f32.mrb[0].mxu0
    %v208 = vadd.f32 %v81, %v207
    %209 = vmatprep.mubr.bf16.mxu0 0
    %210 = vmatmul.mubr.bf16.gmra.mrb[0].mxu0 %v145
    %v211 = vpop.f32.mrb[0].mxu0
    %v212 = vadd.f32 %v77, %v211
    %v213 = vpop.f32.mrb[0].mxu0
    %v214 = vadd.f32 %v81, %v213
    %v215 = vpop.f32.mrb[0].mxu0
    %v216 = vadd.f32 %v77, %v215
    %v217 = vpop.f32.mrb[0].mxu0
    %v218 = vadd.f32 %v81, %v217
    %219 = vdwg.mxu0
    %220 = vmatprep.subr.bf16.mxu0 %v129
    %221 = vmatpush1.bf16.msra.mxu0 %v128
    %222 = vmatprep.subr.bf16.mxu0 0
    %223 = vmatpush1.bf16.msra.mxu0 0
    %224 = vmatprep.subr.bf16.mxu0 0
    %225 = vmatpush1.bf16.msra.mxu0 0
    %226 = vmatprep.subr.bf16.mxu0 0
    %227 = vmatpush1.bf16.msra.mxu0 0
    %228 = vmatprep.subr.bf16.mxu0 0
    %229 = vmatpush1.bf16.msra.mxu0 0
    %230 = vmatprep.subr.bf16.mxu0 0
    %231 = vmatpush1.bf16.msra.mxu0 0
    %232 = vmatprep.subr.bf16.mxu0 0
    %233 = vmatpush1.bf16.msra.mxu0 0
    %234 = vmatprep.subr.bf16.mxu0 0
    %235 = vmatpush1.bf16.msra.mxu0 0
    %236 = vmatprep.subr.bf16.mxu0 0
    %237 = vmatpush1.bf16.msra.mxu0 0
    %238 = vmatprep.subr.bf16.mxu0 0
    %239 = vmatpush1.bf16.msra.mxu0 0
    %240 = vmatprep.subr.bf16.mxu0 0
    %241 = vmatpush1.bf16.msra.mxu0 0
    %242 = vmatprep.subr.bf16.mxu0 0
    %243 = vmatpush1.bf16.msra.mxu0 0
    %244 = vmatprep.subr.bf16.mxu0 0
    %245 = vmatpush1.bf16.msra.mxu0 0
    %246 = vmatprep.subr.bf16.mxu0 0
    %247 = vmatpush1.bf16.msra.mxu0 0
    %248 = vmatprep.subr.bf16.mxu0 0
    %249 = vmatpush1.bf16.msra.mxu0 0
    %250 = vmatprep.subr.bf16.mxu0 0
    %251 = vmatpush1.bf16.msra.mxu0 0
    %252 = vmatprep.mubr.bf16.mxu0 0
    %253 = vmatmul.mubr.bf16.gmra.mrb[0].mxu0 %v136
    %v254 = vpop.f32.mrb[0].mxu0
    %v255 = vadd.f32 %v85, %v254
    %v256 = vpop.f32.mrb[0].mxu0
    %v257 = vadd.f32 %v89, %v256
    %v258 = vpop.f32.mrb[0].mxu0
    %v259 = vadd.f32 %v85, %v258
    %v260 = vpop.f32.mrb[0].mxu0
    %v261 = vadd.f32 %v89, %v260
    %262 = vmatprep.mubr.bf16.mxu0 0
    %263 = vmatmul.mubr.bf16.gmra.mrb[0].mxu0 %v139
    %v264 = vpop.f32.mrb[0].mxu0
    %v265 = vadd.f32 %v85, %v264
    %v266 = vpop.f32.mrb[0].mxu0
    %v267 = vadd.f32 %v89, %v266
    %v268 = vpop.f32.mrb[0].mxu0
    %v269 = vadd.f32 %v85, %v268
    %v270 = vpop.f32.mrb[0].mxu0
    %v271 = vadd.f32 %v89, %v270
    %272 = vmatprep.mubr.bf16.mxu0 0
    %273 = vmatmul.mubr.bf16.gmra.mrb[0].mxu0 %v142
    %v274 = vpop.f32.mrb[0].mxu0
    %v275 = vadd.f32 %v85, %v274
    %v276 = vpop.f32.mrb[0].mxu0
    %v277 = vadd.f32 %v89, %v276
    %v278 = vpop.f32.mrb[0].mxu0
    %v279 = vadd.f32 %v85, %v278
    %v280 = vpop.f32.mrb[0].mxu0
    %v281 = vadd.f32 %v89, %v280
    %282 = vmatprep.mubr.bf16.mxu0 0
    %283 = vmatmul.mubr.bf16.gmra.mrb[0].mxu0 %v145
    %v284 = vpop.f32.mrb[0].mxu0
    %v285 = vadd.f32 %v85, %v284
    %v286 = vpop.f32.mrb[0].mxu0
    %v287 = vadd.f32 %v89, %v286
    %v288 = vpop.f32.mrb[0].mxu0
    %v289 = vadd.f32 %v85, %v288
    %v290 = vpop.f32.mrb[0].mxu0
    %v291 = vadd.f32 %v89, %v290
    %292 = vdwg.mxu0
    %293 = vst [vmem:[#allocation2] sm:$0xff] %v182
    %294 = vst [vmem:[#allocation2 + $0x8] sm:$0xff] %v184
    %295 = vst [vmem:[#allocation2 + $0x10] sm:$0xff] %v255
    %296 = vst [vmem:[#allocation2 + $0x18] sm:$0xff] %v257
    %297 = vst [vmem:[#allocation2 + $0x20] sm:$0xff] %v186
    %298 = vst [vmem:[#allocation2 + $0x28] sm:$0xff] %v188
    %299 = vst [vmem:[#allocation2 + $0x30] sm:$0xff] %v259
    %300 = vst [vmem:[#allocation2 + $0x38] sm:$0xff] %v261
    %301 = vst [vmem:[#allocation2 + $0x40] sm:$0xff] %v192
    %302 = vst [vmem:[#allocation2 + $0x48] sm:$0xff] %v194
    %303 = vst [vmem:[#allocation2 + $0x50] sm:$0xff] %v265
    %304 = vst [vmem:[#allocation2 + $0x58] sm:$0xff] %v267
    %305 = vst [vmem:[#allocation2 + $0x60] sm:$0xff] %v196
    %306 = vst [vmem:[#allocation2 + $0x68] sm:$0xff] %v198
    %307 = vst [vmem:[#allocation2 + $0x70] sm:$0xff] %v269
    %308 = vst [vmem:[#allocation2 + $0x78] sm:$0xff] %v271
    %309 = vst [vmem:[#allocation2 + $0x80] sm:$0xff] %v202
    %310 = vst [vmem:[#allocation2 + $0x88] sm:$0xff] %v204
    %311 = vst [vmem:[#allocation2 + $0x90] sm:$0xff] %v275
    %312 = vst [vmem:[#allocation2 + $0x98] sm:$0xff] %v277
    %313 = vst [vmem:[#allocation2 + $0xa0] sm:$0xff] %v206
    %314 = vst [vmem:[#allocation2 + $0xa8] sm:$0xff] %v208
    %315 = vst [vmem:[#allocation2 + $0xb0] sm:$0xff] %v279
    %316 = vst [vmem:[#allocation2 + $0xb8] sm:$0xff] %v281
    %317 = vst [vmem:[#allocation2 + $0xc0] sm:$0xff] %v212
    %318 = vst [vmem:[#allocation2 + $0xc8] sm:$0xff] %v214
    %319 = vst [vmem:[#allocation2 + $0xd0] sm:$0xff] %v285
    %320 = vst [vmem:[#allocation2 + $0xd8] sm:$0xff] %v287
    %321 = vst [vmem:[#allocation2 + $0xe0] sm:$0xff] %v216
    %322 = vst [vmem:[#allocation2 + $0xe8] sm:$0xff] %v218
    %323 = vst [vmem:[#allocation2 + $0xf0] sm:$0xff] %v289
    %324 = vst [vmem:[#allocation2 + $0xf8] sm:$0xff] %v291
    %v325 = vld [vmem:[%s5] sm:$0xf]
    %v326 = vld [vmem:[#allocation2] sm:$0xff]
    %v327 = vld [vmem:[#allocation2 + $0x8] sm:$0xff]
    %v328 = vld [vmem:[#allocation2 + $0x10] sm:$0xff]
    %v329 = vld [vmem:[#allocation2 + $0x18] sm:$0xff]
    %v330 = vxor.u32 %v326, 2147483648
    %v331 = vmul.f32 %v330, 1.442695
    %v332 = vpow.pop %v331
    %v333 = vadd.f32 %v332, 1.0
    %v334 = vrcp.pop %v333
    %v335 = vmul.f32 1.0, %v334
    %v336 = vxor.u32 %v327, 2147483648
    %v337 = vmul.f32 %v336, 1.442695
    %v338 = vpow.pop %v337
    %v339 = vadd.f32 %v338, 1.0
    %v340 = vrcp.pop %v339
    %v341 = vmul.f32 1.0, %v340
    %v342 = vtanh.pop %v328
    %v343 = vxor.u32 %v329, 2147483648
    %v344 = vmul.f32 %v343, 1.442695
    %v345 = vpow.pop %v344
    %v346 = vadd.f32 %v345, 1.0
    %v347 = vrcp.pop %v346
    %v348 = vmul.f32 1.0, %v347
    %v349 = vmul.f32 %v341, 0.0
    %v350 = vmul.f32 %v335, %v342
    %v351 = vadd.f32 %v349, %v350
    %v352 = vtanh.pop %v351
    %v353 = vmul.f32 %v348, %v352
    %v354 = vpack.c.bf16 %v353, %v353
    %v355 = vld [vmem:[#allocation4] sm:$0xff]
    %v356 = vld [vmem:[#allocation4 + $0x8] sm:$0xff]
    %v357 = vld [vmem:[#allocation4 + $0x10] sm:$0xff]
    %v358 = vld [vmem:[#allocation4 + $0x18] sm:$0xff]
    %v359 = vld [vmem:[#allocation4 + $0x20] sm:$0xff]
    %v360 = vld [vmem:[#allocation4 + $0x28] sm:$0xff]
    %v361 = vld [vmem:[#allocation4 + $0x30] sm:$0xff]
    %v362 = vld [vmem:[#allocation4 + $0x38] sm:$0xff]
    %v363 = vld [vmem:[#allocation4 + $0x40] sm:$0xff]
    %v364 = vld [vmem:[#allocation4 + $0x48] sm:$0xff]
    %v365 = vld [vmem:[#allocation4 + $0x50] sm:$0xff]
    %v366 = vld [vmem:[#allocation4 + $0x58] sm:$0xff]
    %v367 = vld [vmem:[#allocation4 + $0x60] sm:$0xff]
    %v368 = vld [vmem:[#allocation4 + $0x68] sm:$0xff]
    %v369 = vld [vmem:[#allocation4 + $0x70] sm:$0xff]
    %v370 = vld [vmem:[#allocation4 + $0x78] sm:$0xff]
    %v371 = vld [vmem:[#allocation4 + $0x80] sm:$0xff]
    %v372 = vld [vmem:[#allocation4 + $0x88] sm:$0xff]
    %v373 = vld [vmem:[#allocation4 + $0x90] sm:$0xff]
    %v374 = vld [vmem:[#allocation4 + $0x98] sm:$0xff]
    %v375 = vld [vmem:[#allocation4 + $0xa0] sm:$0xff]
    %v376 = vld [vmem:[#allocation4 + $0xa8] sm:$0xff]
    %v377 = vld [vmem:[#allocation4 + $0xb0] sm:$0xff]
    %v378 = vld [vmem:[#allocation4 + $0xb8] sm:$0xff]
    %v379 = vld [vmem:[#allocation4 + $0xc0] sm:$0xff]
    %v380 = vld [vmem:[#allocation4 + $0xc8] sm:$0xff]
    %v381 = vld [vmem:[#allocation4 + $0xd0] sm:$0xff]
    %v382 = vld [vmem:[#allocation4 + $0xd8] sm:$0xff]
    %v383 = vld [vmem:[#allocation4 + $0xe0] sm:$0xff]
    %v384 = vld [vmem:[#allocation4 + $0xe8] sm:$0xff]
    %v385 = vld [vmem:[#allocation4 + $0xf0] sm:$0xff]
    %v386 = vld [vmem:[#allocation4 + $0xf8] sm:$0xff]
    %v387 = vld [vmem:[#allocation4 + $0x100] sm:$0xff]
    %v388 = vld [vmem:[#allocation4 + $0x108] sm:$0xff]
    %v389 = vld [vmem:[#allocation4 + $0x110] sm:$0xff]
    %v390 = vld [vmem:[#allocation4 + $0x118] sm:$0xff]
    %v391 = vld [vmem:[#allocation4 + $0x120] sm:$0xff]
    %v392 = vld [vmem:[#allocation4 + $0x128] sm:$0xff]
    %v393 = vld [vmem:[#allocation4 + $0x130] sm:$0xff]
    %v394 = vld [vmem:[#allocation4 + $0x138] sm:$0xff]
    %v395 = vld [vmem:[#allocation4 + $0x140] sm:$0xff]
    %v396 = vld [vmem:[#allocation4 + $0x148] sm:$0xff]
    %v397 = vld [vmem:[#allocation4 + $0x150] sm:$0xff]
    %v398 = vld [vmem:[#allocation4 + $0x158] sm:$0xff]
    %v399 = vld [vmem:[#allocation4 + $0x160] sm:$0xff]
    %v400 = vld [vmem:[#allocation4 + $0x168] sm:$0xff]
    %v401 = vld [vmem:[#allocation4 + $0x170] sm:$0xff]
    %v402 = vld [vmem:[#allocation4 + $0x178] sm:$0xff]
    %v403 = vld [vmem:[#allocation4 + $0x180] sm:$0xff]
    %v404 = vld [vmem:[#allocation4 + $0x188] sm:$0xff]
    %v405 = vld [vmem:[#allocation4 + $0x190] sm:$0xff]
    %v406 = vld [vmem:[#allocation4 + $0x198] sm:$0xff]
    %v407 = vld [vmem:[#allocation4 + $0x1a0] sm:$0xff]
    %v408 = vld [vmem:[#allocation4 + $0x1a8] sm:$0xff]
    %v409 = vld [vmem:[#allocation4 + $0x1b0] sm:$0xff]
    %v410 = vld [vmem:[#allocation4 + $0x1b8] sm:$0xff]
    %v411 = vld [vmem:[#allocation4 + $0x1c0] sm:$0xff]
    %v412 = vld [vmem:[#allocation4 + $0x1c8] sm:$0xff]
    %v413 = vld [vmem:[#allocation4 + $0x1d0] sm:$0xff]
    %v414 = vld [vmem:[#allocation4 + $0x1d8] sm:$0xff]
    %v415 = vld [vmem:[#allocation4 + $0x1e0] sm:$0xff]
    %v416 = vld [vmem:[#allocation4 + $0x1e8] sm:$0xff]
    %v417 = vld [vmem:[#allocation4 + $0x1f0] sm:$0xff]
    %v418 = vld [vmem:[#allocation4 + $0x1f8] sm:$0xff]
    %v483 = vunpack.c.l.b16 %v355
    %v484 = vunpack.c.h.b16 %v355
    %v485 = vunpack.c.l.b16 %v356
    %v486 = vunpack.c.h.b16 %v356
    %v487 = vunpack.c.l.b16 %v357
    %v488 = vunpack.c.h.b16 %v357
    %v489 = vunpack.c.l.b16 %v358
    %v490 = vunpack.c.h.b16 %v358
    %v491 = vunpack.c.l.b16 %v359
    %v492 = vunpack.c.h.b16 %v359
    %v493 = vunpack.c.l.b16 %v360
    %v494 = vunpack.c.h.b16 %v360
    %v495 = vunpack.c.l.b16 %v361
    %v496 = vunpack.c.h.b16 %v361
    %v497 = vunpack.c.l.b16 %v362
    %v498 = vunpack.c.h.b16 %v362
    %v499 = vunpack.c.l.b16 %v363
    %v500 = vunpack.c.h.b16 %v363
    %v501 = vunpack.c.l.b16 %v364
    %v502 = vunpack.c.h.b16 %v364
    %v503 = vunpack.c.l.b16 %v365
    %v504 = vunpack.c.h.b16 %v365
    %v505 = vunpack.c.l.b16 %v366
    %v506 = vunpack.c.h.b16 %v366
    %v507 = vunpack.c.l.b16 %v367
    %v508 = vunpack.c.h.b16 %v367
    %v509 = vunpack.c.l.b16 %v368
    %v510 = vunpack.c.h.b16 %v368
    %v511 = vunpack.c.l.b16 %v369
    %v512 = vunpack.c.h.b16 %v369
    %v513 = vunpack.c.l.b16 %v370
    %v514 = vunpack.c.h.b16 %v370
    %v515 = vunpack.c.l.b16 %v371
    %v516 = vunpack.c.h.b16 %v371
    %v517 = vunpack.c.l.b16 %v372
    %v518 = vunpack.c.h.b16 %v372
    %v519 = vunpack.c.l.b16 %v373
    %v520 = vunpack.c.h.b16 %v373
    %v521 = vunpack.c.l.b16 %v374
    %v522 = vunpack.c.h.b16 %v374
    %v523 = vunpack.c.l.b16 %v375
    %v524 = vunpack.c.h.b16 %v375
    %v525 = vunpack.c.l.b16 %v376
    %v526 = vunpack.c.h.b16 %v376
    %v527 = vunpack.c.l.b16 %v377
    %v528 = vunpack.c.h.b16 %v377
    %v529 = vunpack.c.l.b16 %v378
    %v530 = vunpack.c.h.b16 %v378
    %v531 = vunpack.c.l.b16 %v379
    %v532 = vunpack.c.h.b16 %v379
    %v533 = vunpack.c.l.b16 %v380
    %v534 = vunpack.c.h.b16 %v380
    %v535 = vunpack.c.l.b16 %v381
    %v536 = vunpack.c.h.b16 %v381
    %v537 = vunpack.c.l.b16 %v382
    %v538 = vunpack.c.h.b16 %v382
    %v539 = vunpack.c.l.b16 %v383
    %v540 = vunpack.c.h.b16 %v383
    %v541 = vunpack.c.l.b16 %v384
    %v542 = vunpack.c.h.b16 %v384
    %v543 = vunpack.c.l.b16 %v385
    %v544 = vunpack.c.h.b16 %v385
    %v545 = vunpack.c.l.b16 %v386
    %v546 = vunpack.c.h.b16 %v386
    %v547 = vunpack.c.l.b16 %v387
    %v548 = vunpack.c.h.b16 %v387
    %v549 = vunpack.c.l.b16 %v388
    %v550 = vunpack.c.h.b16 %v388
    %v551 = vunpack.c.l.b16 %v389
    %v552 = vunpack.c.h.b16 %v389
    %v553 = vunpack.c.l.b16 %v390
    %v554 = vunpack.c.h.b16 %v390
    %v555 = vunpack.c.l.b16 %v391
    %v556 = vunpack.c.h.b16 %v391
    %v557 = vunpack.c.l.b16 %v392
    %v558 = vunpack.c.h.b16 %v392
    %v559 = vunpack.c.l.b16 %v393
    %v560 = vunpack.c.h.b16 %v393
    %v561 = vunpack.c.l.b16 %v394
    %v562 = vunpack.c.h.b16 %v394
    %v563 = vunpack.c.l.b16 %v395
    %v564 = vunpack.c.h.b16 %v395
    %v565 = vunpack.c.l.b16 %v396
    %v566 = vunpack.c.h.b16 %v396
    %v567 = vunpack.c.l.b16 %v397
    %v568 = vunpack.c.h.b16 %v397
    %v569 = vunpack.c.l.b16 %v398
    %v570 = vunpack.c.h.b16 %v398
    %v571 = vunpack.c.l.b16 %v399
    %v572 = vunpack.c.h.b16 %v399
    %v573 = vunpack.c.l.b16 %v400
    %v574 = vunpack.c.h.b16 %v400
    %v575 = vunpack.c.l.b16 %v401
    %v576 = vunpack.c.h.b16 %v401
    %v577 = vunpack.c.l.b16 %v402
    %v578 = vunpack.c.h.b16 %v402
    %v579 = vunpack.c.l.b16 %v403
    %v580 = vunpack.c.h.b16 %v403
    %v581 = vunpack.c.l.b16 %v404
    %v582 = vunpack.c.h.b16 %v404
    %v583 = vunpack.c.l.b16 %v405
    %v584 = vunpack.c.h.b16 %v405
    %v585 = vunpack.c.l.b16 %v406
    %v586 = vunpack.c.h.b16 %v406
    %v587 = vunpack.c.l.b16 %v407
    %v588 = vunpack.c.h.b16 %v407
    %v589 = vunpack.c.l.b16 %v408
    %v590 = vunpack.c.h.b16 %v408
    %v591 = vunpack.c.l.b16 %v409
    %v592 = vunpack.c.h.b16 %v409
    %v593 = vunpack.c.l.b16 %v410
    %v594 = vunpack.c.h.b16 %v410
    %v595 = vunpack.c.l.b16 %v411
    %v596 = vunpack.c.h.b16 %v411
    %v597 = vunpack.c.l.b16 %v412
    %v598 = vunpack.c.h.b16 %v412
    %v599 = vunpack.c.l.b16 %v413
    %v600 = vunpack.c.h.b16 %v413
    %v601 = vunpack.c.l.b16 %v414
    %v602 = vunpack.c.h.b16 %v414
    %v603 = vunpack.c.l.b16 %v415
    %v604 = vunpack.c.h.b16 %v415
    %v605 = vunpack.c.l.b16 %v416
    %v606 = vunpack.c.h.b16 %v416
    %v607 = vunpack.c.l.b16 %v417
    %v608 = vunpack.c.h.b16 %v417
    %v609 = vunpack.c.l.b16 %v418
    %v610 = vunpack.c.h.b16 %v418
    %v611 = vpack.c.b16 %v491, %v483
    %v612 = vpack.c.b16 %v492, %v484
    %v613 = vpack.c.b16 %v493, %v485
    %v614 = vpack.c.b16 %v494, %v486
    %v615 = vpack.c.b16 %v495, %v487
    %v616 = vpack.c.b16 %v496, %v488
    %v617 = vpack.c.b16 %v497, %v489
    %v618 = vpack.c.b16 %v498, %v490
    %v619 = vpack.c.b16 %v507, %v499
    %v620 = vpack.c.b16 %v508, %v500
    %v621 = vpack.c.b16 %v509, %v501
    %v622 = vpack.c.b16 %v510, %v502
    %v623 = vpack.c.b16 %v511, %v503
    %v624 = vpack.c.b16 %v512, %v504
    %v625 = vpack.c.b16 %v513, %v505
    %v626 = vpack.c.b16 %v514, %v506
    %v627 = vpack.c.b16 %v523, %v515
    %v628 = vpack.c.b16 %v524, %v516
    %v629 = vpack.c.b16 %v525, %v517
    %v630 = vpack.c.b16 %v526, %v518
    %v631 = vpack.c.b16 %v527, %v519
    %v632 = vpack.c.b16 %v528, %v520
    %v633 = vpack.c.b16 %v529, %v521
    %v634 = vpack.c.b16 %v530, %v522
    %v635 = vpack.c.b16 %v539, %v531
    %v636 = vpack.c.b16 %v540, %v532
    %v637 = vpack.c.b16 %v541, %v533
    %v638 = vpack.c.b16 %v542, %v534
    %v639 = vpack.c.b16 %v543, %v535
    %v640 = vpack.c.b16 %v544, %v536
    %v641 = vpack.c.b16 %v545, %v537
    %v642 = vpack.c.b16 %v546, %v538
    %v643 = vpack.c.b16 %v555, %v547
    %v644 = vpack.c.b16 %v556, %v548
    %v645 = vpack.c.b16 %v557, %v549
    %v646 = vpack.c.b16 %v558, %v550
    %v647 = vpack.c.b16 %v559, %v551
    %v648 = vpack.c.b16 %v560, %v552
    %v649 = vpack.c.b16 %v561, %v553
    %v650 = vpack.c.b16 %v562, %v554
    %v651 = vpack.c.b16 %v571, %v563
    %v652 = vpack.c.b16 %v572, %v564
    %v653 = vpack.c.b16 %v573, %v565
    %v654 = vpack.c.b16 %v574, %v566
    %v655 = vpack.c.b16 %v575, %v567
    %v656 = vpack.c.b16 %v576, %v568
    %v657 = vpack.c.b16 %v577, %v569
    %v658 = vpack.c.b16 %v578, %v570
    %v659 = vpack.c.b16 %v587, %v579
    %v660 = vpack.c.b16 %v588, %v580
    %v661 = vpack.c.b16 %v589, %v581
    %v662 = vpack.c.b16 %v590, %v582
    %v663 = vpack.c.b16 %v591, %v583
    %v664 = vpack.c.b16 %v592, %v584
    %v665 = vpack.c.b16 %v593, %v585
    %v666 = vpack.c.b16 %v594, %v586
    %v667 = vpack.c.b16 %v603, %v595
    %v668 = vpack.c.b16 %v604, %v596
    %v669 = vpack.c.b16 %v605, %v597
    %v670 = vpack.c.b16 %v606, %v598
    %v671 = vpack.c.b16 %v607, %v599
    %v672 = vpack.c.b16 %v608, %v600
    %v673 = vpack.c.b16 %v609, %v601
    %v674 = vpack.c.b16 %v610, %v602
    %739 = vmatprep.subr.bf16.mxu0 %v612
    %740 = vmatpush1.bf16.msra.mxu0 %v611
    %741 = vmatprep.subr.bf16.mxu0 %v620
    %742 = vmatpush1.bf16.msra.mxu0 %v619
    %743 = vmatprep.subr.bf16.mxu0 %v628
    %744 = vmatpush1.bf16.msra.mxu0 %v627
    %745 = vmatprep.subr.bf16.mxu0 %v636
    %746 = vmatpush1.bf16.msra.mxu0 %v635
    %747 = vmatprep.subr.bf16.mxu0 %v644
    %748 = vmatpush1.bf16.msra.mxu0 %v643
    %749 = vmatprep.subr.bf16.mxu0 %v652
    %750 = vmatpush1.bf16.msra.mxu0 %v651
    %751 = vmatprep.subr.bf16.mxu0 %v660
    %752 = vmatpush1.bf16.msra.mxu0 %v659
    %753 = vmatprep.subr.bf16.mxu0 %v668
    %754 = vmatpush1.bf16.msra.mxu0 %v667
    %755 = vmatprep.subr.bf16.mxu0 0
    %756 = vmatpush1.bf16.msra.mxu0 0
    %757 = vmatprep.subr.bf16.mxu0 0
    %758 = vmatpush1.bf16.msra.mxu0 0
    %759 = vmatprep.subr.bf16.mxu0 0
    %760 = vmatpush1.bf16.msra.mxu0 0
    %761 = vmatprep.subr.bf16.mxu0 0
    %762 = vmatpush1.bf16.msra.mxu0 0
    %763 = vmatprep.subr.bf16.mxu0 0
    %764 = vmatpush1.bf16.msra.mxu0 0
    %765 = vmatprep.subr.bf16.mxu0 0
    %766 = vmatpush1.bf16.msra.mxu0 0
    %767 = vmatprep.subr.bf16.mxu0 0
    %768 = vmatpush1.bf16.msra.mxu0 0
    %769 = vmatprep.subr.bf16.mxu0 0
    %770 = vmatpush1.bf16.msra.mxu0 0
    %771 = vmatprep.mubr.bf16.mxu0 0
    %772 = vmatmul.mubr.bf16.gmra.mrb[0].mxu0 %v354
    %v773 = vpop.f32.mrb[0].mxu0
    %v774 = vadd.f32 0.0, %v773
    %v775 = vpop.f32.mrb[0].mxu0
    %v776 = vadd.f32 0.0, %v775
    %v777 = vpop.f32.mrb[0].mxu0
    %v778 = vpop.f32.mrb[0].mxu0
    %779 = vdwg.mxu0
    %780 = vmatprep.subr.bf16.mxu0 %v614
    %781 = vmatpush1.bf16.msra.mxu0 %v613
    %782 = vmatprep.subr.bf16.mxu0 %v622
    %783 = vmatpush1.bf16.msra.mxu0 %v621
    %784 = vmatprep.subr.bf16.mxu0 %v630
    %785 = vmatpush1.bf16.msra.mxu0 %v629
    %786 = vmatprep.subr.bf16.mxu0 %v638
    %787 = vmatpush1.bf16.msra.mxu0 %v637
    %788 = vmatprep.subr.bf16.mxu0 %v646
    %789 = vmatpush1.bf16.msra.mxu0 %v645
    %790 = vmatprep.subr.bf16.mxu0 %v654
    %791 = vmatpush1.bf16.msra.mxu0 %v653
    %792 = vmatprep.subr.bf16.mxu0 %v662
    %793 = vmatpush1.bf16.msra.mxu0 %v661
    %794 = vmatprep.subr.bf16.mxu0 %v670
    %795 = vmatpush1.bf16.msra.mxu0 %v669
    %796 = vmatprep.subr.bf16.mxu0 0
    %797 = vmatpush1.bf16.msra.mxu0 0
    %798 = vmatprep.subr.bf16.mxu0 0
    %799 = vmatpush1.bf16.msra.mxu0 0
    %800 = vmatprep.subr.bf16.mxu0 0
    %801 = vmatpush1.bf16.msra.mxu0 0
    %802 = vmatprep.subr.bf16.mxu0 0
    %803 = vmatpush1.bf16.msra.mxu0 0
    %804 = vmatprep.subr.bf16.mxu0 0
    %805 = vmatpush1.bf16.msra.mxu0 0
    %806 = vmatprep.subr.bf16.mxu0 0
    %807 = vmatpush1.bf16.msra.mxu0 0
    %808 = vmatprep.subr.bf16.mxu0 0
    %809 = vmatpush1.bf16.msra.mxu0 0
    %810 = vmatprep.subr.bf16.mxu0 0
    %811 = vmatpush1.bf16.msra.mxu0 0
    %812 = vmatprep.mubr.bf16.mxu0 0
    %813 = vmatmul.mubr.bf16.gmra.mrb[0].mxu0 %v354
    %v814 = vpop.f32.mrb[0].mxu0
    %v815 = vadd.f32 0.0, %v814
    %v816 = vpop.f32.mrb[0].mxu0
    %v817 = vadd.f32 0.0, %v816
    %v818 = vpop.f32.mrb[0].mxu0
    %v819 = vpop.f32.mrb[0].mxu0
    %820 = vdwg.mxu0
    %821 = vmatprep.subr.bf16.mxu0 %v616
    %822 = vmatpush1.bf16.msra.mxu0 %v615
    %823 = vmatprep.subr.bf16.mxu0 %v624
    %824 = vmatpush1.bf16.msra.mxu0 %v623
    %825 = vmatprep.subr.bf16.mxu0 %v632
    %826 = vmatpush1.bf16.msra.mxu0 %v631
    %827 = vmatprep.subr.bf16.mxu0 %v640
    %828 = vmatpush1.bf16.msra.mxu0 %v639
    %829 = vmatprep.subr.bf16.mxu0 %v648
    %830 = vmatpush1.bf16.msra.mxu0 %v647
    %831 = vmatprep.subr.bf16.mxu0 %v656
    %832 = vmatpush1.bf16.msra.mxu0 %v655
    %833 = vmatprep.subr.bf16.mxu0 %v664
    %834 = vmatpush1.bf16.msra.mxu0 %v663
    %835 = vmatprep.subr.bf16.mxu0 %v672
    %836 = vmatpush1.bf16.msra.mxu0 %v671
    %837 = vmatprep.subr.bf16.mxu0 0
    %838 = vmatpush1.bf16.msra.mxu0 0
    %839 = vmatprep.subr.bf16.mxu0 0
    %840 = vmatpush1.bf16.msra.mxu0 0
    %841 = vmatprep.subr.bf16.mxu0 0
    %842 = vmatpush1.bf16.msra.mxu0 0
    %843 = vmatprep.subr.bf16.mxu0 0
    %844 = vmatpush1.bf16.msra.mxu0 0
    %845 = vmatprep.subr.bf16.mxu0 0
    %846 = vmatpush1.bf16.msra.mxu0 0
    %847 = vmatprep.subr.bf16.mxu0 0
    %848 = vmatpush1.bf16.msra.mxu0 0
    %849 = vmatprep.subr.bf16.mxu0 0
    %850 = vmatpush1.bf16.msra.mxu0 0
    %851 = vmatprep.subr.bf16.mxu0 0
    %852 = vmatpush1.bf16.msra.mxu0 0
    %853 = vmatprep.mubr.bf16.mxu0 0
    %854 = vmatmul.mubr.bf16.gmra.mrb[0].mxu0 %v354
    %v855 = vpop.f32.mrb[0].mxu0
    %v856 = vadd.f32 0.0, %v855
    %v857 = vpop.f32.mrb[0].mxu0
    %v858 = vadd.f32 0.0, %v857
    %v859 = vpop.f32.mrb[0].mxu0
    %v860 = vpop.f32.mrb[0].mxu0
    %861 = vdwg.mxu0
    %862 = vmatprep.subr.bf16.mxu0 %v618
    %863 = vmatpush1.bf16.msra.mxu0 %v617
    %864 = vmatprep.subr.bf16.mxu0 %v626
    %865 = vmatpush1.bf16.msra.mxu0 %v625
    %866 = vmatprep.subr.bf16.mxu0 %v634
    %867 = vmatpush1.bf16.msra.mxu0 %v633
    %868 = vmatprep.subr.bf16.mxu0 %v642
    %869 = vmatpush1.bf16.msra.mxu0 %v641
    %870 = vmatprep.subr.bf16.mxu0 %v650
    %871 = vmatpush1.bf16.msra.mxu0 %v649
    %872 = vmatprep.subr.bf16.mxu0 %v658
    %873 = vmatpush1.bf16.msra.mxu0 %v657
    %874 = vmatprep.subr.bf16.mxu0 %v666
    %875 = vmatpush1.bf16.msra.mxu0 %v665
    %876 = vmatprep.subr.bf16.mxu0 %v674
    %877 = vmatpush1.bf16.msra.mxu0 %v673
    %878 = vmatprep.subr.bf16.mxu0 0
    %879 = vmatpush1.bf16.msra.mxu0 0
    %880 = vmatprep.subr.bf16.mxu0 0
    %881 = vmatpush1.bf16.msra.mxu0 0
    %882 = vmatprep.subr.bf16.mxu0 0
    %883 = vmatpush1.bf16.msra.mxu0 0
    %884 = vmatprep.subr.bf16.mxu0 0
    %885 = vmatpush1.bf16.msra.mxu0 0
    %886 = vmatprep.subr.bf16.mxu0 0
    %887 = vmatpush1.bf16.msra.mxu0 0
    %888 = vmatprep.subr.bf16.mxu0 0
    %889 = vmatpush1.bf16.msra.mxu0 0
    %890 = vmatprep.subr.bf16.mxu0 0
    %891 = vmatpush1.bf16.msra.mxu0 0
    %892 = vmatprep.subr.bf16.mxu0 0
    %893 = vmatpush1.bf16.msra.mxu0 0
    %894 = vmatprep.mubr.bf16.mxu0 0
    %895 = vmatmul.mubr.bf16.gmra.mrb[0].mxu0 %v354
    %v896 = vpop.f32.mrb[0].mxu0
    %v897 = vadd.f32 0.0, %v896
    %v898 = vpop.f32.mrb[0].mxu0
    %v899 = vadd.f32 0.0, %v898
    %v900 = vpop.f32.mrb[0].mxu0
    %v901 = vpop.f32.mrb[0].mxu0
    %902 = vdwg.mxu0
    %v903 = vld [vmem:[#allocation6] sm:$0xff]
    %v904 = vld [vmem:[#allocation6 + $0x8] sm:$0xff]
    %v905 = vld [vmem:[#allocation6 + $0x10] sm:$0xff]
    %v906 = vld [vmem:[#allocation6 + $0x18] sm:$0xff]
    %v907 = vld [vmem:[#allocation6 + $0x20] sm:$0xff]
    %v908 = vld [vmem:[#allocation6 + $0x28] sm:$0xff]
    %v909 = vld [vmem:[#allocation6 + $0x30] sm:$0xff]
    %v910 = vld [vmem:[#allocation6 + $0x38] sm:$0xff]
    %v911 = vld [vmem:[#allocation6 + $0x40] sm:$0xff]
    %v912 = vld [vmem:[#allocation6 + $0x48] sm:$0xff]
    %v913 = vld [vmem:[#allocation6 + $0x50] sm:$0xff]
    %v914 = vld [vmem:[#allocation6 + $0x58] sm:$0xff]
    %v915 = vld [vmem:[#allocation6 + $0x60] sm:$0xff]
    %v916 = vld [vmem:[#allocation6 + $0x68] sm:$0xff]
    %v917 = vld [vmem:[#allocation6 + $0x70] sm:$0xff]
    %v918 = vld [vmem:[#allocation6 + $0x78] sm:$0xff]
    %v919 = vld [vmem:[#allocation6 + $0x80] sm:$0xff]
    %v920 = vld [vmem:[#allocation6 + $0x88] sm:$0xff]
    %v921 = vld [vmem:[#allocation6 + $0x90] sm:$0xff]
    %v922 = vld [vmem:[#allocation6 + $0x98] sm:$0xff]
    %v923 = vld [vmem:[#allocation6 + $0xa0] sm:$0xff]
    %v924 = vld [vmem:[#allocation6 + $0xa8] sm:$0xff]
    %v925 = vld [vmem:[#allocation6 + $0xb0] sm:$0xff]
    %v926 = vld [vmem:[#allocation6 + $0xb8] sm:$0xff]
    %v927 = vld [vmem:[#allocation6 + $0xc0] sm:$0xff]
    %v928 = vld [vmem:[#allocation6 + $0xc8] sm:$0xff]
    %v929 = vld [vmem:[#allocation6 + $0xd0] sm:$0xff]
    %v930 = vld [vmem:[#allocation6 + $0xd8] sm:$0xff]
    %v931 = vld [vmem:[#allocation6 + $0xe0] sm:$0xff]
    %v932 = vld [vmem:[#allocation6 + $0xe8] sm:$0xff]
    %v933 = vld [vmem:[#allocation6 + $0xf0] sm:$0xff]
    %v934 = vld [vmem:[#allocation6 + $0xf8] sm:$0xff]
    %v967 = vunpack.c.l.b16 %v903
    %v968 = vunpack.c.h.b16 %v903
    %v969 = vunpack.c.l.b16 %v904
    %v970 = vunpack.c.h.b16 %v904
    %v971 = vunpack.c.l.b16 %v905
    %v972 = vunpack.c.h.b16 %v905
    %v973 = vunpack.c.l.b16 %v906
    %v974 = vunpack.c.h.b16 %v906
    %v975 = vunpack.c.l.b16 %v907
    %v976 = vunpack.c.h.b16 %v907
    %v977 = vunpack.c.l.b16 %v908
    %v978 = vunpack.c.h.b16 %v908
    %v979 = vunpack.c.l.b16 %v909
    %v980 = vunpack.c.h.b16 %v909
    %v981 = vunpack.c.l.b16 %v910
    %v982 = vunpack.c.h.b16 %v910
    %v983 = vunpack.c.l.b16 %v911
    %v984 = vunpack.c.h.b16 %v911
    %v985 = vunpack.c.l.b16 %v912
    %v986 = vunpack.c.h.b16 %v912
    %v987 = vunpack.c.l.b16 %v913
    %v988 = vunpack.c.h.b16 %v913
    %v989 = vunpack.c.l.b16 %v914
    %v990 = vunpack.c.h.b16 %v914
    %v991 = vunpack.c.l.b16 %v915
    %v992 = vunpack.c.h.b16 %v915
    %v993 = vunpack.c.l.b16 %v916
    %v994 = vunpack.c.h.b16 %v916
    %v995 = vunpack.c.l.b16 %v917
    %v996 = vunpack.c.h.b16 %v917
    %v997 = vunpack.c.l.b16 %v918
    %v998 = vunpack.c.h.b16 %v918
    %v999 = vunpack.c.l.b16 %v919
    %v1000 = vunpack.c.h.b16 %v919
    %v1001 = vunpack.c.l.b16 %v920
    %v1002 = vunpack.c.h.b16 %v920
    %v1003 = vunpack.c.l.b16 %v921
    %v1004 = vunpack.c.h.b16 %v921
    %v1005 = vunpack.c.l.b16 %v922
    %v1006 = vunpack.c.h.b16 %v922
    %v1007 = vunpack.c.l.b16 %v923
    %v1008 = vunpack.c.h.b16 %v923
    %v1009 = vunpack.c.l.b16 %v924
    %v1010 = vunpack.c.h.b16 %v924
    %v1011 = vunpack.c.l.b16 %v925
    %v1012 = vunpack.c.h.b16 %v925
    %v1013 = vunpack.c.l.b16 %v926
    %v1014 = vunpack.c.h.b16 %v926
    %v1015 = vunpack.c.l.b16 %v927
    %v1016 = vunpack.c.h.b16 %v927
    %v1017 = vunpack.c.l.b16 %v928
    %v1018 = vunpack.c.h.b16 %v928
    %v1019 = vunpack.c.l.b16 %v929
    %v1020 = vunpack.c.h.b16 %v929
    %v1021 = vunpack.c.l.b16 %v930
    %v1022 = vunpack.c.h.b16 %v930
    %v1023 = vunpack.c.l.b16 %v931
    %v1024 = vunpack.c.h.b16 %v931
    %v1025 = vunpack.c.l.b16 %v932
    %v1026 = vunpack.c.h.b16 %v932
    %v1027 = vunpack.c.l.b16 %v933
    %v1028 = vunpack.c.h.b16 %v933
    %v1029 = vunpack.c.l.b16 %v934
    %v1030 = vunpack.c.h.b16 %v934
    %v1031 = vpack.c.b16 %v971, %v967
    %v1032 = vpack.c.b16 %v972, %v968
    %v1033 = vpack.c.b16 %v973, %v969
    %v1034 = vpack.c.b16 %v974, %v970
    %v1035 = vpack.c.b16 %v979, %v975
    %v1036 = vpack.c.b16 %v980, %v976
    %v1037 = vpack.c.b16 %v981, %v977
    %v1038 = vpack.c.b16 %v982, %v978
    %v1039 = vpack.c.b16 %v987, %v983
    %v1040 = vpack.c.b16 %v988, %v984
    %v1041 = vpack.c.b16 %v989, %v985
    %v1042 = vpack.c.b16 %v990, %v986
    %v1043 = vpack.c.b16 %v995, %v991
    %v1044 = vpack.c.b16 %v996, %v992
    %v1045 = vpack.c.b16 %v997, %v993
    %v1046 = vpack.c.b16 %v998, %v994
    %v1047 = vpack.c.b16 %v1003, %v999
    %v1048 = vpack.c.b16 %v1004, %v1000
    %v1049 = vpack.c.b16 %v1005, %v1001
    %v1050 = vpack.c.b16 %v1006, %v1002
    %v1051 = vpack.c.b16 %v1011, %v1007
    %v1052 = vpack.c.b16 %v1012, %v1008
    %v1053 = vpack.c.b16 %v1013, %v1009
    %v1054 = vpack.c.b16 %v1014, %v1010
    %v1055 = vpack.c.b16 %v1019, %v1015
    %v1056 = vpack.c.b16 %v1020, %v1016
    %v1057 = vpack.c.b16 %v1021, %v1017
    %v1058 = vpack.c.b16 %v1022, %v1018
    %v1059 = vpack.c.b16 %v1027, %v1023
    %v1060 = vpack.c.b16 %v1028, %v1024
    %v1061 = vpack.c.b16 %v1029, %v1025
    %v1062 = vpack.c.b16 %v1030, %v1026
    %1095 = vmatprep.subr.bf16.mxu0 %v1032
    %1096 = vmatpush1.bf16.msra.mxu0 %v1031
    %1097 = vmatprep.subr.bf16.mxu0 %v1036
    %1098 = vmatpush1.bf16.msra.mxu0 %v1035
    %1099 = vmatprep.subr.bf16.mxu0 %v1040
    %1100 = vmatpush1.bf16.msra.mxu0 %v1039
    %1101 = vmatprep.subr.bf16.mxu0 %v1044
    %1102 = vmatpush1.bf16.msra.mxu0 %v1043
    %1103 = vmatprep.subr.bf16.mxu0 %v1048
    %1104 = vmatpush1.bf16.msra.mxu0 %v1047
    %1105 = vmatprep.subr.bf16.mxu0 %v1052
    %1106 = vmatpush1.bf16.msra.mxu0 %v1051
    %1107 = vmatprep.subr.bf16.mxu0 %v1056
    %1108 = vmatpush1.bf16.msra.mxu0 %v1055
    %1109 = vmatprep.subr.bf16.mxu0 %v1060
    %1110 = vmatpush1.bf16.msra.mxu0 %v1059
    %1111 = vmatprep.subr.bf16.mxu0 0
    %1112 = vmatpush1.bf16.msra.mxu0 0
    %1113 = vmatprep.subr.bf16.mxu0 0
    %1114 = vmatpush1.bf16.msra.mxu0 0
    %1115 = vmatprep.subr.bf16.mxu0 0
    %1116 = vmatpush1.bf16.msra.mxu0 0
    %1117 = vmatprep.subr.bf16.mxu0 0
    %1118 = vmatpush1.bf16.msra.mxu0 0
    %1119 = vmatprep.subr.bf16.mxu0 0
    %1120 = vmatpush1.bf16.msra.mxu0 0
    %1121 = vmatprep.subr.bf16.mxu0 0
    %1122 = vmatpush1.bf16.msra.mxu0 0
    %1123 = vmatprep.subr.bf16.mxu0 0
    %1124 = vmatpush1.bf16.msra.mxu0 0
    %1125 = vmatprep.subr.bf16.mxu0 0
    %1126 = vmatpush1.bf16.msra.mxu0 0
    %1127 = vmatprep.mubr.bf16.mxu0 0
    %1128 = vmatmul.mubr.bf16.gmra.mrb[0].mxu0 0
    %v1129 = vpop.f32.mrb[0].mxu0
    %v1130 = vadd.f32 0.0, %v1129
    %v1131 = vpop.f32.mrb[0].mxu0
    %v1132 = vadd.f32 0.0, %v1131
    %v1133 = vpop.f32.mrb[0].mxu0
    %v1134 = vpop.f32.mrb[0].mxu0
    %1135 = vdwg.mxu0
    %1136 = vmatprep.subr.bf16.mxu0 %v1034
    %1137 = vmatpush1.bf16.msra.mxu0 %v1033
    %1138 = vmatprep.subr.bf16.mxu0 %v1038
    %1139 = vmatpush1.bf16.msra.mxu0 %v1037
    %1140 = vmatprep.subr.bf16.mxu0 %v1042
    %1141 = vmatpush1.bf16.msra.mxu0 %v1041
    %1142 = vmatprep.subr.bf16.mxu0 %v1046
    %1143 = vmatpush1.bf16.msra.mxu0 %v1045
    %1144 = vmatprep.subr.bf16.mxu0 %v1050
    %1145 = vmatpush1.bf16.msra.mxu0 %v1049
    %1146 = vmatprep.subr.bf16.mxu0 %v1054
    %1147 = vmatpush1.bf16.msra.mxu0 %v1053
    %1148 = vmatprep.subr.bf16.mxu0 %v1058
    %1149 = vmatpush1.bf16.msra.mxu0 %v1057
    %1150 = vmatprep.subr.bf16.mxu0 %v1062
    %1151 = vmatpush1.bf16.msra.mxu0 %v1061
    %1152 = vmatprep.subr.bf16.mxu0 0
    %1153 = vmatpush1.bf16.msra.mxu0 0
    %1154 = vmatprep.subr.bf16.mxu0 0
    %1155 = vmatpush1.bf16.msra.mxu0 0
    %1156 = vmatprep.subr.bf16.mxu0 0
    %1157 = vmatpush1.bf16.msra.mxu0 0
    %1158 = vmatprep.subr.bf16.mxu0 0
    %1159 = vmatpush1.bf16.msra.mxu0 0
    %1160 = vmatprep.subr.bf16.mxu0 0
    %1161 = vmatpush1.bf16.msra.mxu0 0
    %1162 = vmatprep.subr.bf16.mxu0 0
    %1163 = vmatpush1.bf16.msra.mxu0 0
    %1164 = vmatprep.subr.bf16.mxu0 0
    %1165 = vmatpush1.bf16.msra.mxu0 0
    %1166 = vmatprep.subr.bf16.mxu0 0
    %1167 = vmatpush1.bf16.msra.mxu0 0
    %1168 = vmatprep.mubr.bf16.mxu0 0
    %1169 = vmatmul.mubr.bf16.gmra.mrb[0].mxu0 0
    %v1170 = vpop.f32.mrb[0].mxu0
    %v1171 = vadd.f32 0.0, %v1170
    %v1172 = vpop.f32.mrb[0].mxu0
    %v1173 = vadd.f32 0.0, %v1172
    %v1174 = vpop.f32.mrb[0].mxu0
    %v1175 = vpop.f32.mrb[0].mxu0
    %1176 = vdwg.mxu0
    %s1177 = smul.u32 1, 4
    %s1178 = smul.addr %s1177, 8
    %s1179 = scalar_lea.vmem [#allocation2], %s1178
    %v1180 = vld [vmem:[%s1179] sm:$0xff]
    %v1181 = vld [vmem:[%s1179 + $0x8] sm:$0xff]
    %v1182 = vld [vmem:[%s1179 + $0x10] sm:$0xff]
    %v1183 = vld [vmem:[%s1179 + $0x18] sm:$0xff]
    %v1184 = vadd.f32 %v774, %v1180
    %v1185 = vadd.f32 %v776, %v1181
    %v1186 = vadd.f32 %v815, %v1182
    %v1187 = vadd.f32 %v817, %v1183
    %v1188 = vadd.f32 %v856, %v1130
    %v1189 = vadd.f32 %v858, %v1132
    %v1190 = vadd.f32 %v897, %v1171
    %v1191 = vadd.f32 %v899, %v1173
    %v1193 = vlaneseq
    %v1194 = vshrl.u32 %v1193, 7
    %v1195 = vsub.s32 0, %v1194
    %v1196 = vrot.slane %v325, %v1195
    %v1197 = vlaneseq
    %v1198 = vshrl.u32 %v1197, 7
    %v1199 = vsub.s32 1, %v1198
    %v1200 = vrot.slane %v325, %v1199
    %v1201 = vlaneseq
    %v1202 = vshrl.u32 %v1201, 7
    %v1203 = vsub.s32 2, %v1202
    %v1204 = vrot.slane %v325, %v1203
    %v1205 = vlaneseq
    %v1206 = vshrl.u32 %v1205, 7
    %v1207 = vsub.s32 3, %v1206
    %v1208 = vrot.slane %v325, %v1207
    %v1213 = vadd.f32 %v1188, %v1196
    %v1214 = vadd.f32 %v1189, %v1200
    %v1215 = vadd.f32 %v1190, %v1204
    %v1216 = vadd.f32 %v1191, %v1208
    %v1217 = vxor.u32 %v1213, 2147483648
    %v1218 = vmul.f32 %v1217, 1.442695
    %v1219 = vpow.pop %v1218
    %v1220 = vadd.f32 %v1219, 1.0
    %v1221 = vrcp.pop %v1220
    %v1222 = vmul.f32 1.0, %v1221
    %v1223 = vxor.u32 %v1214, 2147483648
    %v1224 = vmul.f32 %v1223, 1.442695
    %v1225 = vpow.pop %v1224
    %v1226 = vadd.f32 %v1225, 1.0
    %v1227 = vrcp.pop %v1226
    %v1228 = vmul.f32 1.0, %v1227
    %v1229 = vtanh.pop %v1215
    %v1230 = vxor.u32 %v1216, 2147483648
    %v1231 = vmul.f32 %v1230, 1.442695
    %v1232 = vpow.pop %v1231
    %v1233 = vadd.f32 %v1232, 1.0
    %v1234 = vrcp.pop %v1233
    %v1235 = vmul.f32 1.0, %v1234
    %v1236 = vmul.f32 %v1228, 0.0
    %v1237 = vmul.f32 %v1222, %v1229
    %v1238 = vadd.f32 %v1236, %v1237
    %v1239 = vtanh.pop %v1238
    %v1240 = vmul.f32 %v1235, %v1239
    %v1241 = vxor.u32 %v1184, 2147483648
    %v1242 = vmul.f32 %v1241, 1.442695
    %v1243 = vpow.pop %v1242
    %v1244 = vadd.f32 %v1243, 1.0
    %v1245 = vrcp.pop %v1244
    %v1246 = vmul.f32 1.0, %v1245
    %v1247 = vxor.u32 %v1185, 2147483648
    %v1248 = vmul.f32 %v1247, 1.442695
    %v1249 = vpow.pop %v1248
    %v1250 = vadd.f32 %v1249, 1.0
    %v1251 = vrcp.pop %v1250
    %v1252 = vmul.f32 1.0, %v1251
    %v1253 = vtanh.pop %v1186
    %v1254 = vxor.u32 %v1187, 2147483648
    %v1255 = vmul.f32 %v1254, 1.442695
    %v1256 = vpow.pop %v1255
    %v1257 = vadd.f32 %v1256, 1.0
    %v1258 = vrcp.pop %v1257
    %v1259 = vmul.f32 1.0, %v1258
    %v1260 = vmul.f32 %v1252, %v351
    %v1261 = vmul.f32 %v1246, %v1253
    %v1262 = vadd.f32 %v1260, %v1261
    %v1263 = vtanh.pop %v1262
    %v1264 = vmul.f32 %v1259, %v1263
    %v1265 = vpack.c.bf16 %v1264, %v1264
    %1266 = vmatprep.subr.bf16.mxu0 %v612
    %1267 = vmatpush1.bf16.msra.mxu0 %v611
    %1268 = vmatprep.subr.bf16.mxu0 %v620
    %1269 = vmatpush1.bf16.msra.mxu0 %v619
    %1270 = vmatprep.subr.bf16.mxu0 %v628
    %1271 = vmatpush1.bf16.msra.mxu0 %v627
    %1272 = vmatprep.subr.bf16.mxu0 %v636
    %1273 = vmatpush1.bf16.msra.mxu0 %v635
    %1274 = vmatprep.subr.bf16.mxu0 %v644
    %1275 = vmatpush1.bf16.msra.mxu0 %v643
    %1276 = vmatprep.subr.bf16.mxu0 %v652
    %1277 = vmatpush1.bf16.msra.mxu0 %v651
    %1278 = vmatprep.subr.bf16.mxu0 %v660
    %1279 = vmatpush1.bf16.msra.mxu0 %v659
    %1280 = vmatprep.subr.bf16.mxu0 %v668
    %1281 = vmatpush1.bf16.msra.mxu0 %v667
    %1282 = vmatprep.subr.bf16.mxu0 0
    %1283 = vmatpush1.bf16.msra.mxu0 0
    %1284 = vmatprep.subr.bf16.mxu0 0
    %1285 = vmatpush1.bf16.msra.mxu0 0
    %1286 = vmatprep.subr.bf16.mxu0 0
    %1287 = vmatpush1.bf16.msra.mxu0 0
    %1288 = vmatprep.subr.bf16.mxu0 0
    %1289 = vmatpush1.bf16.msra.mxu0 0
    %1290 = vmatprep.subr.bf16.mxu0 0
    %1291 = vmatpush1.bf16.msra.mxu0 0
    %1292 = vmatprep.subr.bf16.mxu0 0
    %1293 = vmatpush1.bf16.msra.mxu0 0
    %1294 = vmatprep.subr.bf16.mxu0 0
    %1295 = vmatpush1.bf16.msra.mxu0 0
    %1296 = vmatprep.subr.bf16.mxu0 0
    %1297 = vmatpush1.bf16.msra.mxu0 0
    %1298 = vmatprep.mubr.bf16.mxu0 0
    %1299 = vmatmul.mubr.bf16.gmra.mrb[0].mxu0 %v1265
    %v1300 = vpop.f32.mrb[0].mxu0
    %v1301 = vadd.f32 0.0, %v1300
    %v1302 = vpop.f32.mrb[0].mxu0
    %v1303 = vadd.f32 0.0, %v1302
    %v1304 = vpop.f32.mrb[0].mxu0
    %v1305 = vpop.f32.mrb[0].mxu0
    %1306 = vdwg.mxu0
    %1307 = vmatprep.subr.bf16.mxu0 %v614
    %1308 = vmatpush1.bf16.msra.mxu0 %v613
    %1309 = vmatprep.subr.bf16.mxu0 %v622
    %1310 = vmatpush1.bf16.msra.mxu0 %v621
    %1311 = vmatprep.subr.bf16.mxu0 %v630
    %1312 = vmatpush1.bf16.msra.mxu0 %v629
    %1313 = vmatprep.subr.bf16.mxu0 %v638
    %1314 = vmatpush1.bf16.msra.mxu0 %v637
    %1315 = vmatprep.subr.bf16.mxu0 %v646
    %1316 = vmatpush1.bf16.msra.mxu0 %v645
    %1317 = vmatprep.subr.bf16.mxu0 %v654
    %1318 = vmatpush1.bf16.msra.mxu0 %v653
    %1319 = vmatprep.subr.bf16.mxu0 %v662
    %1320 = vmatpush1.bf16.msra.mxu0 %v661
    %1321 = vmatprep.subr.bf16.mxu0 %v670
    %1322 = vmatpush1.bf16.msra.mxu0 %v669
    %1323 = vmatprep.subr.bf16.mxu0 0
    %1324 = vmatpush1.bf16.msra.mxu0 0
    %1325 = vmatprep.subr.bf16.mxu0 0
    %1326 = vmatpush1.bf16.msra.mxu0 0
    %1327 = vmatprep.subr.bf16.mxu0 0
    %1328 = vmatpush1.bf16.msra.mxu0 0
    %1329 = vmatprep.subr.bf16.mxu0 0
    %1330 = vmatpush1.bf16.msra.mxu0 0
    %1331 = vmatprep.subr.bf16.mxu0 0
    %1332 = vmatpush1.bf16.msra.mxu0 0
    %1333 = vmatprep.subr.bf16.mxu0 0
    %1334 = vmatpush1.bf16.msra.mxu0 0
    %1335 = vmatprep.subr.bf16.mxu0 0
    %1336 = vmatpush1.bf16.msra.mxu0 0
    %1337 = vmatprep.subr.bf16.mxu0 0
    %1338 = vmatpush1.bf16.msra.mxu0 0
    %1339 = vmatprep.mubr.bf16.mxu0 0
    %1340 = vmatmul.mubr.bf16.gmra.mrb[0].mxu0 %v1265
    %v1341 = vpop.f32.mrb[0].mxu0
    %v1342 = vadd.f32 0.0, %v1341
    %v1343 = vpop.f32.mrb[0].mxu0
    %v1344 = vadd.f32 0.0, %v1343
    %v1345 = vpop.f32.mrb[0].mxu0
    %v1346 = vpop.f32.mrb[0].mxu0
    %1347 = vdwg.mxu0
    %1348 = vmatprep.subr.bf16.mxu0 %v616
    %1349 = vmatpush1.bf16.msra.mxu0 %v615
    %1350 = vmatprep.subr.bf16.mxu0 %v624
    %1351 = vmatpush1.bf16.msra.mxu0 %v623
    %1352 = vmatprep.subr.bf16.mxu0 %v632
    %1353 = vmatpush1.bf16.msra.mxu0 %v631
    %1354 = vmatprep.subr.bf16.mxu0 %v640
    %1355 = vmatpush1.bf16.msra.mxu0 %v639
    %1356 = vmatprep.subr.bf16.mxu0 %v648
    %1357 = vmatpush1.bf16.msra.mxu0 %v647
    %1358 = vmatprep.subr.bf16.mxu0 %v656
    %1359 = vmatpush1.bf16.msra.mxu0 %v655
    %1360 = vmatprep.subr.bf16.mxu0 %v664
    %1361 = vmatpush1.bf16.msra.mxu0 %v663
    %1362 = vmatprep.subr.bf16.mxu0 %v672
    %1363 = vmatpush1.bf16.msra.mxu0 %v671
    %1364 = vmatprep.subr.bf16.mxu0 0
    %1365 = vmatpush1.bf16.msra.mxu0 0
    %1366 = vmatprep.subr.bf16.mxu0 0
    %1367 = vmatpush1.bf16.msra.mxu0 0
    %1368 = vmatprep.subr.bf16.mxu0 0
    %1369 = vmatpush1.bf16.msra.mxu0 0
    %1370 = vmatprep.subr.bf16.mxu0 0
    %1371 = vmatpush1.bf16.msra.mxu0 0
    %1372 = vmatprep.subr.bf16.mxu0 0
    %1373 = vmatpush1.bf16.msra.mxu0 0
    %1374 = vmatprep.subr.bf16.mxu0 0
    %1375 = vmatpush1.bf16.msra.mxu0 0
    %1376 = vmatprep.subr.bf16.mxu0 0
    %1377 = vmatpush1.bf16.msra.mxu0 0
    %1378 = vmatprep.subr.bf16.mxu0 0
    %1379 = vmatpush1.bf16.msra.mxu0 0
    %1380 = vmatprep.mubr.bf16.mxu0 0
    %1381 = vmatmul.mubr.bf16.gmra.mrb[0].mxu0 %v1265
    %v1382 = vpop.f32.mrb[0].mxu0
    %v1383 = vadd.f32 0.0, %v1382
    %v1384 = vpop.f32.mrb[0].mxu0
    %v1385 = vadd.f32 0.0, %v1384
    %v1386 = vpop.f32.mrb[0].mxu0
    %v1387 = vpop.f32.mrb[0].mxu0
    %1388 = vdwg.mxu0
    %1389 = vmatprep.subr.bf16.mxu0 %v618
    %1390 = vmatpush1.bf16.msra.mxu0 %v617
    %1391 = vmatprep.subr.bf16.mxu0 %v626
    %1392 = vmatpush1.bf16.msra.mxu0 %v625
    %1393 = vmatprep.subr.bf16.mxu0 %v634
    %1394 = vmatpush1.bf16.msra.mxu0 %v633
    %1395 = vmatprep.subr.bf16.mxu0 %v642
    %1396 = vmatpush1.bf16.msra.mxu0 %v641
    %1397 = vmatprep.subr.bf16.mxu0 %v650
    %1398 = vmatpush1.bf16.msra.mxu0 %v649
    %1399 = vmatprep.subr.bf16.mxu0 %v658
    %1400 = vmatpush1.bf16.msra.mxu0 %v657
    %1401 = vmatprep.subr.bf16.mxu0 %v666
    %1402 = vmatpush1.bf16.msra.mxu0 %v665
    %1403 = vmatprep.subr.bf16.mxu0 %v674
    %1404 = vmatpush1.bf16.msra.mxu0 %v673
    %1405 = vmatprep.subr.bf16.mxu0 0
    %1406 = vmatpush1.bf16.msra.mxu0 0
    %1407 = vmatprep.subr.bf16.mxu0 0
    %1408 = vmatpush1.bf16.msra.mxu0 0
    %1409 = vmatprep.subr.bf16.mxu0 0
    %1410 = vmatpush1.bf16.msra.mxu0 0
    %1411 = vmatprep.subr.bf16.mxu0 0
    %1412 = vmatpush1.bf16.msra.mxu0 0
    %1413 = vmatprep.subr.bf16.mxu0 0
    %1414 = vmatpush1.bf16.msra.mxu0 0
    %1415 = vmatprep.subr.bf16.mxu0 0
    %1416 = vmatpush1.bf16.msra.mxu0 0
    %1417 = vmatprep.subr.bf16.mxu0 0
    %1418 = vmatpush1.bf16.msra.mxu0 0
    %1419 = vmatprep.subr.bf16.mxu0 0
    %1420 = vmatpush1.bf16.msra.mxu0 0
    %1421 = vmatprep.mubr.bf16.mxu0 0
    %1422 = vmatmul.mubr.bf16.gmra.mrb[0].mxu0 %v1265
    %v1423 = vpop.f32.mrb[0].mxu0
    %v1424 = vadd.f32 0.0, %v1423
    %v1425 = vpop.f32.mrb[0].mxu0
    %v1426 = vadd.f32 0.0, %v1425
    %v1427 = vpop.f32.mrb[0].mxu0
    %v1428 = vpop.f32.mrb[0].mxu0
    %1429 = vdwg.mxu0
    %v1430 = vpack.c.bf16 %v1240, %v1240
    %1431 = vmatprep.subr.bf16.mxu0 %v1032
    %1432 = vmatpush1.bf16.msra.mxu0 %v1031
    %1433 = vmatprep.subr.bf16.mxu0 %v1036
    %1434 = vmatpush1.bf16.msra.mxu0 %v1035
    %1435 = vmatprep.subr.bf16.mxu0 %v1040
    %1436 = vmatpush1.bf16.msra.mxu0 %v1039
    %1437 = vmatprep.subr.bf16.mxu0 %v1044
    %1438 = vmatpush1.bf16.msra.mxu0 %v1043
    %1439 = vmatprep.subr.bf16.mxu0 %v1048
    %1440 = vmatpush1.bf16.msra.mxu0 %v1047
    %1441 = vmatprep.subr.bf16.mxu0 %v1052
    %1442 = vmatpush1.bf16.msra.mxu0 %v1051
    %1443 = vmatprep.subr.bf16.mxu0 %v1056
    %1444 = vmatpush1.bf16.msra.mxu0 %v1055
    %1445 = vmatprep.subr.bf16.mxu0 %v1060
    %1446 = vmatpush1.bf16.msra.mxu0 %v1059
    %1447 = vmatprep.subr.bf16.mxu0 0
    %1448 = vmatpush1.bf16.msra.mxu0 0
    %1449 = vmatprep.subr.bf16.mxu0 0
    %1450 = vmatpush1.bf16.msra.mxu0 0
    %1451 = vmatprep.subr.bf16.mxu0 0
    %1452 = vmatpush1.bf16.msra.mxu0 0
    %1453 = vmatprep.subr.bf16.mxu0 0
    %1454 = vmatpush1.bf16.msra.mxu0 0
    %1455 = vmatprep.subr.bf16.mxu0 0
    %1456 = vmatpush1.bf16.msra.mxu0 0
    %1457 = vmatprep.subr.bf16.mxu0 0
    %1458 = vmatpush1.bf16.msra.mxu0 0
    %1459 = vmatprep.subr.bf16.mxu0 0
    %1460 = vmatpush1.bf16.msra.mxu0 0
    %1461 = vmatprep.subr.bf16.mxu0 0
    %1462 = vmatpush1.bf16.msra.mxu0 0
    %1463 = vmatprep.mubr.bf16.mxu0 0
    %1464 = vmatmul.mubr.bf16.gmra.mrb[0].mxu0 %v1430
    %v1465 = vpop.f32.mrb[0].mxu0
    %v1466 = vadd.f32 0.0, %v1465
    %v1467 = vpop.f32.mrb[0].mxu0
    %v1468 = vadd.f32 0.0, %v1467
    %v1469 = vpop.f32.mrb[0].mxu0
    %v1470 = vpop.f32.mrb[0].mxu0
    %1471 = vdwg.mxu0
    %1472 = vmatprep.subr.bf16.mxu0 %v1034
    %1473 = vmatpush1.bf16.msra.mxu0 %v1033
    %1474 = vmatprep.subr.bf16.mxu0 %v1038
    %1475 = vmatpush1.bf16.msra.mxu0 %v1037
    %1476 = vmatprep.subr.bf16.mxu0 %v1042
    %1477 = vmatpush1.bf16.msra.mxu0 %v1041
    %1478 = vmatprep.subr.bf16.mxu0 %v1046
    %1479 = vmatpush1.bf16.msra.mxu0 %v1045
    %1480 = vmatprep.subr.bf16.mxu0 %v1050
    %1481 = vmatpush1.bf16.msra.mxu0 %v1049
    %1482 = vmatprep.subr.bf16.mxu0 %v1054
    %1483 = vmatpush1.bf16.msra.mxu0 %v1053
    %1484 = vmatprep.subr.bf16.mxu0 %v1058
    %1485 = vmatpush1.bf16.msra.mxu0 %v1057
    %1486 = vmatprep.subr.bf16.mxu0 %v1062
    %1487 = vmatpush1.bf16.msra.mxu0 %v1061
    %1488 = vmatprep.subr.bf16.mxu0 0
    %1489 = vmatpush1.bf16.msra.mxu0 0
    %1490 = vmatprep.subr.bf16.mxu0 0
    %1491 = vmatpush1.bf16.msra.mxu0 0
    %1492 = vmatprep.subr.bf16.mxu0 0
    %1493 = vmatpush1.bf16.msra.mxu0 0
    %1494 = vmatprep.subr.bf16.mxu0 0
    %1495 = vmatpush1.bf16.msra.mxu0 0
    %1496 = vmatprep.subr.bf16.mxu0 0
    %1497 = vmatpush1.bf16.msra.mxu0 0
    %1498 = vmatprep.subr.bf16.mxu0 0
    %1499 = vmatpush1.bf16.msra.mxu0 0
    %1500 = vmatprep.subr.bf16.mxu0 0
    %1501 = vmatpush1.bf16.msra.mxu0 0
    %1502 = vmatprep.subr.bf16.mxu0 0
    %1503 = vmatpush1.bf16.msra.mxu0 0
    %1504 = vmatprep.mubr.bf16.mxu0 0
    %1505 = vmatmul.mubr.bf16.gmra.mrb[0].mxu0 %v1430
    %v1506 = vpop.f32.mrb[0].mxu0
    %v1507 = vadd.f32 0.0, %v1506
    %v1508 = vpop.f32.mrb[0].mxu0
    %v1509 = vadd.f32 0.0, %v1508
    %v1510 = vpop.f32.mrb[0].mxu0
    %v1511 = vpop.f32.mrb[0].mxu0
    %1512 = vdwg.mxu0
    %s1513 = smul.u32 2, 4
    %s1514 = smul.addr %s1513, 8
    %s1515 = scalar_lea.vmem [#allocation2], %s1514
    %v1516 = vld [vmem:[%s1515] sm:$0xff]
    %v1517 = vld [vmem:[%s1515 + $0x8] sm:$0xff]
    %v1518 = vld [vmem:[%s1515 + $0x10] sm:$0xff]
    %v1519 = vld [vmem:[%s1515 + $0x18] sm:$0xff]
    %v1520 = vadd.f32 %v1301, %v1516
    %v1521 = vadd.f32 %v1303, %v1517
    %v1522 = vadd.f32 %v1342, %v1518
    %v1523 = vadd.f32 %v1344, %v1519
    %v1524 = vadd.f32 %v1383, %v1466
    %v1525 = vadd.f32 %v1385, %v1468
    %v1526 = vadd.f32 %v1424, %v1507
    %v1527 = vadd.f32 %v1426, %v1509
    %v1528 = vadd.f32 %v1524, %v1196
    %v1529 = vadd.f32 %v1525, %v1200
    %v1530 = vadd.f32 %v1526, %v1204
    %v1531 = vadd.f32 %v1527, %v1208
    %v1532 = vxor.u32 %v1528, 2147483648
    %v1533 = vmul.f32 %v1532, 1.442695
    %v1534 = vpow.pop %v1533
    %v1535 = vadd.f32 %v1534, 1.0
    %v1536 = vrcp.pop %v1535
    %v1537 = vmul.f32 1.0, %v1536
    %v1538 = vxor.u32 %v1529, 2147483648
    %v1539 = vmul.f32 %v1538, 1.442695
    %v1540 = vpow.pop %v1539
    %v1541 = vadd.f32 %v1540, 1.0
    %v1542 = vrcp.pop %v1541
    %v1543 = vmul.f32 1.0, %v1542
    %v1544 = vtanh.pop %v1530
    %v1545 = vxor.u32 %v1531, 2147483648
    %v1546 = vmul.f32 %v1545, 1.442695
    %v1547 = vpow.pop %v1546
    %v1548 = vadd.f32 %v1547, 1.0
    %v1549 = vrcp.pop %v1548
    %v1550 = vmul.f32 1.0, %v1549
    %v1551 = vmul.f32 %v1543, %v1238
    %v1552 = vmul.f32 %v1537, %v1544
    %v1553 = vadd.f32 %v1551, %v1552
    %v1554 = vtanh.pop %v1553
    %v1555 = vmul.f32 %v1550, %v1554
    %v1556 = vxor.u32 %v1520, 2147483648
    %v1557 = vmul.f32 %v1556, 1.442695
    %v1558 = vpow.pop %v1557
    %v1559 = vadd.f32 %v1558, 1.0
    %v1560 = vrcp.pop %v1559
    %v1561 = vmul.f32 1.0, %v1560
    %v1562 = vxor.u32 %v1521, 2147483648
    %v1563 = vmul.f32 %v1562, 1.442695
    %v1564 = vpow.pop %v1563
    %v1565 = vadd.f32 %v1564, 1.0
    %v1566 = vrcp.pop %v1565
    %v1567 = vmul.f32 1.0, %v1566
    %v1568 = vtanh.pop %v1522
    %v1569 = vxor.u32 %v1523, 2147483648
    %v1570 = vmul.f32 %v1569, 1.442695
    %v1571 = vpow.pop %v1570
    %v1572 = vadd.f32 %v1571, 1.0
    %v1573 = vrcp.pop %v1572
    %v1574 = vmul.f32 1.0, %v1573
    %v1575 = vmul.f32 %v1567, %v1262
    %v1576 = vmul.f32 %v1561, %v1568
    %v1577 = vadd.f32 %v1575, %v1576
    %v1578 = vtanh.pop %v1577
    %v1579 = vmul.f32 %v1574, %v1578
    %v1580 = vpack.c.bf16 %v1579, %v1579
    %1581 = vmatprep.subr.bf16.mxu0 %v612
    %1582 = vmatpush1.bf16.msra.mxu0 %v611
    %1583 = vmatprep.subr.bf16.mxu0 %v620
    %1584 = vmatpush1.bf16.msra.mxu0 %v619
    %1585 = vmatprep.subr.bf16.mxu0 %v628
    %1586 = vmatpush1.bf16.msra.mxu0 %v627
    %1587 = vmatprep.subr.bf16.mxu0 %v636
    %1588 = vmatpush1.bf16.msra.mxu0 %v635
    %1589 = vmatprep.subr.bf16.mxu0 %v644
    %1590 = vmatpush1.bf16.msra.mxu0 %v643
    %1591 = vmatprep.subr.bf16.mxu0 %v652
    %1592 = vmatpush1.bf16.msra.mxu0 %v651
    %1593 = vmatprep.subr.bf16.mxu0 %v660
    %1594 = vmatpush1.bf16.msra.mxu0 %v659
    %1595 = vmatprep.subr.bf16.mxu0 %v668
    %1596 = vmatpush1.bf16.msra.mxu0 %v667
    %1597 = vmatprep.subr.bf16.mxu0 0
    %1598 = vmatpush1.bf16.msra.mxu0 0
    %1599 = vmatprep.subr.bf16.mxu0 0
    %1600 = vmatpush1.bf16.msra.mxu0 0
    %1601 = vmatprep.subr.bf16.mxu0 0
    %1602 = vmatpush1.bf16.msra.mxu0 0
    %1603 = vmatprep.subr.bf16.mxu0 0
    %1604 = vmatpush1.bf16.msra.mxu0 0
    %1605 = vmatprep.subr.bf16.mxu0 0
    %1606 = vmatpush1.bf16.msra.mxu0 0
    %1607 = vmatprep.subr.bf16.mxu0 0
    %1608 = vmatpush1.bf16.msra.mxu0 0
    %1609 = vmatprep.subr.bf16.mxu0 0
    %1610 = vmatpush1.bf16.msra.mxu0 0
    %1611 = vmatprep.subr.bf16.mxu0 0
    %1612 = vmatpush1.bf16.msra.mxu0 0
    %1613 = vmatprep.mubr.bf16.mxu0 0
    %1614 = vmatmul.mubr.bf16.gmra.mrb[0].mxu0 %v1580
    %v1615 = vpop.f32.mrb[0].mxu0
    %v1616 = vadd.f32 0.0, %v1615
    %v1617 = vpop.f32.mrb[0].mxu0
    %v1618 = vadd.f32 0.0, %v1617
    %v1619 = vpop.f32.mrb[0].mxu0
    %v1620 = vpop.f32.mrb[0].mxu0
    %1621 = vdwg.mxu0
    %1622 = vmatprep.subr.bf16.mxu0 %v614
    %1623 = vmatpush1.bf16.msra.mxu0 %v613
    %1624 = vmatprep.subr.bf16.mxu0 %v622
    %1625 = vmatpush1.bf16.msra.mxu0 %v621
    %1626 = vmatprep.subr.bf16.mxu0 %v630
    %1627 = vmatpush1.bf16.msra.mxu0 %v629
    %1628 = vmatprep.subr.bf16.mxu0 %v638
    %1629 = vmatpush1.bf16.msra.mxu0 %v637
    %1630 = vmatprep.subr.bf16.mxu0 %v646
    %1631 = vmatpush1.bf16.msra.mxu0 %v645
    %1632 = vmatprep.subr.bf16.mxu0 %v654
    %1633 = vmatpush1.bf16.msra.mxu0 %v653
    %1634 = vmatprep.subr.bf16.mxu0 %v662
    %1635 = vmatpush1.bf16.msra.mxu0 %v661
    %1636 = vmatprep.subr.bf16.mxu0 %v670
    %1637 = vmatpush1.bf16.msra.mxu0 %v669
    %1638 = vmatprep.subr.bf16.mxu0 0
    %1639 = vmatpush1.bf16.msra.mxu0 0
    %1640 = vmatprep.subr.bf16.mxu0 0
    %1641 = vmatpush1.bf16.msra.mxu0 0
    %1642 = vmatprep.subr.bf16.mxu0 0
    %1643 = vmatpush1.bf16.msra.mxu0 0
    %1644 = vmatprep.subr.bf16.mxu0 0
    %1645 = vmatpush1.bf16.msra.mxu0 0
    %1646 = vmatprep.subr.bf16.mxu0 0
    %1647 = vmatpush1.bf16.msra.mxu0 0
    %1648 = vmatprep.subr.bf16.mxu0 0
    %1649 = vmatpush1.bf16.msra.mxu0 0
    %1650 = vmatprep.subr.bf16.mxu0 0
    %1651 = vmatpush1.bf16.msra.mxu0 0
    %1652 = vmatprep.subr.bf16.mxu0 0
    %1653 = vmatpush1.bf16.msra.mxu0 0
    %1654 = vmatprep.mubr.bf16.mxu0 0
    %1655 = vmatmul.mubr.bf16.gmra.mrb[0].mxu0 %v1580
    %v1656 = vpop.f32.mrb[0].mxu0
    %v1657 = vadd.f32 0.0, %v1656
    %v1658 = vpop.f32.mrb[0].mxu0
    %v1659 = vadd.f32 0.0, %v1658
    %v1660 = vpop.f32.mrb[0].mxu0
    %v1661 = vpop.f32.mrb[0].mxu0
    %1662 = vdwg.mxu0
    %1663 = vmatprep.subr.bf16.mxu0 %v616
    %1664 = vmatpush1.bf16.msra.mxu0 %v615
    %1665 = vmatprep.subr.bf16.mxu0 %v624
    %1666 = vmatpush1.bf16.msra.mxu0 %v623
    %1667 = vmatprep.subr.bf16.mxu0 %v632
    %1668 = vmatpush1.bf16.msra.mxu0 %v631
    %1669 = vmatprep.subr.bf16.mxu0 %v640
    %1670 = vmatpush1.bf16.msra.mxu0 %v639
    %1671 = vmatprep.subr.bf16.mxu0 %v648
    %1672 = vmatpush1.bf16.msra.mxu0 %v647
    %1673 = vmatprep.subr.bf16.mxu0 %v656
    %1674 = vmatpush1.bf16.msra.mxu0 %v655
    %1675 = vmatprep.subr.bf16.mxu0 %v664
    %1676 = vmatpush1.bf16.msra.mxu0 %v663
    %1677 = vmatprep.subr.bf16.mxu0 %v672
    %1678 = vmatpush1.bf16.msra.mxu0 %v671
    %1679 = vmatprep.subr.bf16.mxu0 0
    %1680 = vmatpush1.bf16.msra.mxu0 0
    %1681 = vmatprep.subr.bf16.mxu0 0
    %1682 = vmatpush1.bf16.msra.mxu0 0
    %1683 = vmatprep.subr.bf16.mxu0 0
    %1684 = vmatpush1.bf16.msra.mxu0 0
    %1685 = vmatprep.subr.bf16.mxu0 0
    %1686 = vmatpush1.bf16.msra.mxu0 0
    %1687 = vmatprep.subr.bf16.mxu0 0
    %1688 = vmatpush1.bf16.msra.mxu0 0
    %1689 = vmatprep.subr.bf16.mxu0 0
    %1690 = vmatpush1.bf16.msra.mxu0 0
    %1691 = vmatprep.subr.bf16.mxu0 0
    %1692 = vmatpush1.bf16.msra.mxu0 0
    %1693 = vmatprep.subr.bf16.mxu0 0
    %1694 = vmatpush1.bf16.msra.mxu0 0
    %1695 = vmatprep.mubr.bf16.mxu0 0
    %1696 = vmatmul.mubr.bf16.gmra.mrb[0].mxu0 %v1580
    %v1697 = vpop.f32.mrb[0].mxu0
    %v1698 = vadd.f32 0.0, %v1697
    %v1699 = vpop.f32.mrb[0].mxu0
    %v1700 = vadd.f32 0.0, %v1699
    %v1701 = vpop.f32.mrb[0].mxu0
    %v1702 = vpop.f32.mrb[0].mxu0
    %1703 = vdwg.mxu0
    %1704 = vmatprep.subr.bf16.mxu0 %v618
    %1705 = vmatpush1.bf16.msra.mxu0 %v617
    %1706 = vmatprep.subr.bf16.mxu0 %v626
    %1707 = vmatpush1.bf16.msra.mxu0 %v625
    %1708 = vmatprep.subr.bf16.mxu0 %v634
    %1709 = vmatpush1.bf16.msra.mxu0 %v633
    %1710 = vmatprep.subr.bf16.mxu0 %v642
    %1711 = vmatpush1.bf16.msra.mxu0 %v641
    %1712 = vmatprep.subr.bf16.mxu0 %v650
    %1713 = vmatpush1.bf16.msra.mxu0 %v649
    %1714 = vmatprep.subr.bf16.mxu0 %v658
    %1715 = vmatpush1.bf16.msra.mxu0 %v657
    %1716 = vmatprep.subr.bf16.mxu0 %v666
    %1717 = vmatpush1.bf16.msra.mxu0 %v665
    %1718 = vmatprep.subr.bf16.mxu0 %v674
    %1719 = vmatpush1.bf16.msra.mxu0 %v673
    %1720 = vmatprep.subr.bf16.mxu0 0
    %1721 = vmatpush1.bf16.msra.mxu0 0
    %1722 = vmatprep.subr.bf16.mxu0 0
    %1723 = vmatpush1.bf16.msra.mxu0 0
    %1724 = vmatprep.subr.bf16.mxu0 0
    %1725 = vmatpush1.bf16.msra.mxu0 0
    %1726 = vmatprep.subr.bf16.mxu0 0
    %1727 = vmatpush1.bf16.msra.mxu0 0
    %1728 = vmatprep.subr.bf16.mxu0 0
    %1729 = vmatpush1.bf16.msra.mxu0 0
    %1730 = vmatprep.subr.bf16.mxu0 0
    %1731 = vmatpush1.bf16.msra.mxu0 0
    %1732 = vmatprep.subr.bf16.mxu0 0
    %1733 = vmatpush1.bf16.msra.mxu0 0
    %1734 = vmatprep.subr.bf16.mxu0 0
    %1735 = vmatpush1.bf16.msra.mxu0 0
    %1736 = vmatprep.mubr.bf16.mxu0 0
    %1737 = vmatmul.mubr.bf16.gmra.mrb[0].mxu0 %v1580
    %v1738 = vpop.f32.mrb[0].mxu0
    %v1739 = vadd.f32 0.0, %v1738
    %v1740 = vpop.f32.mrb[0].mxu0
    %v1741 = vadd.f32 0.0, %v1740
    %v1742 = vpop.f32.mrb[0].mxu0
    %v1743 = vpop.f32.mrb[0].mxu0
    %1744 = vdwg.mxu0
    %v1745 = vpack.c.bf16 %v1555, %v1555
    %1746 = vmatprep.subr.bf16.mxu0 %v1032
    %1747 = vmatpush1.bf16.msra.mxu0 %v1031
    %1748 = vmatprep.subr.bf16.mxu0 %v1036
    %1749 = vmatpush1.bf16.msra.mxu0 %v1035
    %1750 = vmatprep.subr.bf16.mxu0 %v1040
    %1751 = vmatpush1.bf16.msra.mxu0 %v1039
    %1752 = vmatprep.subr.bf16.mxu0 %v1044
    %1753 = vmatpush1.bf16.msra.mxu0 %v1043
    %1754 = vmatprep.subr.bf16.mxu0 %v1048
    %1755 = vmatpush1.bf16.msra.mxu0 %v1047
    %1756 = vmatprep.subr.bf16.mxu0 %v1052
    %1757 = vmatpush1.bf16.msra.mxu0 %v1051
    %1758 = vmatprep.subr.bf16.mxu0 %v1056
    %1759 = vmatpush1.bf16.msra.mxu0 %v1055
    %1760 = vmatprep.subr.bf16.mxu0 %v1060
    %1761 = vmatpush1.bf16.msra.mxu0 %v1059
    %1762 = vmatprep.subr.bf16.mxu0 0
    %1763 = vmatpush1.bf16.msra.mxu0 0
    %1764 = vmatprep.subr.bf16.mxu0 0
    %1765 = vmatpush1.bf16.msra.mxu0 0
    %1766 = vmatprep.subr.bf16.mxu0 0
    %1767 = vmatpush1.bf16.msra.mxu0 0
    %1768 = vmatprep.subr.bf16.mxu0 0
    %1769 = vmatpush1.bf16.msra.mxu0 0
    %1770 = vmatprep.subr.bf16.mxu0 0
    %1771 = vmatpush1.bf16.msra.mxu0 0
    %1772 = vmatprep.subr.bf16.mxu0 0
    %1773 = vmatpush1.bf16.msra.mxu0 0
    %1774 = vmatprep.subr.bf16.mxu0 0
    %1775 = vmatpush1.bf16.msra.mxu0 0
    %1776 = vmatprep.subr.bf16.mxu0 0
    %1777 = vmatpush1.bf16.msra.mxu0 0
    %1778 = vmatprep.mubr.bf16.mxu0 0
    %1779 = vmatmul.mubr.bf16.gmra.mrb[0].mxu0 %v1745
    %v1780 = vpop.f32.mrb[0].mxu0
    %v1781 = vadd.f32 0.0, %v1780
    %v1782 = vpop.f32.mrb[0].mxu0
    %v1783 = vadd.f32 0.0, %v1782
    %v1784 = vpop.f32.mrb[0].mxu0
    %v1785 = vpop.f32.mrb[0].mxu0
    %1786 = vdwg.mxu0
    %1787 = vmatprep.subr.bf16.mxu0 %v1034
    %1788 = vmatpush1.bf16.msra.mxu0 %v1033
    %1789 = vmatprep.subr.bf16.mxu0 %v1038
    %1790 = vmatpush1.bf16.msra.mxu0 %v1037
    %1791 = vmatprep.subr.bf16.mxu0 %v1042
    %1792 = vmatpush1.bf16.msra.mxu0 %v1041
    %1793 = vmatprep.subr.bf16.mxu0 %v1046
    %1794 = vmatpush1.bf16.msra.mxu0 %v1045
    %1795 = vmatprep.subr.bf16.mxu0 %v1050
    %1796 = vmatpush1.bf16.msra.mxu0 %v1049
    %1797 = vmatprep.subr.bf16.mxu0 %v1054
    %1798 = vmatpush1.bf16.msra.mxu0 %v1053
    %1799 = vmatprep.subr.bf16.mxu0 %v1058
    %1800 = vmatpush1.bf16.msra.mxu0 %v1057
    %1801 = vmatprep.subr.bf16.mxu0 %v1062
    %1802 = vmatpush1.bf16.msra.mxu0 %v1061
    %1803 = vmatprep.subr.bf16.mxu0 0
    %1804 = vmatpush1.bf16.msra.mxu0 0
    %1805 = vmatprep.subr.bf16.mxu0 0
    %1806 = vmatpush1.bf16.msra.mxu0 0
    %1807 = vmatprep.subr.bf16.mxu0 0
    %1808 = vmatpush1.bf16.msra.mxu0 0
    %1809 = vmatprep.subr.bf16.mxu0 0
    %1810 = vmatpush1.bf16.msra.mxu0 0
    %1811 = vmatprep.subr.bf16.mxu0 0
    %1812 = vmatpush1.bf16.msra.mxu0 0
    %1813 = vmatprep.subr.bf16.mxu0 0
    %1814 = vmatpush1.bf16.msra.mxu0 0
    %1815 = vmatprep.subr.bf16.mxu0 0
    %1816 = vmatpush1.bf16.msra.mxu0 0
    %1817 = vmatprep.subr.bf16.mxu0 0
    %1818 = vmatpush1.bf16.msra.mxu0 0
    %1819 = vmatprep.mubr.bf16.mxu0 0
    %1820 = vmatmul.mubr.bf16.gmra.mrb[0].mxu0 %v1745
    %v1821 = vpop.f32.mrb[0].mxu0
    %v1822 = vadd.f32 0.0, %v1821
    %v1823 = vpop.f32.mrb[0].mxu0
    %v1824 = vadd.f32 0.0, %v1823
    %v1825 = vpop.f32.mrb[0].mxu0
    %v1826 = vpop.f32.mrb[0].mxu0
    %1827 = vdwg.mxu0
    %s1828 = smul.u32 3, 4
    %s1829 = smul.addr %s1828, 8
    %s1830 = scalar_lea.vmem [#allocation2], %s1829
    %v1831 = vld [vmem:[%s1830] sm:$0xff]
    %v1832 = vld [vmem:[%s1830 + $0x8] sm:$0xff]
    %v1833 = vld [vmem:[%s1830 + $0x10] sm:$0xff]
    %v1834 = vld [vmem:[%s1830 + $0x18] sm:$0xff]
    %v1835 = vadd.f32 %v1616, %v1831
    %v1836 = vadd.f32 %v1618, %v1832
    %v1837 = vadd.f32 %v1657, %v1833
    %v1838 = vadd.f32 %v1659, %v1834
    %v1839 = vadd.f32 %v1698, %v1781
    %v1840 = vadd.f32 %v1700, %v1783
    %v1841 = vadd.f32 %v1739, %v1822
    %v1842 = vadd.f32 %v1741, %v1824
    %v1843 = vadd.f32 %v1839, %v1196
    %v1844 = vadd.f32 %v1840, %v1200
    %v1845 = vadd.f32 %v1841, %v1204
    %v1846 = vadd.f32 %v1842, %v1208
    %v1847 = vxor.u32 %v1843, 2147483648
    %v1848 = vmul.f32 %v1847, 1.442695
    %v1849 = vpow.pop %v1848
    %v1850 = vadd.f32 %v1849, 1.0
    %v1851 = vrcp.pop %v1850
    %v1852 = vmul.f32 1.0, %v1851
    %v1853 = vxor.u32 %v1844, 2147483648
    %v1854 = vmul.f32 %v1853, 1.442695
    %v1855 = vpow.pop %v1854
    %v1856 = vadd.f32 %v1855, 1.0
    %v1857 = vrcp.pop %v1856
    %v1858 = vmul.f32 1.0, %v1857
    %v1859 = vtanh.pop %v1845
    %v1860 = vxor.u32 %v1846, 2147483648
    %v1861 = vmul.f32 %v1860, 1.442695
    %v1862 = vpow.pop %v1861
    %v1863 = vadd.f32 %v1862, 1.0
    %v1864 = vrcp.pop %v1863
    %v1865 = vmul.f32 1.0, %v1864
    %v1866 = vmul.f32 %v1858, %v1553
    %v1867 = vmul.f32 %v1852, %v1859
    %v1868 = vadd.f32 %v1866, %v1867
    %v1869 = vtanh.pop %v1868
    %v1870 = vmul.f32 %v1865, %v1869
    %v1871 = vxor.u32 %v1835, 2147483648
    %v1872 = vmul.f32 %v1871, 1.442695
    %v1873 = vpow.pop %v1872
    %v1874 = vadd.f32 %v1873, 1.0
    %v1875 = vrcp.pop %v1874
    %v1876 = vmul.f32 1.0, %v1875
    %v1877 = vxor.u32 %v1836, 2147483648
    %v1878 = vmul.f32 %v1877, 1.442695
    %v1879 = vpow.pop %v1878
    %v1880 = vadd.f32 %v1879, 1.0
    %v1881 = vrcp.pop %v1880
    %v1882 = vmul.f32 1.0, %v1881
    %v1883 = vtanh.pop %v1837
    %v1884 = vxor.u32 %v1838, 2147483648
    %v1885 = vmul.f32 %v1884, 1.442695
    %v1886 = vpow.pop %v1885
    %v1887 = vadd.f32 %v1886, 1.0
    %v1888 = vrcp.pop %v1887
    %v1889 = vmul.f32 1.0, %v1888
    %v1890 = vmul.f32 %v1882, %v1577
    %v1891 = vmul.f32 %v1876, %v1883
    %v1892 = vadd.f32 %v1890, %v1891
    %v1893 = vtanh.pop %v1892
    %v1894 = vmul.f32 %v1889, %v1893
    %v1895 = vpack.c.bf16 %v1894, %v1894
    %1896 = vmatprep.subr.bf16.mxu0 %v612
    %1897 = vmatpush1.bf16.msra.mxu0 %v611
    %1898 = vmatprep.subr.bf16.mxu0 %v620
    %1899 = vmatpush1.bf16.msra.mxu0 %v619
    %1900 = vmatprep.subr.bf16.mxu0 %v628
    %1901 = vmatpush1.bf16.msra.mxu0 %v627
    %1902 = vmatprep.subr.bf16.mxu0 %v636
    %1903 = vmatpush1.bf16.msra.mxu0 %v635
    %1904 = vmatprep.subr.bf16.mxu0 %v644
    %1905 = vmatpush1.bf16.msra.mxu0 %v643
    %1906 = vmatprep.subr.bf16.mxu0 %v652
    %1907 = vmatpush1.bf16.msra.mxu0 %v651
    %1908 = vmatprep.subr.bf16.mxu0 %v660
    %1909 = vmatpush1.bf16.msra.mxu0 %v659
    %1910 = vmatprep.subr.bf16.mxu0 %v668
    %1911 = vmatpush1.bf16.msra.mxu0 %v667
    %1912 = vmatprep.subr.bf16.mxu0 0
    %1913 = vmatpush1.bf16.msra.mxu0 0
    %1914 = vmatprep.subr.bf16.mxu0 0
    %1915 = vmatpush1.bf16.msra.mxu0 0
    %1916 = vmatprep.subr.bf16.mxu0 0
    %1917 = vmatpush1.bf16.msra.mxu0 0
    %1918 = vmatprep.subr.bf16.mxu0 0
    %1919 = vmatpush1.bf16.msra.mxu0 0
    %1920 = vmatprep.subr.bf16.mxu0 0
    %1921 = vmatpush1.bf16.msra.mxu0 0
    %1922 = vmatprep.subr.bf16.mxu0 0
    %1923 = vmatpush1.bf16.msra.mxu0 0
    %1924 = vmatprep.subr.bf16.mxu0 0
    %1925 = vmatpush1.bf16.msra.mxu0 0
    %1926 = vmatprep.subr.bf16.mxu0 0
    %1927 = vmatpush1.bf16.msra.mxu0 0
    %1928 = vmatprep.mubr.bf16.mxu0 0
    %1929 = vmatmul.mubr.bf16.gmra.mrb[0].mxu0 %v1895
    %v1930 = vpop.f32.mrb[0].mxu0
    %v1931 = vadd.f32 0.0, %v1930
    %v1932 = vpop.f32.mrb[0].mxu0
    %v1933 = vadd.f32 0.0, %v1932
    %v1934 = vpop.f32.mrb[0].mxu0
    %v1935 = vpop.f32.mrb[0].mxu0
    %1936 = vdwg.mxu0
    %1937 = vmatprep.subr.bf16.mxu0 %v614
    %1938 = vmatpush1.bf16.msra.mxu0 %v613
    %1939 = vmatprep.subr.bf16.mxu0 %v622
    %1940 = vmatpush1.bf16.msra.mxu0 %v621
    %1941 = vmatprep.subr.bf16.mxu0 %v630
    %1942 = vmatpush1.bf16.msra.mxu0 %v629
    %1943 = vmatprep.subr.bf16.mxu0 %v638
    %1944 = vmatpush1.bf16.msra.mxu0 %v637
    %1945 = vmatprep.subr.bf16.mxu0 %v646
    %1946 = vmatpush1.bf16.msra.mxu0 %v645
    %1947 = vmatprep.subr.bf16.mxu0 %v654
    %1948 = vmatpush1.bf16.msra.mxu0 %v653
    %1949 = vmatprep.subr.bf16.mxu0 %v662
    %1950 = vmatpush1.bf16.msra.mxu0 %v661
    %1951 = vmatprep.subr.bf16.mxu0 %v670
    %1952 = vmatpush1.bf16.msra.mxu0 %v669
    %1953 = vmatprep.subr.bf16.mxu0 0
    %1954 = vmatpush1.bf16.msra.mxu0 0
    %1955 = vmatprep.subr.bf16.mxu0 0
    %1956 = vmatpush1.bf16.msra.mxu0 0
    %1957 = vmatprep.subr.bf16.mxu0 0
    %1958 = vmatpush1.bf16.msra.mxu0 0
    %1959 = vmatprep.subr.bf16.mxu0 0
    %1960 = vmatpush1.bf16.msra.mxu0 0
    %1961 = vmatprep.subr.bf16.mxu0 0
    %1962 = vmatpush1.bf16.msra.mxu0 0
    %1963 = vmatprep.subr.bf16.mxu0 0
    %1964 = vmatpush1.bf16.msra.mxu0 0
    %1965 = vmatprep.subr.bf16.mxu0 0
    %1966 = vmatpush1.bf16.msra.mxu0 0
    %1967 = vmatprep.subr.bf16.mxu0 0
    %1968 = vmatpush1.bf16.msra.mxu0 0
    %1969 = vmatprep.mubr.bf16.mxu0 0
    %1970 = vmatmul.mubr.bf16.gmra.mrb[0].mxu0 %v1895
    %v1971 = vpop.f32.mrb[0].mxu0
    %v1972 = vadd.f32 0.0, %v1971
    %v1973 = vpop.f32.mrb[0].mxu0
    %v1974 = vadd.f32 0.0, %v1973
    %v1975 = vpop.f32.mrb[0].mxu0
    %v1976 = vpop.f32.mrb[0].mxu0
    %1977 = vdwg.mxu0
    %1978 = vmatprep.subr.bf16.mxu0 %v616
    %1979 = vmatpush1.bf16.msra.mxu0 %v615
    %1980 = vmatprep.subr.bf16.mxu0 %v624
    %1981 = vmatpush1.bf16.msra.mxu0 %v623
    %1982 = vmatprep.subr.bf16.mxu0 %v632
    %1983 = vmatpush1.bf16.msra.mxu0 %v631
    %1984 = vmatprep.subr.bf16.mxu0 %v640
    %1985 = vmatpush1.bf16.msra.mxu0 %v639
    %1986 = vmatprep.subr.bf16.mxu0 %v648
    %1987 = vmatpush1.bf16.msra.mxu0 %v647
    %1988 = vmatprep.subr.bf16.mxu0 %v656
    %1989 = vmatpush1.bf16.msra.mxu0 %v655
    %1990 = vmatprep.subr.bf16.mxu0 %v664
    %1991 = vmatpush1.bf16.msra.mxu0 %v663
    %1992 = vmatprep.subr.bf16.mxu0 %v672
    %1993 = vmatpush1.bf16.msra.mxu0 %v671
    %1994 = vmatprep.subr.bf16.mxu0 0
    %1995 = vmatpush1.bf16.msra.mxu0 0
    %1996 = vmatprep.subr.bf16.mxu0 0
    %1997 = vmatpush1.bf16.msra.mxu0 0
    %1998 = vmatprep.subr.bf16.mxu0 0
    %1999 = vmatpush1.bf16.msra.mxu0 0
    %2000 = vmatprep.subr.bf16.mxu0 0
    %2001 = vmatpush1.bf16.msra.mxu0 0
    %2002 = vmatprep.subr.bf16.mxu0 0
    %2003 = vmatpush1.bf16.msra.mxu0 0
    %2004 = vmatprep.subr.bf16.mxu0 0
    %2005 = vmatpush1.bf16.msra.mxu0 0
    %2006 = vmatprep.subr.bf16.mxu0 0
    %2007 = vmatpush1.bf16.msra.mxu0 0
    %2008 = vmatprep.subr.bf16.mxu0 0
    %2009 = vmatpush1.bf16.msra.mxu0 0
    %2010 = vmatprep.mubr.bf16.mxu0 0
    %2011 = vmatmul.mubr.bf16.gmra.mrb[0].mxu0 %v1895
    %v2012 = vpop.f32.mrb[0].mxu0
    %v2013 = vadd.f32 0.0, %v2012
    %v2014 = vpop.f32.mrb[0].mxu0
    %v2015 = vadd.f32 0.0, %v2014
    %v2016 = vpop.f32.mrb[0].mxu0
    %v2017 = vpop.f32.mrb[0].mxu0
    %2018 = vdwg.mxu0
    %2019 = vmatprep.subr.bf16.mxu0 %v618
    %2020 = vmatpush1.bf16.msra.mxu0 %v617
    %2021 = vmatprep.subr.bf16.mxu0 %v626
    %2022 = vmatpush1.bf16.msra.mxu0 %v625
    %2023 = vmatprep.subr.bf16.mxu0 %v634
    %2024 = vmatpush1.bf16.msra.mxu0 %v633
    %2025 = vmatprep.subr.bf16.mxu0 %v642
    %2026 = vmatpush1.bf16.msra.mxu0 %v641
    %2027 = vmatprep.subr.bf16.mxu0 %v650
    %2028 = vmatpush1.bf16.msra.mxu0 %v649
    %2029 = vmatprep.subr.bf16.mxu0 %v658
    %2030 = vmatpush1.bf16.msra.mxu0 %v657
    %2031 = vmatprep.subr.bf16.mxu0 %v666
    %2032 = vmatpush1.bf16.msra.mxu0 %v665
    %2033 = vmatprep.subr.bf16.mxu0 %v674
    %2034 = vmatpush1.bf16.msra.mxu0 %v673
    %2035 = vmatprep.subr.bf16.mxu0 0
    %2036 = vmatpush1.bf16.msra.mxu0 0
    %2037 = vmatprep.subr.bf16.mxu0 0
    %2038 = vmatpush1.bf16.msra.mxu0 0
    %2039 = vmatprep.subr.bf16.mxu0 0
    %2040 = vmatpush1.bf16.msra.mxu0 0
    %2041 = vmatprep.subr.bf16.mxu0 0
    %2042 = vmatpush1.bf16.msra.mxu0 0
    %2043 = vmatprep.subr.bf16.mxu0 0
    %2044 = vmatpush1.bf16.msra.mxu0 0
    %2045 = vmatprep.subr.bf16.mxu0 0
    %2046 = vmatpush1.bf16.msra.mxu0 0
    %2047 = vmatprep.subr.bf16.mxu0 0
    %2048 = vmatpush1.bf16.msra.mxu0 0
    %2049 = vmatprep.subr.bf16.mxu0 0
    %2050 = vmatpush1.bf16.msra.mxu0 0
    %2051 = vmatprep.mubr.bf16.mxu0 0
    %2052 = vmatmul.mubr.bf16.gmra.mrb[0].mxu0 %v1895
    %v2053 = vpop.f32.mrb[0].mxu0
    %v2054 = vadd.f32 0.0, %v2053
    %v2055 = vpop.f32.mrb[0].mxu0
    %v2056 = vadd.f32 0.0, %v2055
    %v2057 = vpop.f32.mrb[0].mxu0
    %v2058 = vpop.f32.mrb[0].mxu0
    %2059 = vdwg.mxu0
    %v2060 = vpack.c.bf16 %v1870, %v1870
    %2061 = vmatprep.subr.bf16.mxu0 %v1032
    %2062 = vmatpush1.bf16.msra.mxu0 %v1031
    %2063 = vmatprep.subr.bf16.mxu0 %v1036
    %2064 = vmatpush1.bf16.msra.mxu0 %v1035
    %2065 = vmatprep.subr.bf16.mxu0 %v1040
    %2066 = vmatpush1.bf16.msra.mxu0 %v1039
    %2067 = vmatprep.subr.bf16.mxu0 %v1044
    %2068 = vmatpush1.bf16.msra.mxu0 %v1043
    %2069 = vmatprep.subr.bf16.mxu0 %v1048
    %2070 = vmatpush1.bf16.msra.mxu0 %v1047
    %2071 = vmatprep.subr.bf16.mxu0 %v1052
    %2072 = vmatpush1.bf16.msra.mxu0 %v1051
    %2073 = vmatprep.subr.bf16.mxu0 %v1056
    %2074 = vmatpush1.bf16.msra.mxu0 %v1055
    %2075 = vmatprep.subr.bf16.mxu0 %v1060
    %2076 = vmatpush1.bf16.msra.mxu0 %v1059
    %2077 = vmatprep.subr.bf16.mxu0 0
    %2078 = vmatpush1.bf16.msra.mxu0 0
    %2079 = vmatprep.subr.bf16.mxu0 0
    %2080 = vmatpush1.bf16.msra.mxu0 0
    %2081 = vmatprep.subr.bf16.mxu0 0
    %2082 = vmatpush1.bf16.msra.mxu0 0
    %2083 = vmatprep.subr.bf16.mxu0 0
    %2084 = vmatpush1.bf16.msra.mxu0 0
    %2085 = vmatprep.subr.bf16.mxu0 0
    %2086 = vmatpush1.bf16.msra.mxu0 0
    %2087 = vmatprep.subr.bf16.mxu0 0
    %2088 = vmatpush1.bf16.msra.mxu0 0
    %2089 = vmatprep.subr.bf16.mxu0 0
    %2090 = vmatpush1.bf16.msra.mxu0 0
    %2091 = vmatprep.subr.bf16.mxu0 0
    %2092 = vmatpush1.bf16.msra.mxu0 0
    %2093 = vmatprep.mubr.bf16.mxu0 0
    %2094 = vmatmul.mubr.bf16.gmra.mrb[0].mxu0 %v2060
    %v2095 = vpop.f32.mrb[0].mxu0
    %v2096 = vadd.f32 0.0, %v2095
    %v2097 = vpop.f32.mrb[0].mxu0
    %v2098 = vadd.f32 0.0, %v2097
    %v2099 = vpop.f32.mrb[0].mxu0
    %v2100 = vpop.f32.mrb[0].mxu0
    %2101 = vdwg.mxu0
    %2102 = vmatprep.subr.bf16.mxu0 %v1034
    %2103 = vmatpush1.bf16.msra.mxu0 %v1033
    %2104 = vmatprep.subr.bf16.mxu0 %v1038
    %2105 = vmatpush1.bf16.msra.mxu0 %v1037
    %2106 = vmatprep.subr.bf16.mxu0 %v1042
    %2107 = vmatpush1.bf16.msra.mxu0 %v1041
    %2108 = vmatprep.subr.bf16.mxu0 %v1046
    %2109 = vmatpush1.bf16.msra.mxu0 %v1045
    %2110 = vmatprep.subr.bf16.mxu0 %v1050
    %2111 = vmatpush1.bf16.msra.mxu0 %v1049
    %2112 = vmatprep.subr.bf16.mxu0 %v1054
    %2113 = vmatpush1.bf16.msra.mxu0 %v1053
    %2114 = vmatprep.subr.bf16.mxu0 %v1058
    %2115 = vmatpush1.bf16.msra.mxu0 %v1057
    %2116 = vmatprep.subr.bf16.mxu0 %v1062
    %2117 = vmatpush1.bf16.msra.mxu0 %v1061
    %2118 = vmatprep.subr.bf16.mxu0 0
    %2119 = vmatpush1.bf16.msra.mxu0 0
    %2120 = vmatprep.subr.bf16.mxu0 0
    %2121 = vmatpush1.bf16.msra.mxu0 0
    %2122 = vmatprep.subr.bf16.mxu0 0
    %2123 = vmatpush1.bf16.msra.mxu0 0
    %2124 = vmatprep.subr.bf16.mxu0 0
    %2125 = vmatpush1.bf16.msra.mxu0 0
    %2126 = vmatprep.subr.bf16.mxu0 0
    %2127 = vmatpush1.bf16.msra.mxu0 0
    %2128 = vmatprep.subr.bf16.mxu0 0
    %2129 = vmatpush1.bf16.msra.mxu0 0
    %2130 = vmatprep.subr.bf16.mxu0 0
    %2131 = vmatpush1.bf16.msra.mxu0 0
    %2132 = vmatprep.subr.bf16.mxu0 0
    %2133 = vmatpush1.bf16.msra.mxu0 0
    %2134 = vmatprep.mubr.bf16.mxu0 0
    %2135 = vmatmul.mubr.bf16.gmra.mrb[0].mxu0 %v2060
    %v2136 = vpop.f32.mrb[0].mxu0
    %v2137 = vadd.f32 0.0, %v2136
    %v2138 = vpop.f32.mrb[0].mxu0
    %v2139 = vadd.f32 0.0, %v2138
    %v2140 = vpop.f32.mrb[0].mxu0
    %v2141 = vpop.f32.mrb[0].mxu0
    %2142 = vdwg.mxu0
    %s2143 = smul.u32 4, 4
    %s2144 = smul.addr %s2143, 8
    %s2145 = scalar_lea.vmem [#allocation2], %s2144
    %v2146 = vld [vmem:[%s2145] sm:$0xff]
    %v2147 = vld [vmem:[%s2145 + $0x8] sm:$0xff]
    %v2148 = vld [vmem:[%s2145 + $0x10] sm:$0xff]
    %v2149 = vld [vmem:[%s2145 + $0x18] sm:$0xff]
    %v2150 = vadd.f32 %v1931, %v2146
    %v2151 = vadd.f32 %v1933, %v2147
    %v2152 = vadd.f32 %v1972, %v2148
    %v2153 = vadd.f32 %v1974, %v2149
    %v2154 = vadd.f32 %v2013, %v2096
    %v2155 = vadd.f32 %v2015, %v2098
    %v2156 = vadd.f32 %v2054, %v2137
    %v2157 = vadd.f32 %v2056, %v2139
    %v2158 = vadd.f32 %v2154, %v1196
    %v2159 = vadd.f32 %v2155, %v1200
    %v2160 = vadd.f32 %v2156, %v1204
    %v2161 = vadd.f32 %v2157, %v1208
    %v2162 = vxor.u32 %v2158, 2147483648
    %v2163 = vmul.f32 %v2162, 1.442695
    %v2164 = vpow.pop %v2163
    %v2165 = vadd.f32 %v2164, 1.0
    %v2166 = vrcp.pop %v2165
    %v2167 = vmul.f32 1.0, %v2166
    %v2168 = vxor.u32 %v2159, 2147483648
    %v2169 = vmul.f32 %v2168, 1.442695
    %v2170 = vpow.pop %v2169
    %v2171 = vadd.f32 %v2170, 1.0
    %v2172 = vrcp.pop %v2171
    %v2173 = vmul.f32 1.0, %v2172
    %v2174 = vtanh.pop %v2160
    %v2175 = vxor.u32 %v2161, 2147483648
    %v2176 = vmul.f32 %v2175, 1.442695
    %v2177 = vpow.pop %v2176
    %v2178 = vadd.f32 %v2177, 1.0
    %v2179 = vrcp.pop %v2178
    %v2180 = vmul.f32 1.0, %v2179
    %v2181 = vmul.f32 %v2173, %v1868
    %v2182 = vmul.f32 %v2167, %v2174
    %v2183 = vadd.f32 %v2181, %v2182
    %v2184 = vtanh.pop %v2183
    %v2185 = vmul.f32 %v2180, %v2184
    %v2186 = vxor.u32 %v2150, 2147483648
    %v2187 = vmul.f32 %v2186, 1.442695
    %v2188 = vpow.pop %v2187
    %v2189 = vadd.f32 %v2188, 1.0
    %v2190 = vrcp.pop %v2189
    %v2191 = vmul.f32 1.0, %v2190
    %v2192 = vxor.u32 %v2151, 2147483648
    %v2193 = vmul.f32 %v2192, 1.442695
    %v2194 = vpow.pop %v2193
    %v2195 = vadd.f32 %v2194, 1.0
    %v2196 = vrcp.pop %v2195
    %v2197 = vmul.f32 1.0, %v2196
    %v2198 = vtanh.pop %v2152
    %v2199 = vxor.u32 %v2153, 2147483648
    %v2200 = vmul.f32 %v2199, 1.442695
    %v2201 = vpow.pop %v2200
    %v2202 = vadd.f32 %v2201, 1.0
    %v2203 = vrcp.pop %v2202
    %v2204 = vmul.f32 1.0, %v2203
    %v2205 = vmul.f32 %v2197, %v1892
    %v2206 = vmul.f32 %v2191, %v2198
    %v2207 = vadd.f32 %v2205, %v2206
    %v2208 = vtanh.pop %v2207
    %v2209 = vmul.f32 %v2204, %v2208
    %v2210 = vpack.c.bf16 %v2209, %v2209
    %2211 = vmatprep.subr.bf16.mxu0 %v612
    %2212 = vmatpush1.bf16.msra.mxu0 %v611
    %2213 = vmatprep.subr.bf16.mxu0 %v620
    %2214 = vmatpush1.bf16.msra.mxu0 %v619
    %2215 = vmatprep.subr.bf16.mxu0 %v628
    %2216 = vmatpush1.bf16.msra.mxu0 %v627
    %2217 = vmatprep.subr.bf16.mxu0 %v636
    %2218 = vmatpush1.bf16.msra.mxu0 %v635
    %2219 = vmatprep.subr.bf16.mxu0 %v644
    %2220 = vmatpush1.bf16.msra.mxu0 %v643
    %2221 = vmatprep.subr.bf16.mxu0 %v652
    %2222 = vmatpush1.bf16.msra.mxu0 %v651
    %2223 = vmatprep.subr.bf16.mxu0 %v660
    %2224 = vmatpush1.bf16.msra.mxu0 %v659
    %2225 = vmatprep.subr.bf16.mxu0 %v668
    %2226 = vmatpush1.bf16.msra.mxu0 %v667
    %2227 = vmatprep.subr.bf16.mxu0 0
    %2228 = vmatpush1.bf16.msra.mxu0 0
    %2229 = vmatprep.subr.bf16.mxu0 0
    %2230 = vmatpush1.bf16.msra.mxu0 0
    %2231 = vmatprep.subr.bf16.mxu0 0
    %2232 = vmatpush1.bf16.msra.mxu0 0
    %2233 = vmatprep.subr.bf16.mxu0 0
    %2234 = vmatpush1.bf16.msra.mxu0 0
    %2235 = vmatprep.subr.bf16.mxu0 0
    %2236 = vmatpush1.bf16.msra.mxu0 0
    %2237 = vmatprep.subr.bf16.mxu0 0
    %2238 = vmatpush1.bf16.msra.mxu0 0
    %2239 = vmatprep.subr.bf16.mxu0 0
    %2240 = vmatpush1.bf16.msra.mxu0 0
    %2241 = vmatprep.subr.bf16.mxu0 0
    %2242 = vmatpush1.bf16.msra.mxu0 0
    %2243 = vmatprep.mubr.bf16.mxu0 0
    %2244 = vmatmul.mubr.bf16.gmra.mrb[0].mxu0 %v2210
    %v2245 = vpop.f32.mrb[0].mxu0
    %v2246 = vadd.f32 0.0, %v2245
    %v2247 = vpop.f32.mrb[0].mxu0
    %v2248 = vadd.f32 0.0, %v2247
    %v2249 = vpop.f32.mrb[0].mxu0
    %v2250 = vpop.f32.mrb[0].mxu0
    %2251 = vdwg.mxu0
    %2252 = vmatprep.subr.bf16.mxu0 %v614
    %2253 = vmatpush1.bf16.msra.mxu0 %v613
    %2254 = vmatprep.subr.bf16.mxu0 %v622
    %2255 = vmatpush1.bf16.msra.mxu0 %v621
    %2256 = vmatprep.subr.bf16.mxu0 %v630
    %2257 = vmatpush1.bf16.msra.mxu0 %v629
    %2258 = vmatprep.subr.bf16.mxu0 %v638
    %2259 = vmatpush1.bf16.msra.mxu0 %v637
    %2260 = vmatprep.subr.bf16.mxu0 %v646
    %2261 = vmatpush1.bf16.msra.mxu0 %v645
    %2262 = vmatprep.subr.bf16.mxu0 %v654
    %2263 = vmatpush1.bf16.msra.mxu0 %v653
    %2264 = vmatprep.subr.bf16.mxu0 %v662
    %2265 = vmatpush1.bf16.msra.mxu0 %v661
    %2266 = vmatprep.subr.bf16.mxu0 %v670
    %2267 = vmatpush1.bf16.msra.mxu0 %v669
    %2268 = vmatprep.subr.bf16.mxu0 0
    %2269 = vmatpush1.bf16.msra.mxu0 0
    %2270 = vmatprep.subr.bf16.mxu0 0
    %2271 = vmatpush1.bf16.msra.mxu0 0
    %2272 = vmatprep.subr.bf16.mxu0 0
    %2273 = vmatpush1.bf16.msra.mxu0 0
    %2274 = vmatprep.subr.bf16.mxu0 0
    %2275 = vmatpush1.bf16.msra.mxu0 0
    %2276 = vmatprep.subr.bf16.mxu0 0
    %2277 = vmatpush1.bf16.msra.mxu0 0
    %2278 = vmatprep.subr.bf16.mxu0 0
    %2279 = vmatpush1.bf16.msra.mxu0 0
    %2280 = vmatprep.subr.bf16.mxu0 0
    %2281 = vmatpush1.bf16.msra.mxu0 0
    %2282 = vmatprep.subr.bf16.mxu0 0
    %2283 = vmatpush1.bf16.msra.mxu0 0
    %2284 = vmatprep.mubr.bf16.mxu0 0
    %2285 = vmatmul.mubr.bf16.gmra.mrb[0].mxu0 %v2210
    %v2286 = vpop.f32.mrb[0].mxu0
    %v2287 = vadd.f32 0.0, %v2286
    %v2288 = vpop.f32.mrb[0].mxu0
    %v2289 = vadd.f32 0.0, %v2288
    %v2290 = vpop.f32.mrb[0].mxu0
    %v2291 = vpop.f32.mrb[0].mxu0
    %2292 = vdwg.mxu0
    %2293 = vmatprep.subr.bf16.mxu0 %v616
    %2294 = vmatpush1.bf16.msra.mxu0 %v615
    %2295 = vmatprep.subr.bf16.mxu0 %v624
    %2296 = vmatpush1.bf16.msra.mxu0 %v623
    %2297 = vmatprep.subr.bf16.mxu0 %v632
    %2298 = vmatpush1.bf16.msra.mxu0 %v631
    %2299 = vmatprep.subr.bf16.mxu0 %v640
    %2300 = vmatpush1.bf16.msra.mxu0 %v639
    %2301 = vmatprep.subr.bf16.mxu0 %v648
    %2302 = vmatpush1.bf16.msra.mxu0 %v647
    %2303 = vmatprep.subr.bf16.mxu0 %v656
    %2304 = vmatpush1.bf16.msra.mxu0 %v655
    %2305 = vmatprep.subr.bf16.mxu0 %v664
    %2306 = vmatpush1.bf16.msra.mxu0 %v663
    %2307 = vmatprep.subr.bf16.mxu0 %v672
    %2308 = vmatpush1.bf16.msra.mxu0 %v671
    %2309 = vmatprep.subr.bf16.mxu0 0
    %2310 = vmatpush1.bf16.msra.mxu0 0
    %2311 = vmatprep.subr.bf16.mxu0 0
    %2312 = vmatpush1.bf16.msra.mxu0 0
    %2313 = vmatprep.subr.bf16.mxu0 0
    %2314 = vmatpush1.bf16.msra.mxu0 0
    %2315 = vmatprep.subr.bf16.mxu0 0
    %2316 = vmatpush1.bf16.msra.mxu0 0
    %2317 = vmatprep.subr.bf16.mxu0 0
    %2318 = vmatpush1.bf16.msra.mxu0 0
    %2319 = vmatprep.subr.bf16.mxu0 0
    %2320 = vmatpush1.bf16.msra.mxu0 0
    %2321 = vmatprep.subr.bf16.mxu0 0
    %2322 = vmatpush1.bf16.msra.mxu0 0
    %2323 = vmatprep.subr.bf16.mxu0 0
    %2324 = vmatpush1.bf16.msra.mxu0 0
    %2325 = vmatprep.mubr.bf16.mxu0 0
    %2326 = vmatmul.mubr.bf16.gmra.mrb[0].mxu0 %v2210
    %v2327 = vpop.f32.mrb[0].mxu0
    %v2328 = vadd.f32 0.0, %v2327
    %v2329 = vpop.f32.mrb[0].mxu0
    %v2330 = vadd.f32 0.0, %v2329
    %v2331 = vpop.f32.mrb[0].mxu0
    %v2332 = vpop.f32.mrb[0].mxu0
    %2333 = vdwg.mxu0
    %2334 = vmatprep.subr.bf16.mxu0 %v618
    %2335 = vmatpush1.bf16.msra.mxu0 %v617
    %2336 = vmatprep.subr.bf16.mxu0 %v626
    %2337 = vmatpush1.bf16.msra.mxu0 %v625
    %2338 = vmatprep.subr.bf16.mxu0 %v634
    %2339 = vmatpush1.bf16.msra.mxu0 %v633
    %2340 = vmatprep.subr.bf16.mxu0 %v642
    %2341 = vmatpush1.bf16.msra.mxu0 %v641
    %2342 = vmatprep.subr.bf16.mxu0 %v650
    %2343 = vmatpush1.bf16.msra.mxu0 %v649
    %2344 = vmatprep.subr.bf16.mxu0 %v658
    %2345 = vmatpush1.bf16.msra.mxu0 %v657
    %2346 = vmatprep.subr.bf16.mxu0 %v666
    %2347 = vmatpush1.bf16.msra.mxu0 %v665
    %2348 = vmatprep.subr.bf16.mxu0 %v674
    %2349 = vmatpush1.bf16.msra.mxu0 %v673
    %2350 = vmatprep.subr.bf16.mxu0 0
    %2351 = vmatpush1.bf16.msra.mxu0 0
    %2352 = vmatprep.subr.bf16.mxu0 0
    %2353 = vmatpush1.bf16.msra.mxu0 0
    %2354 = vmatprep.subr.bf16.mxu0 0
    %2355 = vmatpush1.bf16.msra.mxu0 0
    %2356 = vmatprep.subr.bf16.mxu0 0
    %2357 = vmatpush1.bf16.msra.mxu0 0
    %2358 = vmatprep.subr.bf16.mxu0 0
    %2359 = vmatpush1.bf16.msra.mxu0 0
    %2360 = vmatprep.subr.bf16.mxu0 0
    %2361 = vmatpush1.bf16.msra.mxu0 0
    %2362 = vmatprep.subr.bf16.mxu0 0
    %2363 = vmatpush1.bf16.msra.mxu0 0
    %2364 = vmatprep.subr.bf16.mxu0 0
    %2365 = vmatpush1.bf16.msra.mxu0 0
    %2366 = vmatprep.mubr.bf16.mxu0 0
    %2367 = vmatmul.mubr.bf16.gmra.mrb[0].mxu0 %v2210
    %v2368 = vpop.f32.mrb[0].mxu0
    %v2369 = vadd.f32 0.0, %v2368
    %v2370 = vpop.f32.mrb[0].mxu0
    %v2371 = vadd.f32 0.0, %v2370
    %v2372 = vpop.f32.mrb[0].mxu0
    %v2373 = vpop.f32.mrb[0].mxu0
    %2374 = vdwg.mxu0
    %v2375 = vpack.c.bf16 %v2185, %v2185
    %2376 = vmatprep.subr.bf16.mxu0 %v1032
    %2377 = vmatpush1.bf16.msra.mxu0 %v1031
    %2378 = vmatprep.subr.bf16.mxu0 %v1036
    %2379 = vmatpush1.bf16.msra.mxu0 %v1035
    %2380 = vmatprep.subr.bf16.mxu0 %v1040
    %2381 = vmatpush1.bf16.msra.mxu0 %v1039
    %2382 = vmatprep.subr.bf16.mxu0 %v1044
    %2383 = vmatpush1.bf16.msra.mxu0 %v1043
    %2384 = vmatprep.subr.bf16.mxu0 %v1048
    %2385 = vmatpush1.bf16.msra.mxu0 %v1047
    %2386 = vmatprep.subr.bf16.mxu0 %v1052
    %2387 = vmatpush1.bf16.msra.mxu0 %v1051
    %2388 = vmatprep.subr.bf16.mxu0 %v1056
    %2389 = vmatpush1.bf16.msra.mxu0 %v1055
    %2390 = vmatprep.subr.bf16.mxu0 %v1060
    %2391 = vmatpush1.bf16.msra.mxu0 %v1059
    %2392 = vmatprep.subr.bf16.mxu0 0
    %2393 = vmatpush1.bf16.msra.mxu0 0
    %2394 = vmatprep.subr.bf16.mxu0 0
    %2395 = vmatpush1.bf16.msra.mxu0 0
    %2396 = vmatprep.subr.bf16.mxu0 0
    %2397 = vmatpush1.bf16.msra.mxu0 0
    %2398 = vmatprep.subr.bf16.mxu0 0
    %2399 = vmatpush1.bf16.msra.mxu0 0
    %2400 = vmatprep.subr.bf16.mxu0 0
    %2401 = vmatpush1.bf16.msra.mxu0 0
    %2402 = vmatprep.subr.bf16.mxu0 0
    %2403 = vmatpush1.bf16.msra.mxu0 0
    %2404 = vmatprep.subr.bf16.mxu0 0
    %2405 = vmatpush1.bf16.msra.mxu0 0
    %2406 = vmatprep.subr.bf16.mxu0 0
    %2407 = vmatpush1.bf16.msra.mxu0 0
    %2408 = vmatprep.mubr.bf16.mxu0 0
    %2409 = vmatmul.mubr.bf16.gmra.mrb[0].mxu0 %v2375
    %v2410 = vpop.f32.mrb[0].mxu0
    %v2411 = vadd.f32 0.0, %v2410
    %v2412 = vpop.f32.mrb[0].mxu0
    %v2413 = vadd.f32 0.0, %v2412
    %v2414 = vpop.f32.mrb[0].mxu0
    %v2415 = vpop.f32.mrb[0].mxu0
    %2416 = vdwg.mxu0
    %2417 = vmatprep.subr.bf16.mxu0 %v1034
    %2418 = vmatpush1.bf16.msra.mxu0 %v1033
    %2419 = vmatprep.subr.bf16.mxu0 %v1038
    %2420 = vmatpush1.bf16.msra.mxu0 %v1037
    %2421 = vmatprep.subr.bf16.mxu0 %v1042
    %2422 = vmatpush1.bf16.msra.mxu0 %v1041
    %2423 = vmatprep.subr.bf16.mxu0 %v1046
    %2424 = vmatpush1.bf16.msra.mxu0 %v1045
    %2425 = vmatprep.subr.bf16.mxu0 %v1050
    %2426 = vmatpush1.bf16.msra.mxu0 %v1049
    %2427 = vmatprep.subr.bf16.mxu0 %v1054
    %2428 = vmatpush1.bf16.msra.mxu0 %v1053
    %2429 = vmatprep.subr.bf16.mxu0 %v1058
    %2430 = vmatpush1.bf16.msra.mxu0 %v1057
    %2431 = vmatprep.subr.bf16.mxu0 %v1062
    %2432 = vmatpush1.bf16.msra.mxu0 %v1061
    %2433 = vmatprep.subr.bf16.mxu0 0
    %2434 = vmatpush1.bf16.msra.mxu0 0
    %2435 = vmatprep.subr.bf16.mxu0 0
    %2436 = vmatpush1.bf16.msra.mxu0 0
    %2437 = vmatprep.subr.bf16.mxu0 0
    %2438 = vmatpush1.bf16.msra.mxu0 0
    %2439 = vmatprep.subr.bf16.mxu0 0
    %2440 = vmatpush1.bf16.msra.mxu0 0
    %2441 = vmatprep.subr.bf16.mxu0 0
    %2442 = vmatpush1.bf16.msra.mxu0 0
    %2443 = vmatprep.subr.bf16.mxu0 0
    %2444 = vmatpush1.bf16.msra.mxu0 0
    %2445 = vmatprep.subr.bf16.mxu0 0
    %2446 = vmatpush1.bf16.msra.mxu0 0
    %2447 = vmatprep.subr.bf16.mxu0 0
    %2448 = vmatpush1.bf16.msra.mxu0 0
    %2449 = vmatprep.mubr.bf16.mxu0 0
    %2450 = vmatmul.mubr.bf16.gmra.mrb[0].mxu0 %v2375
    %v2451 = vpop.f32.mrb[0].mxu0
    %v2452 = vadd.f32 0.0, %v2451
    %v2453 = vpop.f32.mrb[0].mxu0
    %v2454 = vadd.f32 0.0, %v2453
    %v2455 = vpop.f32.mrb[0].mxu0
    %v2456 = vpop.f32.mrb[0].mxu0
    %2457 = vdwg.mxu0
    %s2458 = smul.u32 5, 4
    %s2459 = smul.addr %s2458, 8
    %s2460 = scalar_lea.vmem [#allocation2], %s2459
    %v2461 = vld [vmem:[%s2460] sm:$0xff]
    %v2462 = vld [vmem:[%s2460 + $0x8] sm:$0xff]
    %v2463 = vld [vmem:[%s2460 + $0x10] sm:$0xff]
    %v2464 = vld [vmem:[%s2460 + $0x18] sm:$0xff]
    %v2465 = vadd.f32 %v2246, %v2461
    %v2466 = vadd.f32 %v2248, %v2462
    %v2467 = vadd.f32 %v2287, %v2463
    %v2468 = vadd.f32 %v2289, %v2464
    %v2469 = vadd.f32 %v2328, %v2411
    %v2470 = vadd.f32 %v2330, %v2413
    %v2471 = vadd.f32 %v2369, %v2452
    %v2472 = vadd.f32 %v2371, %v2454
    %v2473 = vadd.f32 %v2469, %v1196
    %v2474 = vadd.f32 %v2470, %v1200
    %v2475 = vadd.f32 %v2471, %v1204
    %v2476 = vadd.f32 %v2472, %v1208
    %v2477 = vxor.u32 %v2473, 2147483648
    %v2478 = vmul.f32 %v2477, 1.442695
    %v2479 = vpow.pop %v2478
    %v2480 = vadd.f32 %v2479, 1.0
    %v2481 = vrcp.pop %v2480
    %v2482 = vmul.f32 1.0, %v2481
    %v2483 = vxor.u32 %v2474, 2147483648
    %v2484 = vmul.f32 %v2483, 1.442695
    %v2485 = vpow.pop %v2484
    %v2486 = vadd.f32 %v2485, 1.0
    %v2487 = vrcp.pop %v2486
    %v2488 = vmul.f32 1.0, %v2487
    %v2489 = vtanh.pop %v2475
    %v2490 = vxor.u32 %v2476, 2147483648
    %v2491 = vmul.f32 %v2490, 1.442695
    %v2492 = vpow.pop %v2491
    %v2493 = vadd.f32 %v2492, 1.0
    %v2494 = vrcp.pop %v2493
    %v2495 = vmul.f32 1.0, %v2494
    %v2496 = vmul.f32 %v2488, %v2183
    %v2497 = vmul.f32 %v2482, %v2489
    %v2498 = vadd.f32 %v2496, %v2497
    %v2499 = vtanh.pop %v2498
    %v2500 = vmul.f32 %v2495, %v2499
    %v2501 = vxor.u32 %v2465, 2147483648
    %v2502 = vmul.f32 %v2501, 1.442695
    %v2503 = vpow.pop %v2502
    %v2504 = vadd.f32 %v2503, 1.0
    %v2505 = vrcp.pop %v2504
    %v2506 = vmul.f32 1.0, %v2505
    %v2507 = vxor.u32 %v2466, 2147483648
    %v2508 = vmul.f32 %v2507, 1.442695
    %v2509 = vpow.pop %v2508
    %v2510 = vadd.f32 %v2509, 1.0
    %v2511 = vrcp.pop %v2510
    %v2512 = vmul.f32 1.0, %v2511
    %v2513 = vtanh.pop %v2467
    %v2514 = vxor.u32 %v2468, 2147483648
    %v2515 = vmul.f32 %v2514, 1.442695
    %v2516 = vpow.pop %v2515
    %v2517 = vadd.f32 %v2516, 1.0
    %v2518 = vrcp.pop %v2517
    %v2519 = vmul.f32 1.0, %v2518
    %v2520 = vmul.f32 %v2512, %v2207
    %v2521 = vmul.f32 %v2506, %v2513
    %v2522 = vadd.f32 %v2520, %v2521
    %v2523 = vtanh.pop %v2522
    %v2524 = vmul.f32 %v2519, %v2523
    %v2525 = vpack.c.bf16 %v2524, %v2524
    %2526 = vmatprep.subr.bf16.mxu0 %v612
    %2527 = vmatpush1.bf16.msra.mxu0 %v611
    %2528 = vmatprep.subr.bf16.mxu0 %v620
    %2529 = vmatpush1.bf16.msra.mxu0 %v619
    %2530 = vmatprep.subr.bf16.mxu0 %v628
    %2531 = vmatpush1.bf16.msra.mxu0 %v627
    %2532 = vmatprep.subr.bf16.mxu0 %v636
    %2533 = vmatpush1.bf16.msra.mxu0 %v635
    %2534 = vmatprep.subr.bf16.mxu0 %v644
    %2535 = vmatpush1.bf16.msra.mxu0 %v643
    %2536 = vmatprep.subr.bf16.mxu0 %v652
    %2537 = vmatpush1.bf16.msra.mxu0 %v651
    %2538 = vmatprep.subr.bf16.mxu0 %v660
    %2539 = vmatpush1.bf16.msra.mxu0 %v659
    %2540 = vmatprep.subr.bf16.mxu0 %v668
    %2541 = vmatpush1.bf16.msra.mxu0 %v667
    %2542 = vmatprep.subr.bf16.mxu0 0
    %2543 = vmatpush1.bf16.msra.mxu0 0
    %2544 = vmatprep.subr.bf16.mxu0 0
    %2545 = vmatpush1.bf16.msra.mxu0 0
    %2546 = vmatprep.subr.bf16.mxu0 0
    %2547 = vmatpush1.bf16.msra.mxu0 0
    %2548 = vmatprep.subr.bf16.mxu0 0
    %2549 = vmatpush1.bf16.msra.mxu0 0
    %2550 = vmatprep.subr.bf16.mxu0 0
    %2551 = vmatpush1.bf16.msra.mxu0 0
    %2552 = vmatprep.subr.bf16.mxu0 0
    %2553 = vmatpush1.bf16.msra.mxu0 0
    %2554 = vmatprep.subr.bf16.mxu0 0
    %2555 = vmatpush1.bf16.msra.mxu0 0
    %2556 = vmatprep.subr.bf16.mxu0 0
    %2557 = vmatpush1.bf16.msra.mxu0 0
    %2558 = vmatprep.mubr.bf16.mxu0 0
    %2559 = vmatmul.mubr.bf16.gmra.mrb[0].mxu0 %v2525
    %v2560 = vpop.f32.mrb[0].mxu0
    %v2561 = vadd.f32 0.0, %v2560
    %v2562 = vpop.f32.mrb[0].mxu0
    %v2563 = vadd.f32 0.0, %v2562
    %v2564 = vpop.f32.mrb[0].mxu0
    %v2565 = vpop.f32.mrb[0].mxu0
    %2566 = vdwg.mxu0
    %2567 = vmatprep.subr.bf16.mxu0 %v614
    %2568 = vmatpush1.bf16.msra.mxu0 %v613
    %2569 = vmatprep.subr.bf16.mxu0 %v622
    %2570 = vmatpush1.bf16.msra.mxu0 %v621
    %2571 = vmatprep.subr.bf16.mxu0 %v630
    %2572 = vmatpush1.bf16.msra.mxu0 %v629
    %2573 = vmatprep.subr.bf16.mxu0 %v638
    %2574 = vmatpush1.bf16.msra.mxu0 %v637
    %2575 = vmatprep.subr.bf16.mxu0 %v646
    %2576 = vmatpush1.bf16.msra.mxu0 %v645
    %2577 = vmatprep.subr.bf16.mxu0 %v654
    %2578 = vmatpush1.bf16.msra.mxu0 %v653
    %2579 = vmatprep.subr.bf16.mxu0 %v662
    %2580 = vmatpush1.bf16.msra.mxu0 %v661
    %2581 = vmatprep.subr.bf16.mxu0 %v670
    %2582 = vmatpush1.bf16.msra.mxu0 %v669
    %2583 = vmatprep.subr.bf16.mxu0 0
    %2584 = vmatpush1.bf16.msra.mxu0 0
    %2585 = vmatprep.subr.bf16.mxu0 0
    %2586 = vmatpush1.bf16.msra.mxu0 0
    %2587 = vmatprep.subr.bf16.mxu0 0
    %2588 = vmatpush1.bf16.msra.mxu0 0
    %2589 = vmatprep.subr.bf16.mxu0 0
    %2590 = vmatpush1.bf16.msra.mxu0 0
    %2591 = vmatprep.subr.bf16.mxu0 0
    %2592 = vmatpush1.bf16.msra.mxu0 0
    %2593 = vmatprep.subr.bf16.mxu0 0
    %2594 = vmatpush1.bf16.msra.mxu0 0
    %2595 = vmatprep.subr.bf16.mxu0 0
    %2596 = vmatpush1.bf16.msra.mxu0 0
    %2597 = vmatprep.subr.bf16.mxu0 0
    %2598 = vmatpush1.bf16.msra.mxu0 0
    %2599 = vmatprep.mubr.bf16.mxu0 0
    %2600 = vmatmul.mubr.bf16.gmra.mrb[0].mxu0 %v2525
    %v2601 = vpop.f32.mrb[0].mxu0
    %v2602 = vadd.f32 0.0, %v2601
    %v2603 = vpop.f32.mrb[0].mxu0
    %v2604 = vadd.f32 0.0, %v2603
    %v2605 = vpop.f32.mrb[0].mxu0
    %v2606 = vpop.f32.mrb[0].mxu0
    %2607 = vdwg.mxu0
    %2608 = vmatprep.subr.bf16.mxu0 %v616
    %2609 = vmatpush1.bf16.msra.mxu0 %v615
    %2610 = vmatprep.subr.bf16.mxu0 %v624
    %2611 = vmatpush1.bf16.msra.mxu0 %v623
    %2612 = vmatprep.subr.bf16.mxu0 %v632
    %2613 = vmatpush1.bf16.msra.mxu0 %v631
    %2614 = vmatprep.subr.bf16.mxu0 %v640
    %2615 = vmatpush1.bf16.msra.mxu0 %v639
    %2616 = vmatprep.subr.bf16.mxu0 %v648
    %2617 = vmatpush1.bf16.msra.mxu0 %v647
    %2618 = vmatprep.subr.bf16.mxu0 %v656
    %2619 = vmatpush1.bf16.msra.mxu0 %v655
    %2620 = vmatprep.subr.bf16.mxu0 %v664
    %2621 = vmatpush1.bf16.msra.mxu0 %v663
    %2622 = vmatprep.subr.bf16.mxu0 %v672
    %2623 = vmatpush1.bf16.msra.mxu0 %v671
    %2624 = vmatprep.subr.bf16.mxu0 0
    %2625 = vmatpush1.bf16.msra.mxu0 0
    %2626 = vmatprep.subr.bf16.mxu0 0
    %2627 = vmatpush1.bf16.msra.mxu0 0
    %2628 = vmatprep.subr.bf16.mxu0 0
    %2629 = vmatpush1.bf16.msra.mxu0 0
    %2630 = vmatprep.subr.bf16.mxu0 0
    %2631 = vmatpush1.bf16.msra.mxu0 0
    %2632 = vmatprep.subr.bf16.mxu0 0
    %2633 = vmatpush1.bf16.msra.mxu0 0
    %2634 = vmatprep.subr.bf16.mxu0 0
    %2635 = vmatpush1.bf16.msra.mxu0 0
    %2636 = vmatprep.subr.bf16.mxu0 0
    %2637 = vmatpush1.bf16.msra.mxu0 0
    %2638 = vmatprep.subr.bf16.mxu0 0
    %2639 = vmatpush1.bf16.msra.mxu0 0
    %2640 = vmatprep.mubr.bf16.mxu0 0
    %2641 = vmatmul.mubr.bf16.gmra.mrb[0].mxu0 %v2525
    %v2642 = vpop.f32.mrb[0].mxu0
    %v2643 = vadd.f32 0.0, %v2642
    %v2644 = vpop.f32.mrb[0].mxu0
    %v2645 = vadd.f32 0.0, %v2644
    %v2646 = vpop.f32.mrb[0].mxu0
    %v2647 = vpop.f32.mrb[0].mxu0
    %2648 = vdwg.mxu0
    %2649 = vmatprep.subr.bf16.mxu0 %v618
    %2650 = vmatpush1.bf16.msra.mxu0 %v617
    %2651 = vmatprep.subr.bf16.mxu0 %v626
    %2652 = vmatpush1.bf16.msra.mxu0 %v625
    %2653 = vmatprep.subr.bf16.mxu0 %v634
    %2654 = vmatpush1.bf16.msra.mxu0 %v633
    %2655 = vmatprep.subr.bf16.mxu0 %v642
    %2656 = vmatpush1.bf16.msra.mxu0 %v641
    %2657 = vmatprep.subr.bf16.mxu0 %v650
    %2658 = vmatpush1.bf16.msra.mxu0 %v649
    %2659 = vmatprep.subr.bf16.mxu0 %v658
    %2660 = vmatpush1.bf16.msra.mxu0 %v657
    %2661 = vmatprep.subr.bf16.mxu0 %v666
    %2662 = vmatpush1.bf16.msra.mxu0 %v665
    %2663 = vmatprep.subr.bf16.mxu0 %v674
    %2664 = vmatpush1.bf16.msra.mxu0 %v673
    %2665 = vmatprep.subr.bf16.mxu0 0
    %2666 = vmatpush1.bf16.msra.mxu0 0
    %2667 = vmatprep.subr.bf16.mxu0 0
    %2668 = vmatpush1.bf16.msra.mxu0 0
    %2669 = vmatprep.subr.bf16.mxu0 0
    %2670 = vmatpush1.bf16.msra.mxu0 0
    %2671 = vmatprep.subr.bf16.mxu0 0
    %2672 = vmatpush1.bf16.msra.mxu0 0
    %2673 = vmatprep.subr.bf16.mxu0 0
    %2674 = vmatpush1.bf16.msra.mxu0 0
    %2675 = vmatprep.subr.bf16.mxu0 0
    %2676 = vmatpush1.bf16.msra.mxu0 0
    %2677 = vmatprep.subr.bf16.mxu0 0
    %2678 = vmatpush1.bf16.msra.mxu0 0
    %2679 = vmatprep.subr.bf16.mxu0 0
    %2680 = vmatpush1.bf16.msra.mxu0 0
    %2681 = vmatprep.mubr.bf16.mxu0 0
    %2682 = vmatmul.mubr.bf16.gmra.mrb[0].mxu0 %v2525
    %v2683 = vpop.f32.mrb[0].mxu0
    %v2684 = vadd.f32 0.0, %v2683
    %v2685 = vpop.f32.mrb[0].mxu0
    %v2686 = vadd.f32 0.0, %v2685
    %v2687 = vpop.f32.mrb[0].mxu0
    %v2688 = vpop.f32.mrb[0].mxu0
    %2689 = vdwg.mxu0
    %v2690 = vpack.c.bf16 %v2500, %v2500
    %2691 = vmatprep.subr.bf16.mxu0 %v1032
    %2692 = vmatpush1.bf16.msra.mxu0 %v1031
    %2693 = vmatprep.subr.bf16.mxu0 %v1036
    %2694 = vmatpush1.bf16.msra.mxu0 %v1035
    %2695 = vmatprep.subr.bf16.mxu0 %v1040
    %2696 = vmatpush1.bf16.msra.mxu0 %v1039
    %2697 = vmatprep.subr.bf16.mxu0 %v1044
    %2698 = vmatpush1.bf16.msra.mxu0 %v1043
    %2699 = vmatprep.subr.bf16.mxu0 %v1048
    %2700 = vmatpush1.bf16.msra.mxu0 %v1047
    %2701 = vmatprep.subr.bf16.mxu0 %v1052
    %2702 = vmatpush1.bf16.msra.mxu0 %v1051
    %2703 = vmatprep.subr.bf16.mxu0 %v1056
    %2704 = vmatpush1.bf16.msra.mxu0 %v1055
    %2705 = vmatprep.subr.bf16.mxu0 %v1060
    %2706 = vmatpush1.bf16.msra.mxu0 %v1059
    %2707 = vmatprep.subr.bf16.mxu0 0
    %2708 = vmatpush1.bf16.msra.mxu0 0
    %2709 = vmatprep.subr.bf16.mxu0 0
    %2710 = vmatpush1.bf16.msra.mxu0 0
    %2711 = vmatprep.subr.bf16.mxu0 0
    %2712 = vmatpush1.bf16.msra.mxu0 0
    %2713 = vmatprep.subr.bf16.mxu0 0
    %2714 = vmatpush1.bf16.msra.mxu0 0
    %2715 = vmatprep.subr.bf16.mxu0 0
    %2716 = vmatpush1.bf16.msra.mxu0 0
    %2717 = vmatprep.subr.bf16.mxu0 0
    %2718 = vmatpush1.bf16.msra.mxu0 0
    %2719 = vmatprep.subr.bf16.mxu0 0
    %2720 = vmatpush1.bf16.msra.mxu0 0
    %2721 = vmatprep.subr.bf16.mxu0 0
    %2722 = vmatpush1.bf16.msra.mxu0 0
    %2723 = vmatprep.mubr.bf16.mxu0 0
    %2724 = vmatmul.mubr.bf16.gmra.mrb[0].mxu0 %v2690
    %v2725 = vpop.f32.mrb[0].mxu0
    %v2726 = vadd.f32 0.0, %v2725
    %v2727 = vpop.f32.mrb[0].mxu0
    %v2728 = vadd.f32 0.0, %v2727
    %v2729 = vpop.f32.mrb[0].mxu0
    %v2730 = vpop.f32.mrb[0].mxu0
    %2731 = vdwg.mxu0
    %2732 = vmatprep.subr.bf16.mxu0 %v1034
    %2733 = vmatpush1.bf16.msra.mxu0 %v1033
    %2734 = vmatprep.subr.bf16.mxu0 %v1038
    %2735 = vmatpush1.bf16.msra.mxu0 %v1037
    %2736 = vmatprep.subr.bf16.mxu0 %v1042
    %2737 = vmatpush1.bf16.msra.mxu0 %v1041
    %2738 = vmatprep.subr.bf16.mxu0 %v1046
    %2739 = vmatpush1.bf16.msra.mxu0 %v1045
    %2740 = vmatprep.subr.bf16.mxu0 %v1050
    %2741 = vmatpush1.bf16.msra.mxu0 %v1049
    %2742 = vmatprep.subr.bf16.mxu0 %v1054
    %2743 = vmatpush1.bf16.msra.mxu0 %v1053
    %2744 = vmatprep.subr.bf16.mxu0 %v1058
    %2745 = vmatpush1.bf16.msra.mxu0 %v1057
    %2746 = vmatprep.subr.bf16.mxu0 %v1062
    %2747 = vmatpush1.bf16.msra.mxu0 %v1061
    %2748 = vmatprep.subr.bf16.mxu0 0
    %2749 = vmatpush1.bf16.msra.mxu0 0
    %2750 = vmatprep.subr.bf16.mxu0 0
    %2751 = vmatpush1.bf16.msra.mxu0 0
    %2752 = vmatprep.subr.bf16.mxu0 0
    %2753 = vmatpush1.bf16.msra.mxu0 0
    %2754 = vmatprep.subr.bf16.mxu0 0
    %2755 = vmatpush1.bf16.msra.mxu0 0
    %2756 = vmatprep.subr.bf16.mxu0 0
    %2757 = vmatpush1.bf16.msra.mxu0 0
    %2758 = vmatprep.subr.bf16.mxu0 0
    %2759 = vmatpush1.bf16.msra.mxu0 0
    %2760 = vmatprep.subr.bf16.mxu0 0
    %2761 = vmatpush1.bf16.msra.mxu0 0
    %2762 = vmatprep.subr.bf16.mxu0 0
    %2763 = vmatpush1.bf16.msra.mxu0 0
    %2764 = vmatprep.mubr.bf16.mxu0 0
    %2765 = vmatmul.mubr.bf16.gmra.mrb[0].mxu0 %v2690
    %v2766 = vpop.f32.mrb[0].mxu0
    %v2767 = vadd.f32 0.0, %v2766
    %v2768 = vpop.f32.mrb[0].mxu0
    %v2769 = vadd.f32 0.0, %v2768
    %v2770 = vpop.f32.mrb[0].mxu0
    %v2771 = vpop.f32.mrb[0].mxu0
    %2772 = vdwg.mxu0
    %s2773 = smul.u32 6, 4
    %s2774 = smul.addr %s2773, 8
    %s2775 = scalar_lea.vmem [#allocation2], %s2774
    %v2776 = vld [vmem:[%s2775] sm:$0xff]
    %v2777 = vld [vmem:[%s2775 + $0x8] sm:$0xff]
    %v2778 = vld [vmem:[%s2775 + $0x10] sm:$0xff]
    %v2779 = vld [vmem:[%s2775 + $0x18] sm:$0xff]
    %v2780 = vadd.f32 %v2561, %v2776
    %v2781 = vadd.f32 %v2563, %v2777
    %v2782 = vadd.f32 %v2602, %v2778
    %v2783 = vadd.f32 %v2604, %v2779
    %v2784 = vadd.f32 %v2643, %v2726
    %v2785 = vadd.f32 %v2645, %v2728
    %v2786 = vadd.f32 %v2684, %v2767
    %v2787 = vadd.f32 %v2686, %v2769
    %v2788 = vadd.f32 %v2784, %v1196
    %v2789 = vadd.f32 %v2785, %v1200
    %v2790 = vadd.f32 %v2786, %v1204
    %v2791 = vadd.f32 %v2787, %v1208
    %v2792 = vxor.u32 %v2788, 2147483648
    %v2793 = vmul.f32 %v2792, 1.442695
    %v2794 = vpow.pop %v2793
    %v2795 = vadd.f32 %v2794, 1.0
    %v2796 = vrcp.pop %v2795
    %v2797 = vmul.f32 1.0, %v2796
    %v2798 = vxor.u32 %v2789, 2147483648
    %v2799 = vmul.f32 %v2798, 1.442695
    %v2800 = vpow.pop %v2799
    %v2801 = vadd.f32 %v2800, 1.0
    %v2802 = vrcp.pop %v2801
    %v2803 = vmul.f32 1.0, %v2802
    %v2804 = vtanh.pop %v2790
    %v2805 = vxor.u32 %v2791, 2147483648
    %v2806 = vmul.f32 %v2805, 1.442695
    %v2807 = vpow.pop %v2806
    %v2808 = vadd.f32 %v2807, 1.0
    %v2809 = vrcp.pop %v2808
    %v2810 = vmul.f32 1.0, %v2809
    %v2811 = vmul.f32 %v2803, %v2498
    %v2812 = vmul.f32 %v2797, %v2804
    %v2813 = vadd.f32 %v2811, %v2812
    %v2814 = vtanh.pop %v2813
    %v2815 = vmul.f32 %v2810, %v2814
    %v2816 = vxor.u32 %v2780, 2147483648
    %v2817 = vmul.f32 %v2816, 1.442695
    %v2818 = vpow.pop %v2817
    %v2819 = vadd.f32 %v2818, 1.0
    %v2820 = vrcp.pop %v2819
    %v2821 = vmul.f32 1.0, %v2820
    %v2822 = vxor.u32 %v2781, 2147483648
    %v2823 = vmul.f32 %v2822, 1.442695
    %v2824 = vpow.pop %v2823
    %v2825 = vadd.f32 %v2824, 1.0
    %v2826 = vrcp.pop %v2825
    %v2827 = vmul.f32 1.0, %v2826
    %v2828 = vtanh.pop %v2782
    %v2829 = vxor.u32 %v2783, 2147483648
    %v2830 = vmul.f32 %v2829, 1.442695
    %v2831 = vpow.pop %v2830
    %v2832 = vadd.f32 %v2831, 1.0
    %v2833 = vrcp.pop %v2832
    %v2834 = vmul.f32 1.0, %v2833
    %v2835 = vmul.f32 %v2827, %v2522
    %v2836 = vmul.f32 %v2821, %v2828
    %v2837 = vadd.f32 %v2835, %v2836
    %v2838 = vtanh.pop %v2837
    %v2839 = vmul.f32 %v2834, %v2838
    %v2840 = vpack.c.bf16 %v2839, %v2839
    %2841 = vmatprep.subr.bf16.mxu0 %v612
    %2842 = vmatpush1.bf16.msra.mxu0 %v611
    %2843 = vmatprep.subr.bf16.mxu0 %v620
    %2844 = vmatpush1.bf16.msra.mxu0 %v619
    %2845 = vmatprep.subr.bf16.mxu0 %v628
    %2846 = vmatpush1.bf16.msra.mxu0 %v627
    %2847 = vmatprep.subr.bf16.mxu0 %v636
    %2848 = vmatpush1.bf16.msra.mxu0 %v635
    %2849 = vmatprep.subr.bf16.mxu0 %v644
    %2850 = vmatpush1.bf16.msra.mxu0 %v643
    %2851 = vmatprep.subr.bf16.mxu0 %v652
    %2852 = vmatpush1.bf16.msra.mxu0 %v651
    %2853 = vmatprep.subr.bf16.mxu0 %v660
    %2854 = vmatpush1.bf16.msra.mxu0 %v659
    %2855 = vmatprep.subr.bf16.mxu0 %v668
    %2856 = vmatpush1.bf16.msra.mxu0 %v667
    %2857 = vmatprep.subr.bf16.mxu0 0
    %2858 = vmatpush1.bf16.msra.mxu0 0
    %2859 = vmatprep.subr.bf16.mxu0 0
    %2860 = vmatpush1.bf16.msra.mxu0 0
    %2861 = vmatprep.subr.bf16.mxu0 0
    %2862 = vmatpush1.bf16.msra.mxu0 0
    %2863 = vmatprep.subr.bf16.mxu0 0
    %2864 = vmatpush1.bf16.msra.mxu0 0
    %2865 = vmatprep.subr.bf16.mxu0 0
    %2866 = vmatpush1.bf16.msra.mxu0 0
    %2867 = vmatprep.subr.bf16.mxu0 0
    %2868 = vmatpush1.bf16.msra.mxu0 0
    %2869 = vmatprep.subr.bf16.mxu0 0
    %2870 = vmatpush1.bf16.msra.mxu0 0
    %2871 = vmatprep.subr.bf16.mxu0 0
    %2872 = vmatpush1.bf16.msra.mxu0 0
    %2873 = vmatprep.mubr.bf16.mxu0 0
    %2874 = vmatmul.mubr.bf16.gmra.mrb[0].mxu0 %v2840
    %v2875 = vpop.f32.mrb[0].mxu0
    %v2876 = vadd.f32 0.0, %v2875
    %v2877 = vpop.f32.mrb[0].mxu0
    %v2878 = vadd.f32 0.0, %v2877
    %v2879 = vpop.f32.mrb[0].mxu0
    %v2880 = vpop.f32.mrb[0].mxu0
    %2881 = vdwg.mxu0
    %2882 = vmatprep.subr.bf16.mxu0 %v614
    %2883 = vmatpush1.bf16.msra.mxu0 %v613
    %2884 = vmatprep.subr.bf16.mxu0 %v622
    %2885 = vmatpush1.bf16.msra.mxu0 %v621
    %2886 = vmatprep.subr.bf16.mxu0 %v630
    %2887 = vmatpush1.bf16.msra.mxu0 %v629
    %2888 = vmatprep.subr.bf16.mxu0 %v638
    %2889 = vmatpush1.bf16.msra.mxu0 %v637
    %2890 = vmatprep.subr.bf16.mxu0 %v646
    %2891 = vmatpush1.bf16.msra.mxu0 %v645
    %2892 = vmatprep.subr.bf16.mxu0 %v654
    %2893 = vmatpush1.bf16.msra.mxu0 %v653
    %2894 = vmatprep.subr.bf16.mxu0 %v662
    %2895 = vmatpush1.bf16.msra.mxu0 %v661
    %2896 = vmatprep.subr.bf16.mxu0 %v670
    %2897 = vmatpush1.bf16.msra.mxu0 %v669
    %2898 = vmatprep.subr.bf16.mxu0 0
    %2899 = vmatpush1.bf16.msra.mxu0 0
    %2900 = vmatprep.subr.bf16.mxu0 0
    %2901 = vmatpush1.bf16.msra.mxu0 0
    %2902 = vmatprep.subr.bf16.mxu0 0
    %2903 = vmatpush1.bf16.msra.mxu0 0
    %2904 = vmatprep.subr.bf16.mxu0 0
    %2905 = vmatpush1.bf16.msra.mxu0 0
    %2906 = vmatprep.subr.bf16.mxu0 0
    %2907 = vmatpush1.bf16.msra.mxu0 0
    %2908 = vmatprep.subr.bf16.mxu0 0
    %2909 = vmatpush1.bf16.msra.mxu0 0
    %2910 = vmatprep.subr.bf16.mxu0 0
    %2911 = vmatpush1.bf16.msra.mxu0 0
    %2912 = vmatprep.subr.bf16.mxu0 0
    %2913 = vmatpush1.bf16.msra.mxu0 0
    %2914 = vmatprep.mubr.bf16.mxu0 0
    %2915 = vmatmul.mubr.bf16.gmra.mrb[0].mxu0 %v2840
    %v2916 = vpop.f32.mrb[0].mxu0
    %v2917 = vadd.f32 0.0, %v2916
    %v2918 = vpop.f32.mrb[0].mxu0
    %v2919 = vadd.f32 0.0, %v2918
    %v2920 = vpop.f32.mrb[0].mxu0
    %v2921 = vpop.f32.mrb[0].mxu0
    %2922 = vdwg.mxu0
    %2923 = vmatprep.subr.bf16.mxu0 %v616
    %2924 = vmatpush1.bf16.msra.mxu0 %v615
    %2925 = vmatprep.subr.bf16.mxu0 %v624
    %2926 = vmatpush1.bf16.msra.mxu0 %v623
    %2927 = vmatprep.subr.bf16.mxu0 %v632
    %2928 = vmatpush1.bf16.msra.mxu0 %v631
    %2929 = vmatprep.subr.bf16.mxu0 %v640
    %2930 = vmatpush1.bf16.msra.mxu0 %v639
    %2931 = vmatprep.subr.bf16.mxu0 %v648
    %2932 = vmatpush1.bf16.msra.mxu0 %v647
    %2933 = vmatprep.subr.bf16.mxu0 %v656
    %2934 = vmatpush1.bf16.msra.mxu0 %v655
    %2935 = vmatprep.subr.bf16.mxu0 %v664
    %2936 = vmatpush1.bf16.msra.mxu0 %v663
    %2937 = vmatprep.subr.bf16.mxu0 %v672
    %2938 = vmatpush1.bf16.msra.mxu0 %v671
    %2939 = vmatprep.subr.bf16.mxu0 0
    %2940 = vmatpush1.bf16.msra.mxu0 0
    %2941 = vmatprep.subr.bf16.mxu0 0
    %2942 = vmatpush1.bf16.msra.mxu0 0
    %2943 = vmatprep.subr.bf16.mxu0 0
    %2944 = vmatpush1.bf16.msra.mxu0 0
    %2945 = vmatprep.subr.bf16.mxu0 0
    %2946 = vmatpush1.bf16.msra.mxu0 0
    %2947 = vmatprep.subr.bf16.mxu0 0
    %2948 = vmatpush1.bf16.msra.mxu0 0
    %2949 = vmatprep.subr.bf16.mxu0 0
    %2950 = vmatpush1.bf16.msra.mxu0 0
    %2951 = vmatprep.subr.bf16.mxu0 0
    %2952 = vmatpush1.bf16.msra.mxu0 0
    %2953 = vmatprep.subr.bf16.mxu0 0
    %2954 = vmatpush1.bf16.msra.mxu0 0
    %2955 = vmatprep.mubr.bf16.mxu0 0
    %2956 = vmatmul.mubr.bf16.gmra.mrb[0].mxu0 %v2840
    %v2957 = vpop.f32.mrb[0].mxu0
    %v2958 = vadd.f32 0.0, %v2957
    %v2959 = vpop.f32.mrb[0].mxu0
    %v2960 = vadd.f32 0.0, %v2959
    %v2961 = vpop.f32.mrb[0].mxu0
    %v2962 = vpop.f32.mrb[0].mxu0
    %2963 = vdwg.mxu0
    %2964 = vmatprep.subr.bf16.mxu0 %v618
    %2965 = vmatpush1.bf16.msra.mxu0 %v617
    %2966 = vmatprep.subr.bf16.mxu0 %v626
    %2967 = vmatpush1.bf16.msra.mxu0 %v625
    %2968 = vmatprep.subr.bf16.mxu0 %v634
    %2969 = vmatpush1.bf16.msra.mxu0 %v633
    %2970 = vmatprep.subr.bf16.mxu0 %v642
    %2971 = vmatpush1.bf16.msra.mxu0 %v641
    %2972 = vmatprep.subr.bf16.mxu0 %v650
    %2973 = vmatpush1.bf16.msra.mxu0 %v649
    %2974 = vmatprep.subr.bf16.mxu0 %v658
    %2975 = vmatpush1.bf16.msra.mxu0 %v657
    %2976 = vmatprep.subr.bf16.mxu0 %v666
    %2977 = vmatpush1.bf16.msra.mxu0 %v665
    %2978 = vmatprep.subr.bf16.mxu0 %v674
    %2979 = vmatpush1.bf16.msra.mxu0 %v673
    %2980 = vmatprep.subr.bf16.mxu0 0
    %2981 = vmatpush1.bf16.msra.mxu0 0
    %2982 = vmatprep.subr.bf16.mxu0 0
    %2983 = vmatpush1.bf16.msra.mxu0 0
    %2984 = vmatprep.subr.bf16.mxu0 0
    %2985 = vmatpush1.bf16.msra.mxu0 0
    %2986 = vmatprep.subr.bf16.mxu0 0
    %2987 = vmatpush1.bf16.msra.mxu0 0
    %2988 = vmatprep.subr.bf16.mxu0 0
    %2989 = vmatpush1.bf16.msra.mxu0 0
    %2990 = vmatprep.subr.bf16.mxu0 0
    %2991 = vmatpush1.bf16.msra.mxu0 0
    %2992 = vmatprep.subr.bf16.mxu0 0
    %2993 = vmatpush1.bf16.msra.mxu0 0
    %2994 = vmatprep.subr.bf16.mxu0 0
    %2995 = vmatpush1.bf16.msra.mxu0 0
    %2996 = vmatprep.mubr.bf16.mxu0 0
    %2997 = vmatmul.mubr.bf16.gmra.mrb[0].mxu0 %v2840
    %v2998 = vpop.f32.mrb[0].mxu0
    %v2999 = vadd.f32 0.0, %v2998
    %v3000 = vpop.f32.mrb[0].mxu0
    %v3001 = vadd.f32 0.0, %v3000
    %v3002 = vpop.f32.mrb[0].mxu0
    %v3003 = vpop.f32.mrb[0].mxu0
    %3004 = vdwg.mxu0
    %v3005 = vpack.c.bf16 %v2815, %v2815
    %3006 = vmatprep.subr.bf16.mxu0 %v1032
    %3007 = vmatpush1.bf16.msra.mxu0 %v1031
    %3008 = vmatprep.subr.bf16.mxu0 %v1036
    %3009 = vmatpush1.bf16.msra.mxu0 %v1035
    %3010 = vmatprep.subr.bf16.mxu0 %v1040
    %3011 = vmatpush1.bf16.msra.mxu0 %v1039
    %3012 = vmatprep.subr.bf16.mxu0 %v1044
    %3013 = vmatpush1.bf16.msra.mxu0 %v1043
    %3014 = vmatprep.subr.bf16.mxu0 %v1048
    %3015 = vmatpush1.bf16.msra.mxu0 %v1047
    %3016 = vmatprep.subr.bf16.mxu0 %v1052
    %3017 = vmatpush1.bf16.msra.mxu0 %v1051
    %3018 = vmatprep.subr.bf16.mxu0 %v1056
    %3019 = vmatpush1.bf16.msra.mxu0 %v1055
    %3020 = vmatprep.subr.bf16.mxu0 %v1060
    %3021 = vmatpush1.bf16.msra.mxu0 %v1059
    %3022 = vmatprep.subr.bf16.mxu0 0
    %3023 = vmatpush1.bf16.msra.mxu0 0
    %3024 = vmatprep.subr.bf16.mxu0 0
    %3025 = vmatpush1.bf16.msra.mxu0 0
    %3026 = vmatprep.subr.bf16.mxu0 0
    %3027 = vmatpush1.bf16.msra.mxu0 0
    %3028 = vmatprep.subr.bf16.mxu0 0
    %3029 = vmatpush1.bf16.msra.mxu0 0
    %3030 = vmatprep.subr.bf16.mxu0 0
    %3031 = vmatpush1.bf16.msra.mxu0 0
    %3032 = vmatprep.subr.bf16.mxu0 0
    %3033 = vmatpush1.bf16.msra.mxu0 0
    %3034 = vmatprep.subr.bf16.mxu0 0
    %3035 = vmatpush1.bf16.msra.mxu0 0
    %3036 = vmatprep.subr.bf16.mxu0 0
    %3037 = vmatpush1.bf16.msra.mxu0 0
    %3038 = vmatprep.mubr.bf16.mxu0 0
    %3039 = vmatmul.mubr.bf16.gmra.mrb[0].mxu0 %v3005
    %v3040 = vpop.f32.mrb[0].mxu0
    %v3041 = vadd.f32 0.0, %v3040
    %v3042 = vpop.f32.mrb[0].mxu0
    %v3043 = vadd.f32 0.0, %v3042
    %v3044 = vpop.f32.mrb[0].mxu0
    %v3045 = vpop.f32.mrb[0].mxu0
    %3046 = vdwg.mxu0
    %3047 = vmatprep.subr.bf16.mxu0 %v1034
    %3048 = vmatpush1.bf16.msra.mxu0 %v1033
    %3049 = vmatprep.subr.bf16.mxu0 %v1038
    %3050 = vmatpush1.bf16.msra.mxu0 %v1037
    %3051 = vmatprep.subr.bf16.mxu0 %v1042
    %3052 = vmatpush1.bf16.msra.mxu0 %v1041
    %3053 = vmatprep.subr.bf16.mxu0 %v1046
    %3054 = vmatpush1.bf16.msra.mxu0 %v1045
    %3055 = vmatprep.subr.bf16.mxu0 %v1050
    %3056 = vmatpush1.bf16.msra.mxu0 %v1049
    %3057 = vmatprep.subr.bf16.mxu0 %v1054
    %3058 = vmatpush1.bf16.msra.mxu0 %v1053
    %3059 = vmatprep.subr.bf16.mxu0 %v1058
    %3060 = vmatpush1.bf16.msra.mxu0 %v1057
    %3061 = vmatprep.subr.bf16.mxu0 %v1062
    %3062 = vmatpush1.bf16.msra.mxu0 %v1061
    %3063 = vmatprep.subr.bf16.mxu0 0
    %3064 = vmatpush1.bf16.msra.mxu0 0
    %3065 = vmatprep.subr.bf16.mxu0 0
    %3066 = vmatpush1.bf16.msra.mxu0 0
    %3067 = vmatprep.subr.bf16.mxu0 0
    %3068 = vmatpush1.bf16.msra.mxu0 0
    %3069 = vmatprep.subr.bf16.mxu0 0
    %3070 = vmatpush1.bf16.msra.mxu0 0
    %3071 = vmatprep.subr.bf16.mxu0 0
    %3072 = vmatpush1.bf16.msra.mxu0 0
    %3073 = vmatprep.subr.bf16.mxu0 0
    %3074 = vmatpush1.bf16.msra.mxu0 0
    %3075 = vmatprep.subr.bf16.mxu0 0
    %3076 = vmatpush1.bf16.msra.mxu0 0
    %3077 = vmatprep.subr.bf16.mxu0 0
    %3078 = vmatpush1.bf16.msra.mxu0 0
    %3079 = vmatprep.mubr.bf16.mxu0 0
    %3080 = vmatmul.mubr.bf16.gmra.mrb[0].mxu0 %v3005
    %v3081 = vpop.f32.mrb[0].mxu0
    %v3082 = vadd.f32 0.0, %v3081
    %v3083 = vpop.f32.mrb[0].mxu0
    %v3084 = vadd.f32 0.0, %v3083
    %v3085 = vpop.f32.mrb[0].mxu0
    %v3086 = vpop.f32.mrb[0].mxu0
    %3087 = vdwg.mxu0
    %s3088 = smul.u32 7, 4
    %s3089 = smul.addr %s3088, 8
    %s3090 = scalar_lea.vmem [#allocation2], %s3089
    %v3091 = vld [vmem:[%s3090] sm:$0xff]
    %v3092 = vld [vmem:[%s3090 + $0x8] sm:$0xff]
    %v3093 = vld [vmem:[%s3090 + $0x10] sm:$0xff]
    %v3094 = vld [vmem:[%s3090 + $0x18] sm:$0xff]
    %v3095 = vadd.f32 %v2876, %v3091
    %v3096 = vadd.f32 %v2878, %v3092
    %v3097 = vadd.f32 %v2917, %v3093
    %v3098 = vadd.f32 %v2919, %v3094
    %v3099 = vadd.f32 %v2958, %v3041
    %v3100 = vadd.f32 %v2960, %v3043
    %v3101 = vadd.f32 %v2999, %v3082
    %v3102 = vadd.f32 %v3001, %v3084
    %v3103 = vadd.f32 %v3099, %v1196
    %v3104 = vadd.f32 %v3100, %v1200
    %v3105 = vadd.f32 %v3101, %v1204
    %v3106 = vadd.f32 %v3102, %v1208
    %v3107 = vxor.u32 %v3103, 2147483648
    %v3108 = vmul.f32 %v3107, 1.442695
    %v3109 = vpow.pop %v3108
    %v3110 = vadd.f32 %v3109, 1.0
    %v3111 = vrcp.pop %v3110
    %v3112 = vmul.f32 1.0, %v3111
    %v3113 = vxor.u32 %v3104, 2147483648
    %v3114 = vmul.f32 %v3113, 1.442695
    %v3115 = vpow.pop %v3114
    %v3116 = vadd.f32 %v3115, 1.0
    %v3117 = vrcp.pop %v3116
    %v3118 = vmul.f32 1.0, %v3117
    %v3119 = vtanh.pop %v3105
    %v3120 = vxor.u32 %v3106, 2147483648
    %v3121 = vmul.f32 %v3120, 1.442695
    %v3122 = vpow.pop %v3121
    %v3123 = vadd.f32 %v3122, 1.0
    %v3124 = vrcp.pop %v3123
    %v3125 = vmul.f32 1.0, %v3124
    %v3126 = vmul.f32 %v3118, %v2813
    %v3127 = vmul.f32 %v3112, %v3119
    %v3128 = vadd.f32 %v3126, %v3127
    %v3129 = vtanh.pop %v3128
    %v3130 = vmul.f32 %v3125, %v3129
    %v3131 = vxor.u32 %v3095, 2147483648
    %v3132 = vmul.f32 %v3131, 1.442695
    %v3133 = vpow.pop %v3132
    %v3134 = vadd.f32 %v3133, 1.0
    %v3135 = vrcp.pop %v3134
    %v3136 = vmul.f32 1.0, %v3135
    %v3137 = vxor.u32 %v3096, 2147483648
    %v3138 = vmul.f32 %v3137, 1.442695
    %v3139 = vpow.pop %v3138
    %v3140 = vadd.f32 %v3139, 1.0
    %v3141 = vrcp.pop %v3140
    %v3142 = vmul.f32 1.0, %v3141
    %v3143 = vtanh.pop %v3097
    %v3144 = vxor.u32 %v3098, 2147483648
    %v3145 = vmul.f32 %v3144, 1.442695
    %v3146 = vpow.pop %v3145
    %v3147 = vadd.f32 %v3146, 1.0
    %v3148 = vrcp.pop %v3147
    %v3149 = vmul.f32 1.0, %v3148
    %v3150 = vmul.f32 %v3142, %v2837
    %v3151 = vmul.f32 %v3136, %v3143
    %v3152 = vadd.f32 %v3150, %v3151
    %v3153 = vtanh.pop %v3152
    %v3154 = vmul.f32 %v3149, %v3153
    %v3155 = vpack.c.bf16 %v3154, %v3154
    %v3156 = vpack.c.bf16 %v3130, %v3130
    %3157 = vmatprep.subr.bf16.mxu0 %v1032
    %3158 = vmatpush1.bf16.msra.mxu0 %v1031
    %3159 = vmatprep.subr.bf16.mxu0 %v1036
    %3160 = vmatpush1.bf16.msra.mxu0 %v1035
    %3161 = vmatprep.subr.bf16.mxu0 %v1040
    %3162 = vmatpush1.bf16.msra.mxu0 %v1039
    %3163 = vmatprep.subr.bf16.mxu0 %v1044
    %3164 = vmatpush1.bf16.msra.mxu0 %v1043
    %3165 = vmatprep.subr.bf16.mxu0 %v1048
    %3166 = vmatpush1.bf16.msra.mxu0 %v1047
    %3167 = vmatprep.subr.bf16.mxu0 %v1052
    %3168 = vmatpush1.bf16.msra.mxu0 %v1051
    %3169 = vmatprep.subr.bf16.mxu0 %v1056
    %3170 = vmatpush1.bf16.msra.mxu0 %v1055
    %3171 = vmatprep.subr.bf16.mxu0 %v1060
    %3172 = vmatpush1.bf16.msra.mxu0 %v1059
    %3173 = vmatprep.subr.bf16.mxu0 0
    %3174 = vmatpush1.bf16.msra.mxu0 0
    %3175 = vmatprep.subr.bf16.mxu0 0
    %3176 = vmatpush1.bf16.msra.mxu0 0
    %3177 = vmatprep.subr.bf16.mxu0 0
    %3178 = vmatpush1.bf16.msra.mxu0 0
    %3179 = vmatprep.subr.bf16.mxu0 0
    %3180 = vmatpush1.bf16.msra.mxu0 0
    %3181 = vmatprep.subr.bf16.mxu0 0
    %3182 = vmatpush1.bf16.msra.mxu0 0
    %3183 = vmatprep.subr.bf16.mxu0 0
    %3184 = vmatpush1.bf16.msra.mxu0 0
    %3185 = vmatprep.subr.bf16.mxu0 0
    %3186 = vmatpush1.bf16.msra.mxu0 0
    %3187 = vmatprep.subr.bf16.mxu0 0
    %3188 = vmatpush1.bf16.msra.mxu0 0
    %3189 = vmatprep.mubr.bf16.mxu0 0
    %3190 = vmatmul.mubr.bf16.gmra.mrb[0].mxu0 %v3156
    %v3191 = vpop.f32.mrb[0].mxu0
    %v3192 = vadd.f32 0.0, %v3191
    %v3193 = vpop.f32.mrb[0].mxu0
    %v3194 = vadd.f32 0.0, %v3193
    %v3195 = vpop.f32.mrb[0].mxu0
    %v3196 = vpop.f32.mrb[0].mxu0
    %3197 = vdwg.mxu0
    %3198 = vmatprep.subr.bf16.mxu0 %v1034
    %3199 = vmatpush1.bf16.msra.mxu0 %v1033
    %3200 = vmatprep.subr.bf16.mxu0 %v1038
    %3201 = vmatpush1.bf16.msra.mxu0 %v1037
    %3202 = vmatprep.subr.bf16.mxu0 %v1042
    %3203 = vmatpush1.bf16.msra.mxu0 %v1041
    %3204 = vmatprep.subr.bf16.mxu0 %v1046
    %3205 = vmatpush1.bf16.msra.mxu0 %v1045
    %3206 = vmatprep.subr.bf16.mxu0 %v1050
    %3207 = vmatpush1.bf16.msra.mxu0 %v1049
    %3208 = vmatprep.subr.bf16.mxu0 %v1054
    %3209 = vmatpush1.bf16.msra.mxu0 %v1053
    %3210 = vmatprep.subr.bf16.mxu0 %v1058
    %3211 = vmatpush1.bf16.msra.mxu0 %v1057
    %3212 = vmatprep.subr.bf16.mxu0 %v1062
    %3213 = vmatpush1.bf16.msra.mxu0 %v1061
    %3214 = vmatprep.subr.bf16.mxu0 0
    %3215 = vmatpush1.bf16.msra.mxu0 0
    %3216 = vmatprep.subr.bf16.mxu0 0
    %3217 = vmatpush1.bf16.msra.mxu0 0
    %3218 = vmatprep.subr.bf16.mxu0 0
    %3219 = vmatpush1.bf16.msra.mxu0 0
    %3220 = vmatprep.subr.bf16.mxu0 0
    %3221 = vmatpush1.bf16.msra.mxu0 0
    %3222 = vmatprep.subr.bf16.mxu0 0
    %3223 = vmatpush1.bf16.msra.mxu0 0
    %3224 = vmatprep.subr.bf16.mxu0 0
    %3225 = vmatpush1.bf16.msra.mxu0 0
    %3226 = vmatprep.subr.bf16.mxu0 0
    %3227 = vmatpush1.bf16.msra.mxu0 0
    %3228 = vmatprep.subr.bf16.mxu0 0
    %3229 = vmatpush1.bf16.msra.mxu0 0
    %3230 = vmatprep.mubr.bf16.mxu0 0
    %3231 = vmatmul.mubr.bf16.gmra.mrb[0].mxu0 %v3156
    %v3232 = vpop.f32.mrb[0].mxu0
    %v3233 = vadd.f32 0.0, %v3232
    %v3234 = vpop.f32.mrb[0].mxu0
    %v3235 = vadd.f32 0.0, %v3234
    %v3236 = vpop.f32.mrb[0].mxu0
    %v3237 = vpop.f32.mrb[0].mxu0
    %3238 = vdwg.mxu0
    %3239 = vmatprep.subr.bf16.mxu0 %v616
    %3240 = vmatpush1.bf16.msra.mxu0 %v615
    %3241 = vmatprep.subr.bf16.mxu0 %v624
    %3242 = vmatpush1.bf16.msra.mxu0 %v623
    %3243 = vmatprep.subr.bf16.mxu0 %v632
    %3244 = vmatpush1.bf16.msra.mxu0 %v631
    %3245 = vmatprep.subr.bf16.mxu0 %v640
    %3246 = vmatpush1.bf16.msra.mxu0 %v639
    %3247 = vmatprep.subr.bf16.mxu0 %v648
    %3248 = vmatpush1.bf16.msra.mxu0 %v647
    %3249 = vmatprep.subr.bf16.mxu0 %v656
    %3250 = vmatpush1.bf16.msra.mxu0 %v655
    %3251 = vmatprep.subr.bf16.mxu0 %v664
    %3252 = vmatpush1.bf16.msra.mxu0 %v663
    %3253 = vmatprep.subr.bf16.mxu0 %v672
    %3254 = vmatpush1.bf16.msra.mxu0 %v671
    %3255 = vmatprep.subr.bf16.mxu0 0
    %3256 = vmatpush1.bf16.msra.mxu0 0
    %3257 = vmatprep.subr.bf16.mxu0 0
    %3258 = vmatpush1.bf16.msra.mxu0 0
    %3259 = vmatprep.subr.bf16.mxu0 0
    %3260 = vmatpush1.bf16.msra.mxu0 0
    %3261 = vmatprep.subr.bf16.mxu0 0
    %3262 = vmatpush1.bf16.msra.mxu0 0
    %3263 = vmatprep.subr.bf16.mxu0 0
    %3264 = vmatpush1.bf16.msra.mxu0 0
    %3265 = vmatprep.subr.bf16.mxu0 0
    %3266 = vmatpush1.bf16.msra.mxu0 0
    %3267 = vmatprep.subr.bf16.mxu0 0
    %3268 = vmatpush1.bf16.msra.mxu0 0
    %3269 = vmatprep.subr.bf16.mxu0 0
    %3270 = vmatpush1.bf16.msra.mxu0 0
    %3271 = vmatprep.mubr.bf16.mxu0 0
    %3272 = vmatmul.mubr.bf16.gmra.mrb[0].mxu0 %v3155
    %v3273 = vpop.f32.mrb[0].mxu0
    %v3274 = vadd.f32 %v3192, %v3273
    %v3275 = vpop.f32.mrb[0].mxu0
    %v3276 = vadd.f32 %v3194, %v3275
    %v3277 = vpop.f32.mrb[0].mxu0
    %v3278 = vpop.f32.mrb[0].mxu0
    %3279 = vdwg.mxu0
    %3280 = vmatprep.subr.bf16.mxu0 %v618
    %3281 = vmatpush1.bf16.msra.mxu0 %v617
    %3282 = vmatprep.subr.bf16.mxu0 %v626
    %3283 = vmatpush1.bf16.msra.mxu0 %v625
    %3284 = vmatprep.subr.bf16.mxu0 %v634
    %3285 = vmatpush1.bf16.msra.mxu0 %v633
    %3286 = vmatprep.subr.bf16.mxu0 %v642
    %3287 = vmatpush1.bf16.msra.mxu0 %v641
    %3288 = vmatprep.subr.bf16.mxu0 %v650
    %3289 = vmatpush1.bf16.msra.mxu0 %v649
    %3290 = vmatprep.subr.bf16.mxu0 %v658
    %3291 = vmatpush1.bf16.msra.mxu0 %v657
    %3292 = vmatprep.subr.bf16.mxu0 %v666
    %3293 = vmatpush1.bf16.msra.mxu0 %v665
    %3294 = vmatprep.subr.bf16.mxu0 %v674
    %3295 = vmatpush1.bf16.msra.mxu0 %v673
    %3296 = vmatprep.subr.bf16.mxu0 0
    %3297 = vmatpush1.bf16.msra.mxu0 0
    %3298 = vmatprep.subr.bf16.mxu0 0
    %3299 = vmatpush1.bf16.msra.mxu0 0
    %3300 = vmatprep.subr.bf16.mxu0 0
    %3301 = vmatpush1.bf16.msra.mxu0 0
    %3302 = vmatprep.subr.bf16.mxu0 0
    %3303 = vmatpush1.bf16.msra.mxu0 0
    %3304 = vmatprep.subr.bf16.mxu0 0
    %3305 = vmatpush1.bf16.msra.mxu0 0
    %3306 = vmatprep.subr.bf16.mxu0 0
    %3307 = vmatpush1.bf16.msra.mxu0 0
    %3308 = vmatprep.subr.bf16.mxu0 0
    %3309 = vmatpush1.bf16.msra.mxu0 0
    %3310 = vmatprep.subr.bf16.mxu0 0
    %3311 = vmatpush1.bf16.msra.mxu0 0
    %3312 = vmatprep.mubr.bf16.mxu0 0
    %3313 = vmatmul.mubr.bf16.gmra.mrb[0].mxu0 %v3155
    %v3314 = vpop.f32.mrb[0].mxu0
    %v3315 = vadd.f32 %v3233, %v3314
    %v3316 = vpop.f32.mrb[0].mxu0
    %v3317 = vadd.f32 %v3235, %v3316
    %v3318 = vpop.f32.mrb[0].mxu0
    %v3319 = vpop.f32.mrb[0].mxu0
    %3320 = vdwg.mxu0
    %v3321 = vadd.f32 %v3274, %v1196
    %v3322 = vadd.f32 %v3276, %v1200
    %v3323 = vadd.f32 %v3315, %v1204
    %v3324 = vadd.f32 %v3317, %v1208
    %v3325 = vxor.u32 %v3321, 2147483648
    %v3326 = vmul.f32 %v3325, 1.442695
    %v3327 = vpow.pop %v3326
    %v3328 = vadd.f32 %v3327, 1.0
    %v3329 = vrcp.pop %v3328
    %v3330 = vmul.f32 1.0, %v3329
    %v3331 = vxor.u32 %v3322, 2147483648
    %v3332 = vmul.f32 %v3331, 1.442695
    %v3333 = vpow.pop %v3332
    %v3334 = vadd.f32 %v3333, 1.0
    %v3335 = vrcp.pop %v3334
    %v3336 = vmul.f32 1.0, %v3335
    %v3337 = vtanh.pop %v3323
    %v3338 = vxor.u32 %v3324, 2147483648
    %v3339 = vmul.f32 %v3338, 1.442695
    %v3340 = vpow.pop %v3339
    %v3341 = vadd.f32 %v3340, 1.0
    %v3342 = vrcp.pop %v3341
    %v3343 = vmul.f32 1.0, %v3342
    %v3344 = vmul.f32 %v3336, %v3128
    %v3345 = vmul.f32 %v3330, %v3337
    %v3346 = vadd.f32 %v3344, %v3345
    %v3347 = vtanh.pop %v3346
    %v3348 = vmul.f32 %v3343, %v3347
    %v3349 = vld [vmem:[%s6] sm:$0x1]
    %v3351 = vlaneseq
    %v3352 = vshrl.u32 %v3351, 7
    %v3353 = vsub.s32 0, %v3352
    %v3354 = vrot.slane %v3349, %v3353
    %v3356 = vmul.f32 %v3348, %v3354
    %3357 = vadd.xlane.f32.xlu0 %v3356
    %v3358 = vpop.xlane.xlu0 %3357
    %v3359 = vld [vmem:[#allocation3] sm:$0x1]
    %v3361 = vlaneseq
    %v3362 = vshrl.u32 %v3361, 7
    %v3363 = vsub.s32 0, %v3362
    %v3364 = vrot.slane %v3359, %v3363
    %v3366 = vadd.f32 %v3358, %v3364
    %vm3367 = vcmask 7168
    %3368 = vst.msk [vmem:[%s8] sm:$0xff] %vm3367, %v3366
    // Predicated region
    $region42: #{tpu_custom_call.1} parent=1 // pred_check
      _
    $region43: #{tpu_custom_call.1} parent=1 // pred_check_branch
      %3370 = sbr.rel (0) target = $region45
    $region44: #{tpu_custom_call.1} parent=1 // pred_region
      _
    $region45: #{tpu_custom_call.1} parent=1 // pred_fallthru
      _
    // Predicated region
    $region46: #{tpu_custom_call.1} parent=1 // pred_check
      _
    $region47: #{tpu_custom_call.1} parent=1 // pred_check_branch
      %3372 = sbr.rel (0) target = $region49
    $region48: #{tpu_custom_call.1} parent=1 // pred_region
      _
    $region49: #{tpu_custom_call.1} parent=1 // pred_fallthru
      _
    %3373 = vsyncpa [#allocation5], 1
    %3374 = vsyncpa [#allocation7], 1

</llo_original>
